<compile_context>
chip_gen: v5e
topology: v5e:2x2
jax: 0.10.0
libtpu: 0.0.40
codegen_flags: <defaults>
</compile_context>

<pallas_src>
import functools

import jax
import jax.numpy as jnp
from jax import lax
from jax.experimental import pallas as pl
from jax.experimental.pallas import tpu as pltpu


# --------------------------------------------------------------------------
# Fused encoder-recurrence + greedy-decoder kernel (one N-tile per grid step)
# --------------------------------------------------------------------------
def _seq2seq_kernel(xpre_ref, enc_whh_ref, dec_tab_ref, dec_whh_ref,
                    wout_ref, bout_ref, logits_ref):
    Twl, TN, G = xpre_ref.shape          # G = 4H (gate-fused lane axis)
    H = G // 4
    L, _, V = logits_ref.shape
    f32 = jnp.float32

    def gates_to_state(gates, c):
        # static 32-lane slices out of the lane-dense (TN, 4H) pre-activation
        i = jax.nn.sigmoid(gates[:, 0 * H:1 * H])
        f = jax.nn.sigmoid(gates[:, 1 * H:2 * H])
        g = jnp.tanh(gates[:, 2 * H:3 * H])
        o = jax.nn.sigmoid(gates[:, 3 * H:4 * H])
        c_new = f * c + i * g
        h_new = o * jnp.tanh(c_new)
        return h_new, c_new

    # ---- Encoder recurrence: only h @ W_hh is on the serial chain; the
    #      char/word/bias input pre-activations arrive as a precomputed
    #      lane-dense (Twl, TN, 4H) slab.
    enc_whh = enc_whh_ref[...]                                    # (H, 4H)
    h = jnp.zeros((TN, H), f32)
    c = jnp.zeros((TN, H), f32)
    for t in range(Twl):   # small fixed trip count -> full unroll
        gates = xpre_ref[t] + jnp.dot(h, enc_whh, preferred_element_type=f32)
        h, c = gates_to_state(gates, c)
    # TODO(synk): no per-word char-length masking (packed-sequence behaviour
    # of the reference Encoder); padded char positions update (h, c).

    # ---- Decoder: greedy LSTM-cell decoding, fully unrolled over L steps.
    #      dec_tab = lab_emb @ W_ih + b pre-folded (prev is one-hot), so each
    #      step = prev @ dec_tab + h @ W_hh, gates, h @ W_out, argmax feedback.
    dec_tab = dec_tab_ref[...]                                    # (V, 4H)
    dec_whh = dec_whh_ref[...]                                    # (H, 4H)
    w_out = wout_ref[...]                                         # (H, V)
    b_out = jnp.broadcast_to(bout_ref[...], (TN, V))              # hoisted
    iota = lax.broadcasted_iota(jnp.int32, (TN, V), 1)
    prev = (iota == 0).astype(f32)                                # SOS one-hot

    for t in range(L):
        gates = (jnp.dot(prev, dec_tab, preferred_element_type=f32)
                 + jnp.dot(h, dec_whh, preferred_element_type=f32))
        h, c = gates_to_state(gates, c)
        logits = jnp.dot(h, w_out, preferred_element_type=f32) + b_out
        logits_ref[t] = logits            # static row store; softmax deferred
        # TODO(synk): at larger label vocabs, accumulate logits and emit one
        # lane-dense slab store instead of per-step V<128 partial stores.

        # greedy argmax feedback (softmax is order-preserving, so argmax of
        # logits == argmax of probabilities computed in the wrapper)
        m = jnp.max(logits, axis=-1, keepdims=True)
        pred = jnp.min(jnp.where(logits == m, iota, V), axis=-1, keepdims=True)
        prev = (iota == pred).astype(f32)


def seq2seq_forward(enc_x_pre, enc_w_hh, dec_in_table, dec_w_hh, w_out, b_out,
                    max_label_len, tile_n=256):
    Twl, N, G = enc_x_pre.shape
    H, Vl = w_out.shape
    L = int(max_label_len)

    # N-tile: rows are independent through encoder + decoder.
    tn = min(int(tile_n), N)
    if N % tn != 0 or (tn % 8 != 0 and tn != N):
        tn = N                                   # fall back to a single block
    grid = (N // tn,)

    def const_spec(arr):                          # weights stay VMEM-resident
        return pl.BlockSpec(arr.shape, lambda n: (0, 0))

    return pl.pallas_call(
        _seq2seq_kernel,
        out_shape=jax.ShapeDtypeStruct((L, N, Vl), jnp.float32),
        grid_spec=pltpu.PrefetchScalarGridSpec(
            num_scalar_prefetch=0,
            grid=grid,
            in_specs=[
                pl.BlockSpec((Twl, tn, G), lambda n: (0, n, 0)),
                const_spec(enc_w_hh),
                const_spec(dec_in_table),
                const_spec(dec_w_hh),
                const_spec(w_out),
                const_spec(b_out),
            ],
            out_specs=pl.BlockSpec((L, tn, Vl), lambda n: (0, n, 0)),
        ),
        compiler_params=pltpu.CompilerParams(
            dimension_semantics=("parallel",),       # v7x: shard N over 2 TCs
            vmem_limit_bytes=32 * 1024 * 1024,
        ),
    )(enc_x_pre, enc_w_hh, dec_in_table, dec_w_hh, w_out, b_out)


# --------------------------------------------------------------------------
# Model wrapper (parameters + embedding-gather / input-projection glue)
# --------------------------------------------------------------------------
class PallasModel:
    def __init__(self, conf, key):
        self.conf = conf
        Vw, Vc, Vl = conf["vocab_words"], conf["vocab_chars"], conf["vocab_labels"]
        Ew, Ec, El = conf["word_emb"], conf["char_emb"], conf["label_emb"]
        H = conf["hidden"]
        G = 4 * H                                  # gate-fused lane axis (i|f|g|o)
        ks = jax.random.split(key, 12)
        s = 0.1
        self.word_emb = s * jax.random.normal(ks[0], (Vw, Ew), jnp.float32)
        self.char_emb = s * jax.random.normal(ks[1], (Vc, Ec), jnp.float32)
        self.lab_emb = s * jax.random.normal(ks[2], (Vl, El), jnp.float32)
        # encoder char-LSTM, gate-fused; char/word input halves kept separate
        # so the word half can be hoisted with the bias into the input slab.
        self.enc_w_ih_c = s * jax.random.normal(ks[3], (Ec, G), jnp.float32)
        self.enc_w_ih_w = s * jax.random.normal(ks[4], (Ew, G), jnp.float32)
        self.enc_w_hh = s * jax.random.normal(ks[5], (H, G), jnp.float32)
        self.enc_b = s * jax.random.normal(ks[6], (1, G), jnp.float32)  # b_ih+b_hh
        # decoder LSTM cell + output projection, gate-fused
        self.dec_w_ih = s * jax.random.normal(ks[7], (El, G), jnp.float32)
        self.dec_w_hh = s * jax.random.normal(ks[8], (H, G), jnp.float32)
        self.dec_b = s * jax.random.normal(ks[9], (1, G), jnp.float32)
        self.w_out = s * jax.random.normal(ks[10], (H, Vl), jnp.float32)
        self.b_out = jnp.zeros((1, Vl), jnp.float32)
        # Pre-folded decoder input table (weights-only): prev is one-hot, so
        # prev @ (lab_emb @ W_ih + b) == emb(prev) @ W_ih + b.
        self.dec_in_table = self.lab_emb @ self.dec_w_ih + self.dec_b   # (Vl, 4H)
        self.tile_n = int(conf.get("tile_n", 256))
        # TODO(synk): bf16 weight/operand cast for the MXU (keep f32 gate math)
        # is a further ~2x matmul/DMA win on v5e/v6e/v7x if accuracy allows.

    @functools.partial(jax.jit, static_argnums=0)
    def __call__(self, words_batch, chars_batch, labels_batch=None, oov=None):
        # TODO(synk): teacher-forcing path (labels_batch) and OOV-embedding
        # injection are not implemented in-kernel; inference (greedy) mode only.
        seq, batch = words_batch.shape
        N, Twl = chars_batch.shape          # N = batch * seq (batch-major words)
        Ew = self.word_emb.shape[1]

        # Embedding gathers stay in plain JAX.
        we = self.word_emb[words_batch]                     # (seq, batch, Ew)
        we = jnp.transpose(we, (1, 0, 2)).reshape(N, Ew)    # batch-major words
        ce = self.char_emb[chars_batch]                     # (N, Twl, Ec)
        ce = jnp.transpose(ce, (1, 0, 2))                   # (Twl, N, Ec)

        # Lane-dense encoder input pre-activation slab: ALL input-to-hidden
        # work (char + word + bias) off the serial chain, one batched matmul.
        enc_x_pre = (jnp.einsum('tne,eg->tng', ce, self.enc_w_ih_c)
                     + (we @ self.enc_w_ih_w + self.enc_b)[None, :, :])  # (Twl,N,4H)

        logits = seq2seq_forward(
            enc_x_pre, self.enc_w_hh, self.dec_in_table, self.dec_w_hh,
            self.w_out, self.b_out, self.conf["max_label_length"],
            tile_n=self.tile_n)

        # Exact softmax (batched, outside the serial decode loop) + greedy
        # predictions (identical to the in-kernel feedback argmax).
        probabilities = jax.nn.softmax(logits, axis=-1)
        predictions = jnp.argmax(logits, axis=-1).astype(jnp.int32)
        return predictions, probabilities                    # (L, N), (L, N, V)


# --------------------------------------------------------------------------
if __name__ == "__main__":
    conf = dict(vocab_words=50, vocab_chars=30, vocab_labels=16,
                word_emb=16, char_emb=8, label_emb=16,
                hidden=32, max_label_length=6, tile_n=16)
    batch, seq, max_word_len = 4, 8, 10

    key = jax.random.PRNGKey(0)
    k_model, k_w, k_c = jax.random.split(key, 3)

    model = PallasModel(conf, k_model)

    words_batch = jax.random.randint(k_w, (seq, batch), 0, conf["vocab_words"],
                                     dtype=jnp.int32)
    chars_batch = jax.random.randint(k_c, (batch * seq, max_word_len), 0,
                                     conf["vocab_chars"], dtype=jnp.int32)

    predictions, probabilities = model(words_batch, chars_batch)
    jax.block_until_ready((predictions, probabilities))

    N = batch * seq
    assert predictions.shape == (conf["max_label_length"], N)
    assert probabilities.shape == (conf["max_label_length"], N,
                                   conf["vocab_labels"])
    assert bool(jnp.all(jnp.isfinite(probabilities)))
    assert bool(jnp.allclose(jnp.sum(probabilities, axis=-1), 1.0, atol=1e-5))
    print("KERNEL_OK")
</pallas_src>

<mosaic_0001>
module attributes {stable_mosaic.version = 11 : i64} {
  func.func @_seq2seq_kernel(%arg0: i32, %arg1: memref<10x16x128xf32, #tpu.memory_space<vmem>>, %arg2: memref<32x128xf32, #tpu.memory_space<vmem>>, %arg3: memref<16x128xf32, #tpu.memory_space<vmem>>, %arg4: memref<32x128xf32, #tpu.memory_space<vmem>>, %arg5: memref<32x16xf32, #tpu.memory_space<vmem>>, %arg6: memref<1x16xf32, #tpu.memory_space<vmem>>, %arg7: memref<6x16x16xf32, #tpu.memory_space<vmem>>) attributes {dimension_semantics = [#tpu.dimension_semantics<parallel>], iteration_bounds = array<i64: 2>, scalar_prefetch = 0 : i64, scratch_operands = 0 : i64, tpu.core_type = #tpu.core_type<tc>, window_params = [{transform_indices = @transform_0, window_bounds = array<i64: 10, 16, 128>}, {pipeline_mode = #tpu.pipeline_mode<synchronous>, transform_indices = @transform_1, window_bounds = array<i64: 32, 128>}, {pipeline_mode = #tpu.pipeline_mode<synchronous>, transform_indices = @transform_2, window_bounds = array<i64: 16, 128>}, {pipeline_mode = #tpu.pipeline_mode<synchronous>, transform_indices = @transform_3, window_bounds = array<i64: 32, 128>}, {pipeline_mode = #tpu.pipeline_mode<synchronous>, transform_indices = @transform_4, window_bounds = array<i64: 32, 16>}, {pipeline_mode = #tpu.pipeline_mode<synchronous>, transform_indices = @transform_5, window_bounds = array<i64: 1, 16>}, {transform_indices = @transform_6, window_bounds = array<i64: 6, 16, 16>}]} {
    %c0 = arith.constant 0 : index
    %c0_0 = arith.constant 0 : index
    %0 = vector.load %arg2[%c0, %c0_0] : memref<32x128xf32, #tpu.memory_space<vmem>>, vector<32x128xf32>
    %cst = arith.constant 0.000000e+00 : f32
    %1 = vector.broadcast %cst : f32 to vector<16x32xf32>
    %cst_1 = arith.constant 0.000000e+00 : f32
    %2 = vector.broadcast %cst_1 : f32 to vector<16x32xf32>
    %c0_2 = arith.constant 0 : index
    %c0_3 = arith.constant 0 : index
    %c0_4 = arith.constant 0 : index
    %3 = vector.load %arg1[%c0_2, %c0_3, %c0_4] : memref<10x16x128xf32, #tpu.memory_space<vmem>>, vector<1x16x128xf32>
    %4 = vector.shape_cast %3 : vector<1x16x128xf32> to vector<16x128xf32>
    %cst_5 = arith.constant dense<0.000000e+00> : vector<16x128xf32>
    %5 = tpu.matmul %1, %0, %cst_5 {dimension_numbers = #tpu.dot_dimension_numbers<[1], [0], [0], [1], [0, 0, 1, 1], [], []>} : vector<16x32xf32>, vector<32x128xf32>, vector<16x128xf32> -> vector<16x128xf32>
    %6 = arith.addf %4, %5 : vector<16x128xf32>
    %7 = vector.extract_strided_slice %6 {offsets = [0, 0], sizes = [16, 32], strides = [1, 1]} : vector<16x128xf32> to vector<16x32xf32>
    %8 = arith.negf %7 : vector<16x32xf32>
    %9 = math.exp %8 : vector<16x32xf32>
    %cst_6 = arith.constant 1.000000e+00 : f32
    %10 = vector.broadcast %cst_6 : f32 to vector<16x32xf32>
    %11 = arith.addf %10, %9 : vector<16x32xf32>
    %12 = arith.divf %10, %11 : vector<16x32xf32>
    %13 = vector.extract_strided_slice %6 {offsets = [0, 32], sizes = [16, 32], strides = [1, 1]} : vector<16x128xf32> to vector<16x32xf32>
    %14 = arith.negf %13 : vector<16x32xf32>
    %15 = math.exp %14 : vector<16x32xf32>
    %cst_7 = arith.constant 1.000000e+00 : f32
    %16 = vector.broadcast %cst_7 : f32 to vector<16x32xf32>
    %17 = arith.addf %16, %15 : vector<16x32xf32>
    %18 = arith.divf %16, %17 : vector<16x32xf32>
    %19 = vector.extract_strided_slice %6 {offsets = [0, 64], sizes = [16, 32], strides = [1, 1]} : vector<16x128xf32> to vector<16x32xf32>
    %20 = math.tanh %19 : vector<16x32xf32>
    %21 = vector.extract_strided_slice %6 {offsets = [0, 96], sizes = [16, 32], strides = [1, 1]} : vector<16x128xf32> to vector<16x32xf32>
    %22 = arith.negf %21 : vector<16x32xf32>
    %23 = math.exp %22 : vector<16x32xf32>
    %cst_8 = arith.constant 1.000000e+00 : f32
    %24 = vector.broadcast %cst_8 : f32 to vector<16x32xf32>
    %25 = arith.addf %24, %23 : vector<16x32xf32>
    %26 = arith.divf %24, %25 : vector<16x32xf32>
    %27 = arith.mulf %18, %2 : vector<16x32xf32>
    %28 = arith.mulf %12, %20 : vector<16x32xf32>
    %29 = arith.addf %27, %28 : vector<16x32xf32>
    %30 = math.tanh %29 : vector<16x32xf32>
    %31 = arith.mulf %26, %30 : vector<16x32xf32>
    %c1 = arith.constant 1 : index
    %c0_9 = arith.constant 0 : index
    %c0_10 = arith.constant 0 : index
    %32 = vector.load %arg1[%c1, %c0_9, %c0_10] : memref<10x16x128xf32, #tpu.memory_space<vmem>>, vector<1x16x128xf32>
    %33 = vector.shape_cast %32 : vector<1x16x128xf32> to vector<16x128xf32>
    %cst_11 = arith.constant dense<0.000000e+00> : vector<16x128xf32>
    %34 = tpu.matmul %31, %0, %cst_11 {dimension_numbers = #tpu.dot_dimension_numbers<[1], [0], [0], [1], [0, 0, 1, 1], [], []>} : vector<16x32xf32>, vector<32x128xf32>, vector<16x128xf32> -> vector<16x128xf32>
    %35 = arith.addf %33, %34 : vector<16x128xf32>
    %36 = vector.extract_strided_slice %35 {offsets = [0, 0], sizes = [16, 32], strides = [1, 1]} : vector<16x128xf32> to vector<16x32xf32>
    %37 = arith.negf %36 : vector<16x32xf32>
    %38 = math.exp %37 : vector<16x32xf32>
    %cst_12 = arith.constant 1.000000e+00 : f32
    %39 = vector.broadcast %cst_12 : f32 to vector<16x32xf32>
    %40 = arith.addf %39, %38 : vector<16x32xf32>
    %41 = arith.divf %39, %40 : vector<16x32xf32>
    %42 = vector.extract_strided_slice %35 {offsets = [0, 32], sizes = [16, 32], strides = [1, 1]} : vector<16x128xf32> to vector<16x32xf32>
    %43 = arith.negf %42 : vector<16x32xf32>
    %44 = math.exp %43 : vector<16x32xf32>
    %cst_13 = arith.constant 1.000000e+00 : f32
    %45 = vector.broadcast %cst_13 : f32 to vector<16x32xf32>
    %46 = arith.addf %45, %44 : vector<16x32xf32>
    %47 = arith.divf %45, %46 : vector<16x32xf32>
    %48 = vector.extract_strided_slice %35 {offsets = [0, 64], sizes = [16, 32], strides = [1, 1]} : vector<16x128xf32> to vector<16x32xf32>
    %49 = math.tanh %48 : vector<16x32xf32>
    %50 = vector.extract_strided_slice %35 {offsets = [0, 96], sizes = [16, 32], strides = [1, 1]} : vector<16x128xf32> to vector<16x32xf32>
    %51 = arith.negf %50 : vector<16x32xf32>
    %52 = math.exp %51 : vector<16x32xf32>
    %cst_14 = arith.constant 1.000000e+00 : f32
    %53 = vector.broadcast %cst_14 : f32 to vector<16x32xf32>
    %54 = arith.addf %53, %52 : vector<16x32xf32>
    %55 = arith.divf %53, %54 : vector<16x32xf32>
    %56 = arith.mulf %47, %29 : vector<16x32xf32>
    %57 = arith.mulf %41, %49 : vector<16x32xf32>
    %58 = arith.addf %56, %57 : vector<16x32xf32>
    %59 = math.tanh %58 : vector<16x32xf32>
    %60 = arith.mulf %55, %59 : vector<16x32xf32>
    %c2 = arith.constant 2 : index
    %c0_15 = arith.constant 0 : index
    %c0_16 = arith.constant 0 : index
    %61 = vector.load %arg1[%c2, %c0_15, %c0_16] : memref<10x16x128xf32, #tpu.memory_space<vmem>>, vector<1x16x128xf32>
    %62 = vector.shape_cast %61 : vector<1x16x128xf32> to vector<16x128xf32>
    %cst_17 = arith.constant dense<0.000000e+00> : vector<16x128xf32>
    %63 = tpu.matmul %60, %0, %cst_17 {dimension_numbers = #tpu.dot_dimension_numbers<[1], [0], [0], [1], [0, 0, 1, 1], [], []>} : vector<16x32xf32>, vector<32x128xf32>, vector<16x128xf32> -> vector<16x128xf32>
    %64 = arith.addf %62, %63 : vector<16x128xf32>
    %65 = vector.extract_strided_slice %64 {offsets = [0, 0], sizes = [16, 32], strides = [1, 1]} : vector<16x128xf32> to vector<16x32xf32>
    %66 = arith.negf %65 : vector<16x32xf32>
    %67 = math.exp %66 : vector<16x32xf32>
    %cst_18 = arith.constant 1.000000e+00 : f32
    %68 = vector.broadcast %cst_18 : f32 to vector<16x32xf32>
    %69 = arith.addf %68, %67 : vector<16x32xf32>
    %70 = arith.divf %68, %69 : vector<16x32xf32>
    %71 = vector.extract_strided_slice %64 {offsets = [0, 32], sizes = [16, 32], strides = [1, 1]} : vector<16x128xf32> to vector<16x32xf32>
    %72 = arith.negf %71 : vector<16x32xf32>
    %73 = math.exp %72 : vector<16x32xf32>
    %cst_19 = arith.constant 1.000000e+00 : f32
    %74 = vector.broadcast %cst_19 : f32 to vector<16x32xf32>
    %75 = arith.addf %74, %73 : vector<16x32xf32>
    %76 = arith.divf %74, %75 : vector<16x32xf32>
    %77 = vector.extract_strided_slice %64 {offsets = [0, 64], sizes = [16, 32], strides = [1, 1]} : vector<16x128xf32> to vector<16x32xf32>
    %78 = math.tanh %77 : vector<16x32xf32>
    %79 = vector.extract_strided_slice %64 {offsets = [0, 96], sizes = [16, 32], strides = [1, 1]} : vector<16x128xf32> to vector<16x32xf32>
    %80 = arith.negf %79 : vector<16x32xf32>
    %81 = math.exp %80 : vector<16x32xf32>
    %cst_20 = arith.constant 1.000000e+00 : f32
    %82 = vector.broadcast %cst_20 : f32 to vector<16x32xf32>
    %83 = arith.addf %82, %81 : vector<16x32xf32>
    %84 = arith.divf %82, %83 : vector<16x32xf32>
    %85 = arith.mulf %76, %58 : vector<16x32xf32>
    %86 = arith.mulf %70, %78 : vector<16x32xf32>
    %87 = arith.addf %85, %86 : vector<16x32xf32>
    %88 = math.tanh %87 : vector<16x32xf32>
    %89 = arith.mulf %84, %88 : vector<16x32xf32>
    %c3 = arith.constant 3 : index
    %c0_21 = arith.constant 0 : index
    %c0_22 = arith.constant 0 : index
    %90 = vector.load %arg1[%c3, %c0_21, %c0_22] : memref<10x16x128xf32, #tpu.memory_space<vmem>>, vector<1x16x128xf32>
    %91 = vector.shape_cast %90 : vector<1x16x128xf32> to vector<16x128xf32>
    %cst_23 = arith.constant dense<0.000000e+00> : vector<16x128xf32>
    %92 = tpu.matmul %89, %0, %cst_23 {dimension_numbers = #tpu.dot_dimension_numbers<[1], [0], [0], [1], [0, 0, 1, 1], [], []>} : vector<16x32xf32>, vector<32x128xf32>, vector<16x128xf32> -> vector<16x128xf32>
    %93 = arith.addf %91, %92 : vector<16x128xf32>
    %94 = vector.extract_strided_slice %93 {offsets = [0, 0], sizes = [16, 32], strides = [1, 1]} : vector<16x128xf32> to vector<16x32xf32>
    %95 = arith.negf %94 : vector<16x32xf32>
    %96 = math.exp %95 : vector<16x32xf32>
    %cst_24 = arith.constant 1.000000e+00 : f32
    %97 = vector.broadcast %cst_24 : f32 to vector<16x32xf32>
    %98 = arith.addf %97, %96 : vector<16x32xf32>
    %99 = arith.divf %97, %98 : vector<16x32xf32>
    %100 = vector.extract_strided_slice %93 {offsets = [0, 32], sizes = [16, 32], strides = [1, 1]} : vector<16x128xf32> to vector<16x32xf32>
    %101 = arith.negf %100 : vector<16x32xf32>
    %102 = math.exp %101 : vector<16x32xf32>
    %cst_25 = arith.constant 1.000000e+00 : f32
    %103 = vector.broadcast %cst_25 : f32 to vector<16x32xf32>
    %104 = arith.addf %103, %102 : vector<16x32xf32>
    %105 = arith.divf %103, %104 : vector<16x32xf32>
    %106 = vector.extract_strided_slice %93 {offsets = [0, 64], sizes = [16, 32], strides = [1, 1]} : vector<16x128xf32> to vector<16x32xf32>
    %107 = math.tanh %106 : vector<16x32xf32>
    %108 = vector.extract_strided_slice %93 {offsets = [0, 96], sizes = [16, 32], strides = [1, 1]} : vector<16x128xf32> to vector<16x32xf32>
    %109 = arith.negf %108 : vector<16x32xf32>
    %110 = math.exp %109 : vector<16x32xf32>
    %cst_26 = arith.constant 1.000000e+00 : f32
    %111 = vector.broadcast %cst_26 : f32 to vector<16x32xf32>
    %112 = arith.addf %111, %110 : vector<16x32xf32>
    %113 = arith.divf %111, %112 : vector<16x32xf32>
    %114 = arith.mulf %105, %87 : vector<16x32xf32>
    %115 = arith.mulf %99, %107 : vector<16x32xf32>
    %116 = arith.addf %114, %115 : vector<16x32xf32>
    %117 = math.tanh %116 : vector<16x32xf32>
    %118 = arith.mulf %113, %117 : vector<16x32xf32>
    %c4 = arith.constant 4 : index
    %c0_27 = arith.constant 0 : index
    %c0_28 = arith.constant 0 : index
    %119 = vector.load %arg1[%c4, %c0_27, %c0_28] : memref<10x16x128xf32, #tpu.memory_space<vmem>>, vector<1x16x128xf32>
    %120 = vector.shape_cast %119 : vector<1x16x128xf32> to vector<16x128xf32>
    %cst_29 = arith.constant dense<0.000000e+00> : vector<16x128xf32>
    %121 = tpu.matmul %118, %0, %cst_29 {dimension_numbers = #tpu.dot_dimension_numbers<[1], [0], [0], [1], [0, 0, 1, 1], [], []>} : vector<16x32xf32>, vector<32x128xf32>, vector<16x128xf32> -> vector<16x128xf32>
    %122 = arith.addf %120, %121 : vector<16x128xf32>
    %123 = vector.extract_strided_slice %122 {offsets = [0, 0], sizes = [16, 32], strides = [1, 1]} : vector<16x128xf32> to vector<16x32xf32>
    %124 = arith.negf %123 : vector<16x32xf32>
    %125 = math.exp %124 : vector<16x32xf32>
    %cst_30 = arith.constant 1.000000e+00 : f32
    %126 = vector.broadcast %cst_30 : f32 to vector<16x32xf32>
    %127 = arith.addf %126, %125 : vector<16x32xf32>
    %128 = arith.divf %126, %127 : vector<16x32xf32>
    %129 = vector.extract_strided_slice %122 {offsets = [0, 32], sizes = [16, 32], strides = [1, 1]} : vector<16x128xf32> to vector<16x32xf32>
    %130 = arith.negf %129 : vector<16x32xf32>
    %131 = math.exp %130 : vector<16x32xf32>
    %cst_31 = arith.constant 1.000000e+00 : f32
    %132 = vector.broadcast %cst_31 : f32 to vector<16x32xf32>
    %133 = arith.addf %132, %131 : vector<16x32xf32>
    %134 = arith.divf %132, %133 : vector<16x32xf32>
    %135 = vector.extract_strided_slice %122 {offsets = [0, 64], sizes = [16, 32], strides = [1, 1]} : vector<16x128xf32> to vector<16x32xf32>
    %136 = math.tanh %135 : vector<16x32xf32>
    %137 = vector.extract_strided_slice %122 {offsets = [0, 96], sizes = [16, 32], strides = [1, 1]} : vector<16x128xf32> to vector<16x32xf32>
    %138 = arith.negf %137 : vector<16x32xf32>
    %139 = math.exp %138 : vector<16x32xf32>
    %cst_32 = arith.constant 1.000000e+00 : f32
    %140 = vector.broadcast %cst_32 : f32 to vector<16x32xf32>
    %141 = arith.addf %140, %139 : vector<16x32xf32>
    %142 = arith.divf %140, %141 : vector<16x32xf32>
    %143 = arith.mulf %134, %116 : vector<16x32xf32>
    %144 = arith.mulf %128, %136 : vector<16x32xf32>
    %145 = arith.addf %143, %144 : vector<16x32xf32>
    %146 = math.tanh %145 : vector<16x32xf32>
    %147 = arith.mulf %142, %146 : vector<16x32xf32>
    %c5 = arith.constant 5 : index
    %c0_33 = arith.constant 0 : index
    %c0_34 = arith.constant 0 : index
    %148 = vector.load %arg1[%c5, %c0_33, %c0_34] : memref<10x16x128xf32, #tpu.memory_space<vmem>>, vector<1x16x128xf32>
    %149 = vector.shape_cast %148 : vector<1x16x128xf32> to vector<16x128xf32>
    %cst_35 = arith.constant dense<0.000000e+00> : vector<16x128xf32>
    %150 = tpu.matmul %147, %0, %cst_35 {dimension_numbers = #tpu.dot_dimension_numbers<[1], [0], [0], [1], [0, 0, 1, 1], [], []>} : vector<16x32xf32>, vector<32x128xf32>, vector<16x128xf32> -> vector<16x128xf32>
    %151 = arith.addf %149, %150 : vector<16x128xf32>
    %152 = vector.extract_strided_slice %151 {offsets = [0, 0], sizes = [16, 32], strides = [1, 1]} : vector<16x128xf32> to vector<16x32xf32>
    %153 = arith.negf %152 : vector<16x32xf32>
    %154 = math.exp %153 : vector<16x32xf32>
    %cst_36 = arith.constant 1.000000e+00 : f32
    %155 = vector.broadcast %cst_36 : f32 to vector<16x32xf32>
    %156 = arith.addf %155, %154 : vector<16x32xf32>
    %157 = arith.divf %155, %156 : vector<16x32xf32>
    %158 = vector.extract_strided_slice %151 {offsets = [0, 32], sizes = [16, 32], strides = [1, 1]} : vector<16x128xf32> to vector<16x32xf32>
    %159 = arith.negf %158 : vector<16x32xf32>
    %160 = math.exp %159 : vector<16x32xf32>
    %cst_37 = arith.constant 1.000000e+00 : f32
    %161 = vector.broadcast %cst_37 : f32 to vector<16x32xf32>
    %162 = arith.addf %161, %160 : vector<16x32xf32>
    %163 = arith.divf %161, %162 : vector<16x32xf32>
    %164 = vector.extract_strided_slice %151 {offsets = [0, 64], sizes = [16, 32], strides = [1, 1]} : vector<16x128xf32> to vector<16x32xf32>
    %165 = math.tanh %164 : vector<16x32xf32>
    %166 = vector.extract_strided_slice %151 {offsets = [0, 96], sizes = [16, 32], strides = [1, 1]} : vector<16x128xf32> to vector<16x32xf32>
    %167 = arith.negf %166 : vector<16x32xf32>
    %168 = math.exp %167 : vector<16x32xf32>
    %cst_38 = arith.constant 1.000000e+00 : f32
    %169 = vector.broadcast %cst_38 : f32 to vector<16x32xf32>
    %170 = arith.addf %169, %168 : vector<16x32xf32>
    %171 = arith.divf %169, %170 : vector<16x32xf32>
    %172 = arith.mulf %163, %145 : vector<16x32xf32>
    %173 = arith.mulf %157, %165 : vector<16x32xf32>
    %174 = arith.addf %172, %173 : vector<16x32xf32>
    %175 = math.tanh %174 : vector<16x32xf32>
    %176 = arith.mulf %171, %175 : vector<16x32xf32>
    %c6 = arith.constant 6 : index
    %c0_39 = arith.constant 0 : index
    %c0_40 = arith.constant 0 : index
    %177 = vector.load %arg1[%c6, %c0_39, %c0_40] : memref<10x16x128xf32, #tpu.memory_space<vmem>>, vector<1x16x128xf32>
    %178 = vector.shape_cast %177 : vector<1x16x128xf32> to vector<16x128xf32>
    %cst_41 = arith.constant dense<0.000000e+00> : vector<16x128xf32>
    %179 = tpu.matmul %176, %0, %cst_41 {dimension_numbers = #tpu.dot_dimension_numbers<[1], [0], [0], [1], [0, 0, 1, 1], [], []>} : vector<16x32xf32>, vector<32x128xf32>, vector<16x128xf32> -> vector<16x128xf32>
    %180 = arith.addf %178, %179 : vector<16x128xf32>
    %181 = vector.extract_strided_slice %180 {offsets = [0, 0], sizes = [16, 32], strides = [1, 1]} : vector<16x128xf32> to vector<16x32xf32>
    %182 = arith.negf %181 : vector<16x32xf32>
    %183 = math.exp %182 : vector<16x32xf32>
    %cst_42 = arith.constant 1.000000e+00 : f32
    %184 = vector.broadcast %cst_42 : f32 to vector<16x32xf32>
    %185 = arith.addf %184, %183 : vector<16x32xf32>
    %186 = arith.divf %184, %185 : vector<16x32xf32>
    %187 = vector.extract_strided_slice %180 {offsets = [0, 32], sizes = [16, 32], strides = [1, 1]} : vector<16x128xf32> to vector<16x32xf32>
    %188 = arith.negf %187 : vector<16x32xf32>
    %189 = math.exp %188 : vector<16x32xf32>
    %cst_43 = arith.constant 1.000000e+00 : f32
    %190 = vector.broadcast %cst_43 : f32 to vector<16x32xf32>
    %191 = arith.addf %190, %189 : vector<16x32xf32>
    %192 = arith.divf %190, %191 : vector<16x32xf32>
    %193 = vector.extract_strided_slice %180 {offsets = [0, 64], sizes = [16, 32], strides = [1, 1]} : vector<16x128xf32> to vector<16x32xf32>
    %194 = math.tanh %193 : vector<16x32xf32>
    %195 = vector.extract_strided_slice %180 {offsets = [0, 96], sizes = [16, 32], strides = [1, 1]} : vector<16x128xf32> to vector<16x32xf32>
    %196 = arith.negf %195 : vector<16x32xf32>
    %197 = math.exp %196 : vector<16x32xf32>
    %cst_44 = arith.constant 1.000000e+00 : f32
    %198 = vector.broadcast %cst_44 : f32 to vector<16x32xf32>
    %199 = arith.addf %198, %197 : vector<16x32xf32>
    %200 = arith.divf %198, %199 : vector<16x32xf32>
    %201 = arith.mulf %192, %174 : vector<16x32xf32>
    %202 = arith.mulf %186, %194 : vector<16x32xf32>
    %203 = arith.addf %201, %202 : vector<16x32xf32>
    %204 = math.tanh %203 : vector<16x32xf32>
    %205 = arith.mulf %200, %204 : vector<16x32xf32>
    %c7 = arith.constant 7 : index
    %c0_45 = arith.constant 0 : index
    %c0_46 = arith.constant 0 : index
    %206 = vector.load %arg1[%c7, %c0_45, %c0_46] : memref<10x16x128xf32, #tpu.memory_space<vmem>>, vector<1x16x128xf32>
    %207 = vector.shape_cast %206 : vector<1x16x128xf32> to vector<16x128xf32>
    %cst_47 = arith.constant dense<0.000000e+00> : vector<16x128xf32>
    %208 = tpu.matmul %205, %0, %cst_47 {dimension_numbers = #tpu.dot_dimension_numbers<[1], [0], [0], [1], [0, 0, 1, 1], [], []>} : vector<16x32xf32>, vector<32x128xf32>, vector<16x128xf32> -> vector<16x128xf32>
    %209 = arith.addf %207, %208 : vector<16x128xf32>
    %210 = vector.extract_strided_slice %209 {offsets = [0, 0], sizes = [16, 32], strides = [1, 1]} : vector<16x128xf32> to vector<16x32xf32>
    %211 = arith.negf %210 : vector<16x32xf32>
    %212 = math.exp %211 : vector<16x32xf32>
    %cst_48 = arith.constant 1.000000e+00 : f32
    %213 = vector.broadcast %cst_48 : f32 to vector<16x32xf32>
    %214 = arith.addf %213, %212 : vector<16x32xf32>
    %215 = arith.divf %213, %214 : vector<16x32xf32>
    %216 = vector.extract_strided_slice %209 {offsets = [0, 32], sizes = [16, 32], strides = [1, 1]} : vector<16x128xf32> to vector<16x32xf32>
    %217 = arith.negf %216 : vector<16x32xf32>
    %218 = math.exp %217 : vector<16x32xf32>
    %cst_49 = arith.constant 1.000000e+00 : f32
    %219 = vector.broadcast %cst_49 : f32 to vector<16x32xf32>
    %220 = arith.addf %219, %218 : vector<16x32xf32>
    %221 = arith.divf %219, %220 : vector<16x32xf32>
    %222 = vector.extract_strided_slice %209 {offsets = [0, 64], sizes = [16, 32], strides = [1, 1]} : vector<16x128xf32> to vector<16x32xf32>
    %223 = math.tanh %222 : vector<16x32xf32>
    %224 = vector.extract_strided_slice %209 {offsets = [0, 96], sizes = [16, 32], strides = [1, 1]} : vector<16x128xf32> to vector<16x32xf32>
    %225 = arith.negf %224 : vector<16x32xf32>
    %226 = math.exp %225 : vector<16x32xf32>
    %cst_50 = arith.constant 1.000000e+00 : f32
    %227 = vector.broadcast %cst_50 : f32 to vector<16x32xf32>
    %228 = arith.addf %227, %226 : vector<16x32xf32>
    %229 = arith.divf %227, %228 : vector<16x32xf32>
    %230 = arith.mulf %221, %203 : vector<16x32xf32>
    %231 = arith.mulf %215, %223 : vector<16x32xf32>
    %232 = arith.addf %230, %231 : vector<16x32xf32>
    %233 = math.tanh %232 : vector<16x32xf32>
    %234 = arith.mulf %229, %233 : vector<16x32xf32>
    %c8 = arith.constant 8 : index
    %c0_51 = arith.constant 0 : index
    %c0_52 = arith.constant 0 : index
    %235 = vector.load %arg1[%c8, %c0_51, %c0_52] : memref<10x16x128xf32, #tpu.memory_space<vmem>>, vector<1x16x128xf32>
    %236 = vector.shape_cast %235 : vector<1x16x128xf32> to vector<16x128xf32>
    %cst_53 = arith.constant dense<0.000000e+00> : vector<16x128xf32>
    %237 = tpu.matmul %234, %0, %cst_53 {dimension_numbers = #tpu.dot_dimension_numbers<[1], [0], [0], [1], [0, 0, 1, 1], [], []>} : vector<16x32xf32>, vector<32x128xf32>, vector<16x128xf32> -> vector<16x128xf32>
    %238 = arith.addf %236, %237 : vector<16x128xf32>
    %239 = vector.extract_strided_slice %238 {offsets = [0, 0], sizes = [16, 32], strides = [1, 1]} : vector<16x128xf32> to vector<16x32xf32>
    %240 = arith.negf %239 : vector<16x32xf32>
    %241 = math.exp %240 : vector<16x32xf32>
    %cst_54 = arith.constant 1.000000e+00 : f32
    %242 = vector.broadcast %cst_54 : f32 to vector<16x32xf32>
    %243 = arith.addf %242, %241 : vector<16x32xf32>
    %244 = arith.divf %242, %243 : vector<16x32xf32>
    %245 = vector.extract_strided_slice %238 {offsets = [0, 32], sizes = [16, 32], strides = [1, 1]} : vector<16x128xf32> to vector<16x32xf32>
    %246 = arith.negf %245 : vector<16x32xf32>
    %247 = math.exp %246 : vector<16x32xf32>
    %cst_55 = arith.constant 1.000000e+00 : f32
    %248 = vector.broadcast %cst_55 : f32 to vector<16x32xf32>
    %249 = arith.addf %248, %247 : vector<16x32xf32>
    %250 = arith.divf %248, %249 : vector<16x32xf32>
    %251 = vector.extract_strided_slice %238 {offsets = [0, 64], sizes = [16, 32], strides = [1, 1]} : vector<16x128xf32> to vector<16x32xf32>
    %252 = math.tanh %251 : vector<16x32xf32>
    %253 = vector.extract_strided_slice %238 {offsets = [0, 96], sizes = [16, 32], strides = [1, 1]} : vector<16x128xf32> to vector<16x32xf32>
    %254 = arith.negf %253 : vector<16x32xf32>
    %255 = math.exp %254 : vector<16x32xf32>
    %cst_56 = arith.constant 1.000000e+00 : f32
    %256 = vector.broadcast %cst_56 : f32 to vector<16x32xf32>
    %257 = arith.addf %256, %255 : vector<16x32xf32>
    %258 = arith.divf %256, %257 : vector<16x32xf32>
    %259 = arith.mulf %250, %232 : vector<16x32xf32>
    %260 = arith.mulf %244, %252 : vector<16x32xf32>
    %261 = arith.addf %259, %260 : vector<16x32xf32>
    %262 = math.tanh %261 : vector<16x32xf32>
    %263 = arith.mulf %258, %262 : vector<16x32xf32>
    %c9 = arith.constant 9 : index
    %c0_57 = arith.constant 0 : index
    %c0_58 = arith.constant 0 : index
    %264 = vector.load %arg1[%c9, %c0_57, %c0_58] : memref<10x16x128xf32, #tpu.memory_space<vmem>>, vector<1x16x128xf32>
    %265 = vector.shape_cast %264 : vector<1x16x128xf32> to vector<16x128xf32>
    %cst_59 = arith.constant dense<0.000000e+00> : vector<16x128xf32>
    %266 = tpu.matmul %263, %0, %cst_59 {dimension_numbers = #tpu.dot_dimension_numbers<[1], [0], [0], [1], [0, 0, 1, 1], [], []>} : vector<16x32xf32>, vector<32x128xf32>, vector<16x128xf32> -> vector<16x128xf32>
    %267 = arith.addf %265, %266 : vector<16x128xf32>
    %268 = vector.extract_strided_slice %267 {offsets = [0, 0], sizes = [16, 32], strides = [1, 1]} : vector<16x128xf32> to vector<16x32xf32>
    %269 = arith.negf %268 : vector<16x32xf32>
    %270 = math.exp %269 : vector<16x32xf32>
    %cst_60 = arith.constant 1.000000e+00 : f32
    %271 = vector.broadcast %cst_60 : f32 to vector<16x32xf32>
    %272 = arith.addf %271, %270 : vector<16x32xf32>
    %273 = arith.divf %271, %272 : vector<16x32xf32>
    %274 = vector.extract_strided_slice %267 {offsets = [0, 32], sizes = [16, 32], strides = [1, 1]} : vector<16x128xf32> to vector<16x32xf32>
    %275 = arith.negf %274 : vector<16x32xf32>
    %276 = math.exp %275 : vector<16x32xf32>
    %cst_61 = arith.constant 1.000000e+00 : f32
    %277 = vector.broadcast %cst_61 : f32 to vector<16x32xf32>
    %278 = arith.addf %277, %276 : vector<16x32xf32>
    %279 = arith.divf %277, %278 : vector<16x32xf32>
    %280 = vector.extract_strided_slice %267 {offsets = [0, 64], sizes = [16, 32], strides = [1, 1]} : vector<16x128xf32> to vector<16x32xf32>
    %281 = math.tanh %280 : vector<16x32xf32>
    %282 = vector.extract_strided_slice %267 {offsets = [0, 96], sizes = [16, 32], strides = [1, 1]} : vector<16x128xf32> to vector<16x32xf32>
    %283 = arith.negf %282 : vector<16x32xf32>
    %284 = math.exp %283 : vector<16x32xf32>
    %cst_62 = arith.constant 1.000000e+00 : f32
    %285 = vector.broadcast %cst_62 : f32 to vector<16x32xf32>
    %286 = arith.addf %285, %284 : vector<16x32xf32>
    %287 = arith.divf %285, %286 : vector<16x32xf32>
    %288 = arith.mulf %279, %261 : vector<16x32xf32>
    %289 = arith.mulf %273, %281 : vector<16x32xf32>
    %290 = arith.addf %288, %289 : vector<16x32xf32>
    %291 = math.tanh %290 : vector<16x32xf32>
    %292 = arith.mulf %287, %291 : vector<16x32xf32>
    %c0_63 = arith.constant 0 : index
    %c0_64 = arith.constant 0 : index
    %293 = vector.load %arg3[%c0_63, %c0_64] : memref<16x128xf32, #tpu.memory_space<vmem>>, vector<16x128xf32>
    %c0_65 = arith.constant 0 : index
    %c0_66 = arith.constant 0 : index
    %294 = vector.load %arg4[%c0_65, %c0_66] : memref<32x128xf32, #tpu.memory_space<vmem>>, vector<32x128xf32>
    %c0_67 = arith.constant 0 : index
    %c0_68 = arith.constant 0 : index
    %295 = vector.load %arg5[%c0_67, %c0_68] : memref<32x16xf32, #tpu.memory_space<vmem>>, vector<32x16xf32>
    %c0_69 = arith.constant 0 : index
    %c0_70 = arith.constant 0 : index
    %296 = vector.load %arg6[%c0_69, %c0_70] : memref<1x16xf32, #tpu.memory_space<vmem>>, vector<1x16xf32>
    %297 = vector.shape_cast %296 : vector<1x16xf32> to vector<1x16xf32>
    %298 = vector.broadcast %297 : vector<1x16xf32> to vector<16x16xf32>
    %299 = tpu.iota {dimensions = array<i32: 1>} : vector<16x16xi32>
    %c0_i32 = arith.constant 0 : i32
    %300 = vector.broadcast %c0_i32 : i32 to vector<16x16xi32>
    %301 = arith.cmpi eq, %299, %300 : vector<16x16xi32>
    %302 = arith.extui %301 : vector<16x16xi1> to vector<16x16xi32>
    %303 = arith.sitofp %302 : vector<16x16xi32> to vector<16x16xf32>
    %cst_71 = arith.constant dense<0.000000e+00> : vector<16x128xf32>
    %304 = tpu.matmul %303, %293, %cst_71 {dimension_numbers = #tpu.dot_dimension_numbers<[1], [0], [0], [1], [0, 0, 1, 1], [], []>} : vector<16x16xf32>, vector<16x128xf32>, vector<16x128xf32> -> vector<16x128xf32>
    %cst_72 = arith.constant dense<0.000000e+00> : vector<16x128xf32>
    %305 = tpu.matmul %292, %294, %cst_72 {dimension_numbers = #tpu.dot_dimension_numbers<[1], [0], [0], [1], [0, 0, 1, 1], [], []>} : vector<16x32xf32>, vector<32x128xf32>, vector<16x128xf32> -> vector<16x128xf32>
    %306 = arith.addf %304, %305 : vector<16x128xf32>
    %307 = vector.extract_strided_slice %306 {offsets = [0, 0], sizes = [16, 32], strides = [1, 1]} : vector<16x128xf32> to vector<16x32xf32>
    %308 = arith.negf %307 : vector<16x32xf32>
    %309 = math.exp %308 : vector<16x32xf32>
    %cst_73 = arith.constant 1.000000e+00 : f32
    %310 = vector.broadcast %cst_73 : f32 to vector<16x32xf32>
    %311 = arith.addf %310, %309 : vector<16x32xf32>
    %312 = arith.divf %310, %311 : vector<16x32xf32>
    %313 = vector.extract_strided_slice %306 {offsets = [0, 32], sizes = [16, 32], strides = [1, 1]} : vector<16x128xf32> to vector<16x32xf32>
    %314 = arith.negf %313 : vector<16x32xf32>
    %315 = math.exp %314 : vector<16x32xf32>
    %cst_74 = arith.constant 1.000000e+00 : f32
    %316 = vector.broadcast %cst_74 : f32 to vector<16x32xf32>
    %317 = arith.addf %316, %315 : vector<16x32xf32>
    %318 = arith.divf %316, %317 : vector<16x32xf32>
    %319 = vector.extract_strided_slice %306 {offsets = [0, 64], sizes = [16, 32], strides = [1, 1]} : vector<16x128xf32> to vector<16x32xf32>
    %320 = math.tanh %319 : vector<16x32xf32>
    %321 = vector.extract_strided_slice %306 {offsets = [0, 96], sizes = [16, 32], strides = [1, 1]} : vector<16x128xf32> to vector<16x32xf32>
    %322 = arith.negf %321 : vector<16x32xf32>
    %323 = math.exp %322 : vector<16x32xf32>
    %cst_75 = arith.constant 1.000000e+00 : f32
    %324 = vector.broadcast %cst_75 : f32 to vector<16x32xf32>
    %325 = arith.addf %324, %323 : vector<16x32xf32>
    %326 = arith.divf %324, %325 : vector<16x32xf32>
    %327 = arith.mulf %318, %290 : vector<16x32xf32>
    %328 = arith.mulf %312, %320 : vector<16x32xf32>
    %329 = arith.addf %327, %328 : vector<16x32xf32>
    %330 = math.tanh %329 : vector<16x32xf32>
    %331 = arith.mulf %326, %330 : vector<16x32xf32>
    %cst_76 = arith.constant dense<0.000000e+00> : vector<16x16xf32>
    %332 = tpu.matmul %331, %295, %cst_76 {dimension_numbers = #tpu.dot_dimension_numbers<[1], [0], [0], [1], [0, 0, 1, 1], [], []>} : vector<16x32xf32>, vector<32x16xf32>, vector<16x16xf32> -> vector<16x16xf32>
    %333 = arith.addf %332, %298 : vector<16x16xf32>
    %c0_77 = arith.constant 0 : index
    %c0_78 = arith.constant 0 : index
    %c0_79 = arith.constant 0 : index
    %334 = vector.load %arg7[%c0_77, %c0_78, %c0_79] : memref<6x16x16xf32, #tpu.memory_space<vmem>>, vector<1x16x16xf32>
    %335 = vector.shape_cast %334 : vector<1x16x16xf32> to vector<16x16xf32>
    %336 = vector.shape_cast %333 : vector<16x16xf32> to vector<1x16x16xf32>
    tpu.vector_store %arg7[%c0_77, %c0_78, %c0_79], %336 {strides = array<i32>} : memref<6x16x16xf32, #tpu.memory_space<vmem>>, vector<1x16x16xf32>,
    %cst_80 = arith.constant dense<0xFF800000> : vector<16xf32>
    %337 = vector.multi_reduction <maximumf>, %333, %cst_80 [1] : vector<16x16xf32> to vector<16xf32>
    %338 = vector.shape_cast %337 : vector<16xf32> to vector<16x1xf32>
    %339 = vector.broadcast %338 : vector<16x1xf32> to vector<16x16xf32>
    %340 = arith.cmpf oeq, %333, %339 : vector<16x16xf32>
    %c16_i32 = arith.constant 16 : i32
    %341 = vector.broadcast %c16_i32 : i32 to vector<16x16xi32>
    %342 = arith.select %340, %299, %341 : vector<16x16xi1>, vector<16x16xi32>
    %cst_81 = arith.constant dense<2147483647> : vector<16xi32>
    %343 = vector.multi_reduction <minsi>, %342, %cst_81 [1] : vector<16x16xi32> to vector<16xi32>
    %344 = vector.shape_cast %343 : vector<16xi32> to vector<16x1xi32>
    %345 = vector.broadcast %344 : vector<16x1xi32> to vector<16x16xi32>
    %346 = arith.cmpi eq, %299, %345 : vector<16x16xi32>
    %347 = arith.extui %346 : vector<16x16xi1> to vector<16x16xi32>
    %348 = arith.sitofp %347 : vector<16x16xi32> to vector<16x16xf32>
    %cst_82 = arith.constant dense<0.000000e+00> : vector<16x128xf32>
    %349 = tpu.matmul %348, %293, %cst_82 {dimension_numbers = #tpu.dot_dimension_numbers<[1], [0], [0], [1], [0, 0, 1, 1], [], []>} : vector<16x16xf32>, vector<16x128xf32>, vector<16x128xf32> -> vector<16x128xf32>
    %cst_83 = arith.constant dense<0.000000e+00> : vector<16x128xf32>
    %350 = tpu.matmul %331, %294, %cst_83 {dimension_numbers = #tpu.dot_dimension_numbers<[1], [0], [0], [1], [0, 0, 1, 1], [], []>} : vector<16x32xf32>, vector<32x128xf32>, vector<16x128xf32> -> vector<16x128xf32>
    %351 = arith.addf %349, %350 : vector<16x128xf32>
    %352 = vector.extract_strided_slice %351 {offsets = [0, 0], sizes = [16, 32], strides = [1, 1]} : vector<16x128xf32> to vector<16x32xf32>
    %353 = arith.negf %352 : vector<16x32xf32>
    %354 = math.exp %353 : vector<16x32xf32>
    %cst_84 = arith.constant 1.000000e+00 : f32
    %355 = vector.broadcast %cst_84 : f32 to vector<16x32xf32>
    %356 = arith.addf %355, %354 : vector<16x32xf32>
    %357 = arith.divf %355, %356 : vector<16x32xf32>
    %358 = vector.extract_strided_slice %351 {offsets = [0, 32], sizes = [16, 32], strides = [1, 1]} : vector<16x128xf32> to vector<16x32xf32>
    %359 = arith.negf %358 : vector<16x32xf32>
    %360 = math.exp %359 : vector<16x32xf32>
    %cst_85 = arith.constant 1.000000e+00 : f32
    %361 = vector.broadcast %cst_85 : f32 to vector<16x32xf32>
    %362 = arith.addf %361, %360 : vector<16x32xf32>
    %363 = arith.divf %361, %362 : vector<16x32xf32>
    %364 = vector.extract_strided_slice %351 {offsets = [0, 64], sizes = [16, 32], strides = [1, 1]} : vector<16x128xf32> to vector<16x32xf32>
    %365 = math.tanh %364 : vector<16x32xf32>
    %366 = vector.extract_strided_slice %351 {offsets = [0, 96], sizes = [16, 32], strides = [1, 1]} : vector<16x128xf32> to vector<16x32xf32>
    %367 = arith.negf %366 : vector<16x32xf32>
    %368 = math.exp %367 : vector<16x32xf32>
    %cst_86 = arith.constant 1.000000e+00 : f32
    %369 = vector.broadcast %cst_86 : f32 to vector<16x32xf32>
    %370 = arith.addf %369, %368 : vector<16x32xf32>
    %371 = arith.divf %369, %370 : vector<16x32xf32>
    %372 = arith.mulf %363, %329 : vector<16x32xf32>
    %373 = arith.mulf %357, %365 : vector<16x32xf32>
    %374 = arith.addf %372, %373 : vector<16x32xf32>
    %375 = math.tanh %374 : vector<16x32xf32>
    %376 = arith.mulf %371, %375 : vector<16x32xf32>
    %cst_87 = arith.constant dense<0.000000e+00> : vector<16x16xf32>
    %377 = tpu.matmul %376, %295, %cst_87 {dimension_numbers = #tpu.dot_dimension_numbers<[1], [0], [0], [1], [0, 0, 1, 1], [], []>} : vector<16x32xf32>, vector<32x16xf32>, vector<16x16xf32> -> vector<16x16xf32>
    %378 = arith.addf %377, %298 : vector<16x16xf32>
    %c1_88 = arith.constant 1 : index
    %c0_89 = arith.constant 0 : index
    %c0_90 = arith.constant 0 : index
    %379 = vector.load %arg7[%c1_88, %c0_89, %c0_90] : memref<6x16x16xf32, #tpu.memory_space<vmem>>, vector<1x16x16xf32>
    %380 = vector.shape_cast %379 : vector<1x16x16xf32> to vector<16x16xf32>
    %381 = vector.shape_cast %378 : vector<16x16xf32> to vector<1x16x16xf32>
    tpu.vector_store %arg7[%c1_88, %c0_89, %c0_90], %381 {strides = array<i32>} : memref<6x16x16xf32, #tpu.memory_space<vmem>>, vector<1x16x16xf32>,
    %cst_91 = arith.constant dense<0xFF800000> : vector<16xf32>
    %382 = vector.multi_reduction <maximumf>, %378, %cst_91 [1] : vector<16x16xf32> to vector<16xf32>
    %383 = vector.shape_cast %382 : vector<16xf32> to vector<16x1xf32>
    %384 = vector.broadcast %383 : vector<16x1xf32> to vector<16x16xf32>
    %385 = arith.cmpf oeq, %378, %384 : vector<16x16xf32>
    %c16_i32_92 = arith.constant 16 : i32
    %386 = vector.broadcast %c16_i32_92 : i32 to vector<16x16xi32>
    %387 = arith.select %385, %299, %386 : vector<16x16xi1>, vector<16x16xi32>
    %cst_93 = arith.constant dense<2147483647> : vector<16xi32>
    %388 = vector.multi_reduction <minsi>, %387, %cst_93 [1] : vector<16x16xi32> to vector<16xi32>
    %389 = vector.shape_cast %388 : vector<16xi32> to vector<16x1xi32>
    %390 = vector.broadcast %389 : vector<16x1xi32> to vector<16x16xi32>
    %391 = arith.cmpi eq, %299, %390 : vector<16x16xi32>
    %392 = arith.extui %391 : vector<16x16xi1> to vector<16x16xi32>
    %393 = arith.sitofp %392 : vector<16x16xi32> to vector<16x16xf32>
    %cst_94 = arith.constant dense<0.000000e+00> : vector<16x128xf32>
    %394 = tpu.matmul %393, %293, %cst_94 {dimension_numbers = #tpu.dot_dimension_numbers<[1], [0], [0], [1], [0, 0, 1, 1], [], []>} : vector<16x16xf32>, vector<16x128xf32>, vector<16x128xf32> -> vector<16x128xf32>
    %cst_95 = arith.constant dense<0.000000e+00> : vector<16x128xf32>
    %395 = tpu.matmul %376, %294, %cst_95 {dimension_numbers = #tpu.dot_dimension_numbers<[1], [0], [0], [1], [0, 0, 1, 1], [], []>} : vector<16x32xf32>, vector<32x128xf32>, vector<16x128xf32> -> vector<16x128xf32>
    %396 = arith.addf %394, %395 : vector<16x128xf32>
    %397 = vector.extract_strided_slice %396 {offsets = [0, 0], sizes = [16, 32], strides = [1, 1]} : vector<16x128xf32> to vector<16x32xf32>
    %398 = arith.negf %397 : vector<16x32xf32>
    %399 = math.exp %398 : vector<16x32xf32>
    %cst_96 = arith.constant 1.000000e+00 : f32
    %400 = vector.broadcast %cst_96 : f32 to vector<16x32xf32>
    %401 = arith.addf %400, %399 : vector<16x32xf32>
    %402 = arith.divf %400, %401 : vector<16x32xf32>
    %403 = vector.extract_strided_slice %396 {offsets = [0, 32], sizes = [16, 32], strides = [1, 1]} : vector<16x128xf32> to vector<16x32xf32>
    %404 = arith.negf %403 : vector<16x32xf32>
    %405 = math.exp %404 : vector<16x32xf32>
    %cst_97 = arith.constant 1.000000e+00 : f32
    %406 = vector.broadcast %cst_97 : f32 to vector<16x32xf32>
    %407 = arith.addf %406, %405 : vector<16x32xf32>
    %408 = arith.divf %406, %407 : vector<16x32xf32>
    %409 = vector.extract_strided_slice %396 {offsets = [0, 64], sizes = [16, 32], strides = [1, 1]} : vector<16x128xf32> to vector<16x32xf32>
    %410 = math.tanh %409 : vector<16x32xf32>
    %411 = vector.extract_strided_slice %396 {offsets = [0, 96], sizes = [16, 32], strides = [1, 1]} : vector<16x128xf32> to vector<16x32xf32>
    %412 = arith.negf %411 : vector<16x32xf32>
    %413 = math.exp %412 : vector<16x32xf32>
    %cst_98 = arith.constant 1.000000e+00 : f32
    %414 = vector.broadcast %cst_98 : f32 to vector<16x32xf32>
    %415 = arith.addf %414, %413 : vector<16x32xf32>
    %416 = arith.divf %414, %415 : vector<16x32xf32>
    %417 = arith.mulf %408, %374 : vector<16x32xf32>
    %418 = arith.mulf %402, %410 : vector<16x32xf32>
    %419 = arith.addf %417, %418 : vector<16x32xf32>
    %420 = math.tanh %419 : vector<16x32xf32>
    %421 = arith.mulf %416, %420 : vector<16x32xf32>
    %cst_99 = arith.constant dense<0.000000e+00> : vector<16x16xf32>
    %422 = tpu.matmul %421, %295, %cst_99 {dimension_numbers = #tpu.dot_dimension_numbers<[1], [0], [0], [1], [0, 0, 1, 1], [], []>} : vector<16x32xf32>, vector<32x16xf32>, vector<16x16xf32> -> vector<16x16xf32>
    %423 = arith.addf %422, %298 : vector<16x16xf32>
    %c2_100 = arith.constant 2 : index
    %c0_101 = arith.constant 0 : index
    %c0_102 = arith.constant 0 : index
    %424 = vector.load %arg7[%c2_100, %c0_101, %c0_102] : memref<6x16x16xf32, #tpu.memory_space<vmem>>, vector<1x16x16xf32>
    %425 = vector.shape_cast %424 : vector<1x16x16xf32> to vector<16x16xf32>
    %426 = vector.shape_cast %423 : vector<16x16xf32> to vector<1x16x16xf32>
    tpu.vector_store %arg7[%c2_100, %c0_101, %c0_102], %426 {strides = array<i32>} : memref<6x16x16xf32, #tpu.memory_space<vmem>>, vector<1x16x16xf32>,
    %cst_103 = arith.constant dense<0xFF800000> : vector<16xf32>
    %427 = vector.multi_reduction <maximumf>, %423, %cst_103 [1] : vector<16x16xf32> to vector<16xf32>
    %428 = vector.shape_cast %427 : vector<16xf32> to vector<16x1xf32>
    %429 = vector.broadcast %428 : vector<16x1xf32> to vector<16x16xf32>
    %430 = arith.cmpf oeq, %423, %429 : vector<16x16xf32>
    %c16_i32_104 = arith.constant 16 : i32
    %431 = vector.broadcast %c16_i32_104 : i32 to vector<16x16xi32>
    %432 = arith.select %430, %299, %431 : vector<16x16xi1>, vector<16x16xi32>
    %cst_105 = arith.constant dense<2147483647> : vector<16xi32>
    %433 = vector.multi_reduction <minsi>, %432, %cst_105 [1] : vector<16x16xi32> to vector<16xi32>
    %434 = vector.shape_cast %433 : vector<16xi32> to vector<16x1xi32>
    %435 = vector.broadcast %434 : vector<16x1xi32> to vector<16x16xi32>
    %436 = arith.cmpi eq, %299, %435 : vector<16x16xi32>
    %437 = arith.extui %436 : vector<16x16xi1> to vector<16x16xi32>
    %438 = arith.sitofp %437 : vector<16x16xi32> to vector<16x16xf32>
    %cst_106 = arith.constant dense<0.000000e+00> : vector<16x128xf32>
    %439 = tpu.matmul %438, %293, %cst_106 {dimension_numbers = #tpu.dot_dimension_numbers<[1], [0], [0], [1], [0, 0, 1, 1], [], []>} : vector<16x16xf32>, vector<16x128xf32>, vector<16x128xf32> -> vector<16x128xf32>
    %cst_107 = arith.constant dense<0.000000e+00> : vector<16x128xf32>
    %440 = tpu.matmul %421, %294, %cst_107 {dimension_numbers = #tpu.dot_dimension_numbers<[1], [0], [0], [1], [0, 0, 1, 1], [], []>} : vector<16x32xf32>, vector<32x128xf32>, vector<16x128xf32> -> vector<16x128xf32>
    %441 = arith.addf %439, %440 : vector<16x128xf32>
    %442 = vector.extract_strided_slice %441 {offsets = [0, 0], sizes = [16, 32], strides = [1, 1]} : vector<16x128xf32> to vector<16x32xf32>
    %443 = arith.negf %442 : vector<16x32xf32>
    %444 = math.exp %443 : vector<16x32xf32>
    %cst_108 = arith.constant 1.000000e+00 : f32
    %445 = vector.broadcast %cst_108 : f32 to vector<16x32xf32>
    %446 = arith.addf %445, %444 : vector<16x32xf32>
    %447 = arith.divf %445, %446 : vector<16x32xf32>
    %448 = vector.extract_strided_slice %441 {offsets = [0, 32], sizes = [16, 32], strides = [1, 1]} : vector<16x128xf32> to vector<16x32xf32>
    %449 = arith.negf %448 : vector<16x32xf32>
    %450 = math.exp %449 : vector<16x32xf32>
    %cst_109 = arith.constant 1.000000e+00 : f32
    %451 = vector.broadcast %cst_109 : f32 to vector<16x32xf32>
    %452 = arith.addf %451, %450 : vector<16x32xf32>
    %453 = arith.divf %451, %452 : vector<16x32xf32>
    %454 = vector.extract_strided_slice %441 {offsets = [0, 64], sizes = [16, 32], strides = [1, 1]} : vector<16x128xf32> to vector<16x32xf32>
    %455 = math.tanh %454 : vector<16x32xf32>
    %456 = vector.extract_strided_slice %441 {offsets = [0, 96], sizes = [16, 32], strides = [1, 1]} : vector<16x128xf32> to vector<16x32xf32>
    %457 = arith.negf %456 : vector<16x32xf32>
    %458 = math.exp %457 : vector<16x32xf32>
    %cst_110 = arith.constant 1.000000e+00 : f32
    %459 = vector.broadcast %cst_110 : f32 to vector<16x32xf32>
    %460 = arith.addf %459, %458 : vector<16x32xf32>
    %461 = arith.divf %459, %460 : vector<16x32xf32>
    %462 = arith.mulf %453, %419 : vector<16x32xf32>
    %463 = arith.mulf %447, %455 : vector<16x32xf32>
    %464 = arith.addf %462, %463 : vector<16x32xf32>
    %465 = math.tanh %464 : vector<16x32xf32>
    %466 = arith.mulf %461, %465 : vector<16x32xf32>
    %cst_111 = arith.constant dense<0.000000e+00> : vector<16x16xf32>
    %467 = tpu.matmul %466, %295, %cst_111 {dimension_numbers = #tpu.dot_dimension_numbers<[1], [0], [0], [1], [0, 0, 1, 1], [], []>} : vector<16x32xf32>, vector<32x16xf32>, vector<16x16xf32> -> vector<16x16xf32>
    %468 = arith.addf %467, %298 : vector<16x16xf32>
    %c3_112 = arith.constant 3 : index
    %c0_113 = arith.constant 0 : index
    %c0_114 = arith.constant 0 : index
    %469 = vector.load %arg7[%c3_112, %c0_113, %c0_114] : memref<6x16x16xf32, #tpu.memory_space<vmem>>, vector<1x16x16xf32>
    %470 = vector.shape_cast %469 : vector<1x16x16xf32> to vector<16x16xf32>
    %471 = vector.shape_cast %468 : vector<16x16xf32> to vector<1x16x16xf32>
    tpu.vector_store %arg7[%c3_112, %c0_113, %c0_114], %471 {strides = array<i32>} : memref<6x16x16xf32, #tpu.memory_space<vmem>>, vector<1x16x16xf32>,
    %cst_115 = arith.constant dense<0xFF800000> : vector<16xf32>
    %472 = vector.multi_reduction <maximumf>, %468, %cst_115 [1] : vector<16x16xf32> to vector<16xf32>
    %473 = vector.shape_cast %472 : vector<16xf32> to vector<16x1xf32>
    %474 = vector.broadcast %473 : vector<16x1xf32> to vector<16x16xf32>
    %475 = arith.cmpf oeq, %468, %474 : vector<16x16xf32>
    %c16_i32_116 = arith.constant 16 : i32
    %476 = vector.broadcast %c16_i32_116 : i32 to vector<16x16xi32>
    %477 = arith.select %475, %299, %476 : vector<16x16xi1>, vector<16x16xi32>
    %cst_117 = arith.constant dense<2147483647> : vector<16xi32>
    %478 = vector.multi_reduction <minsi>, %477, %cst_117 [1] : vector<16x16xi32> to vector<16xi32>
    %479 = vector.shape_cast %478 : vector<16xi32> to vector<16x1xi32>
    %480 = vector.broadcast %479 : vector<16x1xi32> to vector<16x16xi32>
    %481 = arith.cmpi eq, %299, %480 : vector<16x16xi32>
    %482 = arith.extui %481 : vector<16x16xi1> to vector<16x16xi32>
    %483 = arith.sitofp %482 : vector<16x16xi32> to vector<16x16xf32>
    %cst_118 = arith.constant dense<0.000000e+00> : vector<16x128xf32>
    %484 = tpu.matmul %483, %293, %cst_118 {dimension_numbers = #tpu.dot_dimension_numbers<[1], [0], [0], [1], [0, 0, 1, 1], [], []>} : vector<16x16xf32>, vector<16x128xf32>, vector<16x128xf32> -> vector<16x128xf32>
    %cst_119 = arith.constant dense<0.000000e+00> : vector<16x128xf32>
    %485 = tpu.matmul %466, %294, %cst_119 {dimension_numbers = #tpu.dot_dimension_numbers<[1], [0], [0], [1], [0, 0, 1, 1], [], []>} : vector<16x32xf32>, vector<32x128xf32>, vector<16x128xf32> -> vector<16x128xf32>
    %486 = arith.addf %484, %485 : vector<16x128xf32>
    %487 = vector.extract_strided_slice %486 {offsets = [0, 0], sizes = [16, 32], strides = [1, 1]} : vector<16x128xf32> to vector<16x32xf32>
    %488 = arith.negf %487 : vector<16x32xf32>
    %489 = math.exp %488 : vector<16x32xf32>
    %cst_120 = arith.constant 1.000000e+00 : f32
    %490 = vector.broadcast %cst_120 : f32 to vector<16x32xf32>
    %491 = arith.addf %490, %489 : vector<16x32xf32>
    %492 = arith.divf %490, %491 : vector<16x32xf32>
    %493 = vector.extract_strided_slice %486 {offsets = [0, 32], sizes = [16, 32], strides = [1, 1]} : vector<16x128xf32> to vector<16x32xf32>
    %494 = arith.negf %493 : vector<16x32xf32>
    %495 = math.exp %494 : vector<16x32xf32>
    %cst_121 = arith.constant 1.000000e+00 : f32
    %496 = vector.broadcast %cst_121 : f32 to vector<16x32xf32>
    %497 = arith.addf %496, %495 : vector<16x32xf32>
    %498 = arith.divf %496, %497 : vector<16x32xf32>
    %499 = vector.extract_strided_slice %486 {offsets = [0, 64], sizes = [16, 32], strides = [1, 1]} : vector<16x128xf32> to vector<16x32xf32>
    %500 = math.tanh %499 : vector<16x32xf32>
    %501 = vector.extract_strided_slice %486 {offsets = [0, 96], sizes = [16, 32], strides = [1, 1]} : vector<16x128xf32> to vector<16x32xf32>
    %502 = arith.negf %501 : vector<16x32xf32>
    %503 = math.exp %502 : vector<16x32xf32>
    %cst_122 = arith.constant 1.000000e+00 : f32
    %504 = vector.broadcast %cst_122 : f32 to vector<16x32xf32>
    %505 = arith.addf %504, %503 : vector<16x32xf32>
    %506 = arith.divf %504, %505 : vector<16x32xf32>
    %507 = arith.mulf %498, %464 : vector<16x32xf32>
    %508 = arith.mulf %492, %500 : vector<16x32xf32>
    %509 = arith.addf %507, %508 : vector<16x32xf32>
    %510 = math.tanh %509 : vector<16x32xf32>
    %511 = arith.mulf %506, %510 : vector<16x32xf32>
    %cst_123 = arith.constant dense<0.000000e+00> : vector<16x16xf32>
    %512 = tpu.matmul %511, %295, %cst_123 {dimension_numbers = #tpu.dot_dimension_numbers<[1], [0], [0], [1], [0, 0, 1, 1], [], []>} : vector<16x32xf32>, vector<32x16xf32>, vector<16x16xf32> -> vector<16x16xf32>
    %513 = arith.addf %512, %298 : vector<16x16xf32>
    %c4_124 = arith.constant 4 : index
    %c0_125 = arith.constant 0 : index
    %c0_126 = arith.constant 0 : index
    %514 = vector.load %arg7[%c4_124, %c0_125, %c0_126] : memref<6x16x16xf32, #tpu.memory_space<vmem>>, vector<1x16x16xf32>
    %515 = vector.shape_cast %514 : vector<1x16x16xf32> to vector<16x16xf32>
    %516 = vector.shape_cast %513 : vector<16x16xf32> to vector<1x16x16xf32>
    tpu.vector_store %arg7[%c4_124, %c0_125, %c0_126], %516 {strides = array<i32>} : memref<6x16x16xf32, #tpu.memory_space<vmem>>, vector<1x16x16xf32>,
    %cst_127 = arith.constant dense<0xFF800000> : vector<16xf32>
    %517 = vector.multi_reduction <maximumf>, %513, %cst_127 [1] : vector<16x16xf32> to vector<16xf32>
    %518 = vector.shape_cast %517 : vector<16xf32> to vector<16x1xf32>
    %519 = vector.broadcast %518 : vector<16x1xf32> to vector<16x16xf32>
    %520 = arith.cmpf oeq, %513, %519 : vector<16x16xf32>
    %c16_i32_128 = arith.constant 16 : i32
    %521 = vector.broadcast %c16_i32_128 : i32 to vector<16x16xi32>
    %522 = arith.select %520, %299, %521 : vector<16x16xi1>, vector<16x16xi32>
    %cst_129 = arith.constant dense<2147483647> : vector<16xi32>
    %523 = vector.multi_reduction <minsi>, %522, %cst_129 [1] : vector<16x16xi32> to vector<16xi32>
    %524 = vector.shape_cast %523 : vector<16xi32> to vector<16x1xi32>
    %525 = vector.broadcast %524 : vector<16x1xi32> to vector<16x16xi32>
    %526 = arith.cmpi eq, %299, %525 : vector<16x16xi32>
    %527 = arith.extui %526 : vector<16x16xi1> to vector<16x16xi32>
    %528 = arith.sitofp %527 : vector<16x16xi32> to vector<16x16xf32>
    %cst_130 = arith.constant dense<0.000000e+00> : vector<16x128xf32>
    %529 = tpu.matmul %528, %293, %cst_130 {dimension_numbers = #tpu.dot_dimension_numbers<[1], [0], [0], [1], [0, 0, 1, 1], [], []>} : vector<16x16xf32>, vector<16x128xf32>, vector<16x128xf32> -> vector<16x128xf32>
    %cst_131 = arith.constant dense<0.000000e+00> : vector<16x128xf32>
    %530 = tpu.matmul %511, %294, %cst_131 {dimension_numbers = #tpu.dot_dimension_numbers<[1], [0], [0], [1], [0, 0, 1, 1], [], []>} : vector<16x32xf32>, vector<32x128xf32>, vector<16x128xf32> -> vector<16x128xf32>
    %531 = arith.addf %529, %530 : vector<16x128xf32>
    %532 = vector.extract_strided_slice %531 {offsets = [0, 0], sizes = [16, 32], strides = [1, 1]} : vector<16x128xf32> to vector<16x32xf32>
    %533 = arith.negf %532 : vector<16x32xf32>
    %534 = math.exp %533 : vector<16x32xf32>
    %cst_132 = arith.constant 1.000000e+00 : f32
    %535 = vector.broadcast %cst_132 : f32 to vector<16x32xf32>
    %536 = arith.addf %535, %534 : vector<16x32xf32>
    %537 = arith.divf %535, %536 : vector<16x32xf32>
    %538 = vector.extract_strided_slice %531 {offsets = [0, 32], sizes = [16, 32], strides = [1, 1]} : vector<16x128xf32> to vector<16x32xf32>
    %539 = arith.negf %538 : vector<16x32xf32>
    %540 = math.exp %539 : vector<16x32xf32>
    %cst_133 = arith.constant 1.000000e+00 : f32
    %541 = vector.broadcast %cst_133 : f32 to vector<16x32xf32>
    %542 = arith.addf %541, %540 : vector<16x32xf32>
    %543 = arith.divf %541, %542 : vector<16x32xf32>
    %544 = vector.extract_strided_slice %531 {offsets = [0, 64], sizes = [16, 32], strides = [1, 1]} : vector<16x128xf32> to vector<16x32xf32>
    %545 = math.tanh %544 : vector<16x32xf32>
    %546 = vector.extract_strided_slice %531 {offsets = [0, 96], sizes = [16, 32], strides = [1, 1]} : vector<16x128xf32> to vector<16x32xf32>
    %547 = arith.negf %546 : vector<16x32xf32>
    %548 = math.exp %547 : vector<16x32xf32>
    %cst_134 = arith.constant 1.000000e+00 : f32
    %549 = vector.broadcast %cst_134 : f32 to vector<16x32xf32>
    %550 = arith.addf %549, %548 : vector<16x32xf32>
    %551 = arith.divf %549, %550 : vector<16x32xf32>
    %552 = arith.mulf %543, %509 : vector<16x32xf32>
    %553 = arith.mulf %537, %545 : vector<16x32xf32>
    %554 = arith.addf %552, %553 : vector<16x32xf32>
    %555 = math.tanh %554 : vector<16x32xf32>
    %556 = arith.mulf %551, %555 : vector<16x32xf32>
    %cst_135 = arith.constant dense<0.000000e+00> : vector<16x16xf32>
    %557 = tpu.matmul %556, %295, %cst_135 {dimension_numbers = #tpu.dot_dimension_numbers<[1], [0], [0], [1], [0, 0, 1, 1], [], []>} : vector<16x32xf32>, vector<32x16xf32>, vector<16x16xf32> -> vector<16x16xf32>
    %558 = arith.addf %557, %298 : vector<16x16xf32>
    %c5_136 = arith.constant 5 : index
    %c0_137 = arith.constant 0 : index
    %c0_138 = arith.constant 0 : index
    %559 = vector.load %arg7[%c5_136, %c0_137, %c0_138] : memref<6x16x16xf32, #tpu.memory_space<vmem>>, vector<1x16x16xf32>
    %560 = vector.shape_cast %559 : vector<1x16x16xf32> to vector<16x16xf32>
    %561 = vector.shape_cast %558 : vector<16x16xf32> to vector<1x16x16xf32>
    tpu.vector_store %arg7[%c5_136, %c0_137, %c0_138], %561 {strides = array<i32>} : memref<6x16x16xf32, #tpu.memory_space<vmem>>, vector<1x16x16xf32>,
    return
  }
  func.func @transform_0(%arg0: i32) -> (i32, i32, i32) {
    %c0_i32 = arith.constant 0 : i32
    %c0_i32_0 = arith.constant 0 : i32
    %c0_i32_1 = arith.constant 0 : i32
    return %c0_i32, %arg0, %c0_i32_0 : i32, i32, i32
  }
  func.func @transform_1(%arg0: i32) -> (i32, i32) {
    %c0_i32 = arith.constant 0 : i32
    %c0_i32_0 = arith.constant 0 : i32
    %c0_i32_1 = arith.constant 0 : i32
    return %c0_i32, %c0_i32_0 : i32, i32
  }
  func.func @transform_2(%arg0: i32) -> (i32, i32) {
    %c0_i32 = arith.constant 0 : i32
    %c0_i32_0 = arith.constant 0 : i32
    %c0_i32_1 = arith.constant 0 : i32
    return %c0_i32, %c0_i32_0 : i32, i32
  }
  func.func @transform_3(%arg0: i32) -> (i32, i32) {
    %c0_i32 = arith.constant 0 : i32
    %c0_i32_0 = arith.constant 0 : i32
    %c0_i32_1 = arith.constant 0 : i32
    return %c0_i32, %c0_i32_0 : i32, i32
  }
  func.func @transform_4(%arg0: i32) -> (i32, i32) {
    %c0_i32 = arith.constant 0 : i32
    %c0_i32_0 = arith.constant 0 : i32
    %c0_i32_1 = arith.constant 0 : i32
    return %c0_i32, %c0_i32_0 : i32, i32
  }
  func.func @transform_5(%arg0: i32) -> (i32, i32) {
    %c0_i32 = arith.constant 0 : i32
    %c0_i32_0 = arith.constant 0 : i32
    %c0_i32_1 = arith.constant 0 : i32
    return %c0_i32, %c0_i32_0 : i32, i32
  }
  func.func @transform_6(%arg0: i32) -> (i32, i32, i32) {
    %c0_i32 = arith.constant 0 : i32
    %c0_i32_0 = arith.constant 0 : i32
    %c0_i32_1 = arith.constant 0 : i32
    return %c0_i32, %arg0, %c0_i32_0 : i32, i32, i32
  }
}

</mosaic_0001>

<llo_original>
// kernel: a_call__.1
$region0: #{a_call__.1}
  #allocation0 [shape = 'u32[]', space=smem, size = 0x4, offset = 0x4, fixed_abs, tag = 'smem constant byte address 0x4 - core index']
  #allocation1 [shape = 'u32[72,128]{1,0:T(1,128)}', space=vmem, size = 0x9000, scoped, tag = 'internal scratch']
  %s0 = inlined_call_operand.vmem [shape: f32[10,32,128], index: 0, kind: input, shape index: {}]
  %s1 = inlined_call_operand.vmem [shape: f32[32,128], index: 1, kind: input, shape index: {}]
  %s2 = inlined_call_operand.vmem [shape: f32[16,128], index: 2, kind: input, shape index: {}]
  %s3 = inlined_call_operand.vmem [shape: f32[32,128], index: 3, kind: input, shape index: {}]
  %s4 = inlined_call_operand.vmem [shape: f32[32,16], index: 4, kind: input, shape index: {}]
  %s5 = inlined_call_operand.vmem [shape: f32[1,16], index: 5, kind: input, shape index: {}]
  %s6 = inlined_call_operand.vmem [shape: f32[6,32,16], index: 6, kind: output, shape index: {}]
  %s7 = sld [smem:[#allocation0]]
  $region129: #{a_call__.1} parent=0
    _
  %s9 = ssub.s32 1, %s7
  %s10 = scalar_select 0, %s9, %s7
  $region1: #{a_call__.1} parent=0
    #allocation2 [shape = 'u8[163840]{0}', space=vmem, size = 0x28000, scoped, tag = 'input window, operand 0']
    #allocation3 [shape = 'u8[98304]{0}', space=vmem, size = 0x18000, scoped, tag = 'output window, operand 0']
    loop: start=0, step=1, limit=4
    $region2: #{a_call__.1} parent=1 // loop_pre_header
      _
    $region3: #{a_call__.1} parent=1 // loop_header
      %s12 = sphi 0, %s16
      %p13 = scmp.ge.s32.totalorder %s12, 4
      %s22 = sphi 0, %s24
      %s25 = sphi 0, %s22
      %s26 = sphi 0, %s25
      %s42 = sphi 0, %s26
      %s46 = sphi 0, %s46
      %s48 = sphi 0, %s46
      %s49 = sphi 0, %s48
      %s63 = sphi 0, %s49
      %s67 = sphi 0, %s67
      %s69 = sphi 0, %s67
      %s70 = sphi 0, %s69
      %s84 = sphi 0, %s70
      %s88 = sphi 0, %s88
      %s90 = sphi 0, %s88
      %s91 = sphi 0, %s90
      %s105 = sphi 0, %s91
      %s109 = sphi 0, %s109
      %s111 = sphi 0, %s109
      %s112 = sphi 0, %s111
      %s126 = sphi 0, %s112
      %s130 = sphi 0, %s130
      %s132 = sphi 0, %s130
      %s133 = sphi 0, %s132
      %s147 = sphi 0, %s133
      %s153 = sphi 0, %s155
      %s156 = sphi 0, %s153
      %s157 = sphi 0, %s156
      %s173 = sphi 0, %s157
    $region4: #{a_call__.1} parent=1 // loop_header_branch
      %15 = sbr.rel (%p13) target = $region8
    $region5: #{a_call__.1} parent=1 // loop_body
      %s17 = ssub.s32 %s12, 1
      %s18 = ssub.s32 %s12, 2
      %s19 = sadd.s32 %s12, 1
      %s20 = ssub.s32 %s12, %s19
      %p21 = scmp.eq.s32.totalorder %s20, 0
      %s23 = sadd.s32 %s22, 1
      %s24 = scalar_select %p21, %s22, %s23
      %p27 = pneg %p21
      %p28 = scmp.eq.s32.totalorder %s12, 1
      %p29 = por %p27, %p28
      %p30 = scmp.ne.s32.totalorder %s22, %s25
      %p31 = scmp.eq.s32.totalorder %s12, 0
      %p32 = por %p30, %p31
      %p33 = scmp.ne.s32.totalorder %s22, %s25
      %p34 = scmp.eq.s32.totalorder %s17, 1
      %p35 = por %p33, %p34
      %p36 = scmp.ne.s32.totalorder %s25, %s26
      %p37 = scmp.eq.s32.totalorder %s17, 0
      %p38 = por %p36, %p37
      %p39 = scmp.ne.s32.totalorder %s25, %s26
      %p40 = scmp.eq.s32.totalorder %s18, 1
      %p41 = por %p39, %p40
      %p43 = scmp.ne.s32.totalorder %s26, %s42
      %p44 = scmp.eq.s32.totalorder %s18, 0
      %p45 = por %p43, %p44
      %s47 = sadd.s32 %s46, 1
      %p50 = scmp.eq.s32.totalorder %s12, 1
      %p51 = scmp.ne.s32.totalorder %s46, %s48
      %p52 = scmp.eq.s32.totalorder %s12, 0
      %p53 = por %p51, %p52
      %p54 = scmp.ne.s32.totalorder %s46, %s48
      %p55 = scmp.eq.s32.totalorder %s17, 1
      %p56 = por %p54, %p55
      %p57 = scmp.ne.s32.totalorder %s48, %s49
      %p58 = scmp.eq.s32.totalorder %s17, 0
      %p59 = por %p57, %p58
      %p60 = scmp.ne.s32.totalorder %s48, %s49
      %p61 = scmp.eq.s32.totalorder %s18, 1
      %p62 = por %p60, %p61
      %p64 = scmp.ne.s32.totalorder %s49, %s63
      %p65 = scmp.eq.s32.totalorder %s18, 0
      %p66 = por %p64, %p65
      %s68 = sadd.s32 %s67, 1
      %p71 = scmp.eq.s32.totalorder %s12, 1
      %p72 = scmp.ne.s32.totalorder %s67, %s69
      %p73 = scmp.eq.s32.totalorder %s12, 0
      %p74 = por %p72, %p73
      %p75 = scmp.ne.s32.totalorder %s67, %s69
      %p76 = scmp.eq.s32.totalorder %s17, 1
      %p77 = por %p75, %p76
      %p78 = scmp.ne.s32.totalorder %s69, %s70
      %p79 = scmp.eq.s32.totalorder %s17, 0
      %p80 = por %p78, %p79
      %p81 = scmp.ne.s32.totalorder %s69, %s70
      %p82 = scmp.eq.s32.totalorder %s18, 1
      %p83 = por %p81, %p82
      %p85 = scmp.ne.s32.totalorder %s70, %s84
      %p86 = scmp.eq.s32.totalorder %s18, 0
      %p87 = por %p85, %p86
      %s89 = sadd.s32 %s88, 1
      %p92 = scmp.eq.s32.totalorder %s12, 1
      %p93 = scmp.ne.s32.totalorder %s88, %s90
      %p94 = scmp.eq.s32.totalorder %s12, 0
      %p95 = por %p93, %p94
      %p96 = scmp.ne.s32.totalorder %s88, %s90
      %p97 = scmp.eq.s32.totalorder %s17, 1
      %p98 = por %p96, %p97
      %p99 = scmp.ne.s32.totalorder %s90, %s91
      %p100 = scmp.eq.s32.totalorder %s17, 0
      %p101 = por %p99, %p100
      %p102 = scmp.ne.s32.totalorder %s90, %s91
      %p103 = scmp.eq.s32.totalorder %s18, 1
      %p104 = por %p102, %p103
      %p106 = scmp.ne.s32.totalorder %s91, %s105
      %p107 = scmp.eq.s32.totalorder %s18, 0
      %p108 = por %p106, %p107
      %s110 = sadd.s32 %s109, 1
      %p113 = scmp.eq.s32.totalorder %s12, 1
      %p114 = scmp.ne.s32.totalorder %s109, %s111
      %p115 = scmp.eq.s32.totalorder %s12, 0
      %p116 = por %p114, %p115
      %p117 = scmp.ne.s32.totalorder %s109, %s111
      %p118 = scmp.eq.s32.totalorder %s17, 1
      %p119 = por %p117, %p118
      %p120 = scmp.ne.s32.totalorder %s111, %s112
      %p121 = scmp.eq.s32.totalorder %s17, 0
      %p122 = por %p120, %p121
      %p123 = scmp.ne.s32.totalorder %s111, %s112
      %p124 = scmp.eq.s32.totalorder %s18, 1
      %p125 = por %p123, %p124
      %p127 = scmp.ne.s32.totalorder %s112, %s126
      %p128 = scmp.eq.s32.totalorder %s18, 0
      %p129 = por %p127, %p128
      %s131 = sadd.s32 %s130, 1
      %p134 = scmp.eq.s32.totalorder %s12, 1
      %p135 = scmp.ne.s32.totalorder %s130, %s132
      %p136 = scmp.eq.s32.totalorder %s12, 0
      %p137 = por %p135, %p136
      %p138 = scmp.ne.s32.totalorder %s130, %s132
      %p139 = scmp.eq.s32.totalorder %s17, 1
      %p140 = por %p138, %p139
      %p141 = scmp.ne.s32.totalorder %s132, %s133
      %p142 = scmp.eq.s32.totalorder %s17, 0
      %p143 = por %p141, %p142
      %p144 = scmp.ne.s32.totalorder %s132, %s133
      %p145 = scmp.eq.s32.totalorder %s18, 1
      %p146 = por %p144, %p145
      %p148 = scmp.ne.s32.totalorder %s133, %s147
      %p149 = scmp.eq.s32.totalorder %s18, 0
      %p150 = por %p148, %p149
      %s151 = ssub.s32 %s12, %s19
      %p152 = scmp.eq.s32.totalorder %s151, 0
      %s154 = sadd.s32 %s153, 1
      %s155 = scalar_select %p152, %s153, %s154
      %p158 = pneg %p152
      %p159 = scmp.eq.s32.totalorder %s12, 1
      %p160 = por %p158, %p159
      %p161 = scmp.ne.s32.totalorder %s153, %s156
      %p162 = scmp.eq.s32.totalorder %s12, 0
      %p163 = por %p161, %p162
      %p164 = scmp.ne.s32.totalorder %s153, %s156
      %p165 = scmp.eq.s32.totalorder %s17, 1
      %p166 = por %p164, %p165
      %p167 = scmp.ne.s32.totalorder %s156, %s157
      %p168 = scmp.eq.s32.totalorder %s17, 0
      %p169 = por %p167, %p168
      %p170 = scmp.ne.s32.totalorder %s156, %s157
      %p171 = scmp.eq.s32.totalorder %s18, 1
      %p172 = por %p170, %p171
      %p174 = scmp.ne.s32.totalorder %s157, %s173
      %p175 = scmp.eq.s32.totalorder %s18, 0
      %p176 = por %p174, %p175
      %p177 = scmp.le.s32.totalorder 1, %s12
      %p178 = scmp.lt.s32.totalorder %s12, 3
      %p179 = pnand %p177, %p178
      %p180 = pneg %p179
      // Predicated region
      $region9: #{a_call__.1} parent=5 // pred_check
        _
      $region10: #{a_call__.1} parent=5 // pred_check_branch
        %182 = sbr.rel (%p179) target = $region12
      $region11: #{a_call__.1} parent=5 // pred_region
        %s183 = ssub.s32 %s12, 1
        // Predicated region
        $region13: #{a_call__.1} parent=11 // pred_check
          %p184 = pneg %p59
        $region14: #{a_call__.1} parent=11 // pred_check_branch
          %186 = sbr.rel (%p184) target = $region16
        $region15: #{a_call__.1} parent=11 // pred_region
          _
        $region16: #{a_call__.1} parent=11 // pred_fallthru
          _
        // Predicated region
        $region17: #{a_call__.1} parent=11 // pred_check
          %p187 = pneg %p80
        $region18: #{a_call__.1} parent=11 // pred_check_branch
          %189 = sbr.rel (%p187) target = $region20
        $region19: #{a_call__.1} parent=11 // pred_region
          _
        $region20: #{a_call__.1} parent=11 // pred_fallthru
          _
        // Predicated region
        $region21: #{a_call__.1} parent=11 // pred_check
          %p190 = pneg %p101
        $region22: #{a_call__.1} parent=11 // pred_check_branch
          %192 = sbr.rel (%p190) target = $region24
        $region23: #{a_call__.1} parent=11 // pred_region
          _
        $region24: #{a_call__.1} parent=11 // pred_fallthru
          _
        // Predicated region
        $region25: #{a_call__.1} parent=11 // pred_check
          %p193 = pneg %p122
        $region26: #{a_call__.1} parent=11 // pred_check_branch
          %195 = sbr.rel (%p193) target = $region28
        $region27: #{a_call__.1} parent=11 // pred_region
          _
        $region28: #{a_call__.1} parent=11 // pred_fallthru
          _
        // Predicated region
        $region29: #{a_call__.1} parent=11 // pred_check
          %p196 = pneg %p143
        $region30: #{a_call__.1} parent=11 // pred_check_branch
          %198 = sbr.rel (%p196) target = $region32
        $region31: #{a_call__.1} parent=11 // pred_region
          _
        $region32: #{a_call__.1} parent=11 // pred_fallthru
          _
      $region12: #{a_call__.1} parent=5 // pred_fallthru
        _
      %p199 = scmp.lt.s32.totalorder %s12, 2
      // Predicated region
      $region33: #{a_call__.1} parent=5 // pred_check
        %p200 = pneg %p199
      $region34: #{a_call__.1} parent=5 // pred_check_branch
        %202 = sbr.rel (%p200) target = $region36
      $region35: #{a_call__.1} parent=5 // pred_region
        // Predicated region
        $region37: #{a_call__.1} parent=35 // pred_check
          %p203 = pneg %p32
        $region38: #{a_call__.1} parent=35 // pred_check_branch
          %205 = sbr.rel (%p203) target = $region40
        $region39: #{a_call__.1} parent=35 // pred_region
          %s206 = sand.u32 %s22, 1
          %s207 = sand.u32 %s22, 1
          %s208 = smul.addr %s207, 160
          %s209 = scalar_lea.vmem [#allocation2], %s208
          %s210 = smul.u32 2, %s12
          %s211 = smul.addr %s210, 8
          %s212 = scalar_lea.vmem %s0, %s211
          // Predicated region
          $region41: #{a_call__.1} parent=39 // pred_check
            _
          $region42: #{a_call__.1} parent=39 // pred_check_branch
            %214 = sbr.rel (0) target = $region44
          $region43: #{a_call__.1} parent=39 // pred_region
            // Predicated region
            $region45: #{a_call__.1} parent=43 // pred_check
              _
            $region46: #{a_call__.1} parent=43 // pred_check_branch
              %216 = sbr.rel (0) target = $region48
            $region47: #{a_call__.1} parent=43 // pred_region
              // Predicated region
              $region60: #{a_call__.1} parent=47 // pred_check
                _
              $region61: #{a_call__.1} parent=47 // pred_check_branch
                %270 = sbr.rel (0) target = $region63
              $region62: #{a_call__.1} parent=47 // pred_region
                loop: start=0, step=1, limit=1
                $region64: #{a_call__.1} parent=62 // loop_pre_header
                  _
                $region65: #{a_call__.1} parent=62 // loop_header
                  %s272 = sphi 0, %s276
                  %p273 = scmp.ge.s32.totalorder %s272, 1
                  %s277 = sphi %s212, %s212
                  %s278 = sphi %s209, %s209
                $region66: #{a_call__.1} parent=62 // loop_header_branch
                  %275 = sbr.rel (%p273) target = $region70
                $region67: #{a_call__.1} parent=62 // loop_body
                  %v279 = vld [vmem:[%s277] sm:$0xff]
                  %280 = vst [vmem:[%s278] sm:$0xff] %v279
                  %v281 = vld [vmem:[%s277 + $0x8] sm:$0xff]
                  %282 = vst [vmem:[%s278 + $0x8] sm:$0xff] %v281
                  %v283 = vld [vmem:[%s277 + $0x20] sm:$0xff]
                  %284 = vst [vmem:[%s278 + $0x10] sm:$0xff] %v283
                  %v285 = vld [vmem:[%s277 + $0x28] sm:$0xff]
                  %286 = vst [vmem:[%s278 + $0x18] sm:$0xff] %v285
                  %v287 = vld [vmem:[%s277 + $0x40] sm:$0xff]
                  %288 = vst [vmem:[%s278 + $0x20] sm:$0xff] %v287
                  %v289 = vld [vmem:[%s277 + $0x48] sm:$0xff]
                  %290 = vst [vmem:[%s278 + $0x28] sm:$0xff] %v289
                  %v291 = vld [vmem:[%s277 + $0x60] sm:$0xff]
                  %292 = vst [vmem:[%s278 + $0x30] sm:$0xff] %v291
                  %v293 = vld [vmem:[%s277 + $0x68] sm:$0xff]
                  %294 = vst [vmem:[%s278 + $0x38] sm:$0xff] %v293
                  %v295 = vld [vmem:[%s277 + $0x80] sm:$0xff]
                  %296 = vst [vmem:[%s278 + $0x40] sm:$0xff] %v295
                  %v297 = vld [vmem:[%s277 + $0x88] sm:$0xff]
                  %298 = vst [vmem:[%s278 + $0x48] sm:$0xff] %v297
                  %v299 = vld [vmem:[%s277 + $0xa0] sm:$0xff]
                  %300 = vst [vmem:[%s278 + $0x50] sm:$0xff] %v299
                  %v301 = vld [vmem:[%s277 + $0xa8] sm:$0xff]
                  %302 = vst [vmem:[%s278 + $0x58] sm:$0xff] %v301
                  %v303 = vld [vmem:[%s277 + $0xc0] sm:$0xff]
                  %304 = vst [vmem:[%s278 + $0x60] sm:$0xff] %v303
                  %v305 = vld [vmem:[%s277 + $0xc8] sm:$0xff]
                  %306 = vst [vmem:[%s278 + $0x68] sm:$0xff] %v305
                  %v307 = vld [vmem:[%s277 + $0xe0] sm:$0xff]
                  %308 = vst [vmem:[%s278 + $0x70] sm:$0xff] %v307
                  %v309 = vld [vmem:[%s277 + $0xe8] sm:$0xff]
                  %310 = vst [vmem:[%s278 + $0x78] sm:$0xff] %v309
                  %v311 = vld [vmem:[%s277 + $0x100] sm:$0xff]
                  %312 = vst [vmem:[%s278 + $0x80] sm:$0xff] %v311
                  %v313 = vld [vmem:[%s277 + $0x108] sm:$0xff]
                  %314 = vst [vmem:[%s278 + $0x88] sm:$0xff] %v313
                  %v315 = vld [vmem:[%s277 + $0x120] sm:$0xff]
                  %316 = vst [vmem:[%s278 + $0x90] sm:$0xff] %v315
                  %v317 = vld [vmem:[%s277 + $0x128] sm:$0xff]
                  %318 = vst [vmem:[%s278 + $0x98] sm:$0xff] %v317
                $region68: #{a_call__.1} parent=62 // loop_footer
                  %s276 = sadd.s32 1, %s272
                $region69: #{a_call__.1} parent=62 // loop_footer_branch
                  %271 = sbr.rel target = $region65
                $region70: #{a_call__.1} parent=62 // loop_exit
                  _
              $region63: #{a_call__.1} parent=47 // pred_fallthru
                _
              // Predicated region
              $region71: #{a_call__.1} parent=47 // pred_check
                _
              $region72: #{a_call__.1} parent=47 // pred_check_branch
                %320 = sbr.rel target = $region74
              $region73: #{a_call__.1} parent=47 // pred_region
                _
              $region74: #{a_call__.1} parent=47 // pred_fallthru
                _
            $region48: #{a_call__.1} parent=43 // pred_fallthru
              _
            // Predicated region
            $region49: #{a_call__.1} parent=43 // pred_check
              _
            $region50: #{a_call__.1} parent=43 // pred_check_branch
              %218 = sbr.rel target = $region52
            $region51: #{a_call__.1} parent=43 // pred_region
              %s220 = ssub.s32 256, 1
              loop: start=0, step=1, limit=1
              $region53: #{a_call__.1} parent=51 // loop_pre_header
                _
              $region54: #{a_call__.1} parent=51 // loop_header
                %s222 = sphi 0, %s226
                %p223 = scmp.ge.s32.totalorder %s222, 1
                %s227 = sphi %s212, %s212
                %s228 = sphi %s209, %s209
              $region55: #{a_call__.1} parent=51 // loop_header_branch
                %225 = sbr.rel (%p223) target = $region59
              $region56: #{a_call__.1} parent=51 // loop_body
                %v229 = vld [vmem:[%s227] sm:%s220]
                %230 = vst [vmem:[%s228] sm:%s220] %v229
                %v231 = vld [vmem:[%s227 + $0x8] sm:%s220]
                %232 = vst [vmem:[%s228 + $0x8] sm:%s220] %v231
                %v233 = vld [vmem:[%s227 + $0x20] sm:%s220]
                %234 = vst [vmem:[%s228 + $0x10] sm:%s220] %v233
                %v235 = vld [vmem:[%s227 + $0x28] sm:%s220]
                %236 = vst [vmem:[%s228 + $0x18] sm:%s220] %v235
                %v237 = vld [vmem:[%s227 + $0x40] sm:%s220]
                %238 = vst [vmem:[%s228 + $0x20] sm:%s220] %v237
                %v239 = vld [vmem:[%s227 + $0x48] sm:%s220]
                %240 = vst [vmem:[%s228 + $0x28] sm:%s220] %v239
                %v241 = vld [vmem:[%s227 + $0x60] sm:%s220]
                %242 = vst [vmem:[%s228 + $0x30] sm:%s220] %v241
                %v243 = vld [vmem:[%s227 + $0x68] sm:%s220]
                %244 = vst [vmem:[%s228 + $0x38] sm:%s220] %v243
                %v245 = vld [vmem:[%s227 + $0x80] sm:%s220]
                %246 = vst [vmem:[%s228 + $0x40] sm:%s220] %v245
                %v247 = vld [vmem:[%s227 + $0x88] sm:%s220]
                %248 = vst [vmem:[%s228 + $0x48] sm:%s220] %v247
                %v249 = vld [vmem:[%s227 + $0xa0] sm:%s220]
                %250 = vst [vmem:[%s228 + $0x50] sm:%s220] %v249
                %v251 = vld [vmem:[%s227 + $0xa8] sm:%s220]
                %252 = vst [vmem:[%s228 + $0x58] sm:%s220] %v251
                %v253 = vld [vmem:[%s227 + $0xc0] sm:%s220]
                %254 = vst [vmem:[%s228 + $0x60] sm:%s220] %v253
                %v255 = vld [vmem:[%s227 + $0xc8] sm:%s220]
                %256 = vst [vmem:[%s228 + $0x68] sm:%s220] %v255
                %v257 = vld [vmem:[%s227 + $0xe0] sm:%s220]
                %258 = vst [vmem:[%s228 + $0x70] sm:%s220] %v257
                %v259 = vld [vmem:[%s227 + $0xe8] sm:%s220]
                %260 = vst [vmem:[%s228 + $0x78] sm:%s220] %v259
                %v261 = vld [vmem:[%s227 + $0x100] sm:%s220]
                %262 = vst [vmem:[%s228 + $0x80] sm:%s220] %v261
                %v263 = vld [vmem:[%s227 + $0x108] sm:%s220]
                %264 = vst [vmem:[%s228 + $0x88] sm:%s220] %v263
                %v265 = vld [vmem:[%s227 + $0x120] sm:%s220]
                %266 = vst [vmem:[%s228 + $0x90] sm:%s220] %v265
                %v267 = vld [vmem:[%s227 + $0x128] sm:%s220]
                %268 = vst [vmem:[%s228 + $0x98] sm:%s220] %v267
              $region57: #{a_call__.1} parent=51 // loop_footer
                %s226 = sadd.s32 1, %s222
              $region58: #{a_call__.1} parent=51 // loop_footer_branch
                %221 = sbr.rel target = $region54
              $region59: #{a_call__.1} parent=51 // loop_exit
                _
            $region52: #{a_call__.1} parent=43 // pred_fallthru
              _
          $region44: #{a_call__.1} parent=39 // pred_fallthru
            _
          %321 = vnop
        $region40: #{a_call__.1} parent=35 // pred_fallthru
          _
      $region36: #{a_call__.1} parent=5 // pred_fallthru
        _
      %p322 = scmp.le.s32.totalorder 1, %s12
      %p323 = scmp.lt.s32.totalorder %s12, 3
      %p324 = pnand %p322, %p323
      %p325 = pneg %p324
      // Predicated region
      $region75: #{a_call__.1} parent=5 // pred_check
        _
      $region76: #{a_call__.1} parent=5 // pred_check_branch
        %327 = sbr.rel (%p324) target = $region78
      $region77: #{a_call__.1} parent=5 // pred_region
        %s328 = ssub.s32 %s12, 1
        %s329 = sand.u32 %s25, 1
        %s330 = sand.u32 %s25, 1
        %s331 = smul.addr %s330, 160
        %s332 = scalar_lea.vmem [#allocation2], %s331
        // Predicated region
        $region79: #{a_call__.1} parent=77 // pred_check
          %p333 = pneg %p38
        $region80: #{a_call__.1} parent=77 // pred_check_branch
          %335 = sbr.rel (%p333) target = $region82
        $region81: #{a_call__.1} parent=77 // pred_region
          _
        $region82: #{a_call__.1} parent=77 // pred_fallthru
          _
        %s336 = sand.u32 %s25, 1
        %s337 = sand.u32 %s25, 1
        %s338 = smul.addr %s337, 160
        %s339 = scalar_lea.vmem [#allocation2], %s338
        %p340 = pneg %p38
        %p341 = pneg %p35
        %p342 = pneg %p59
        %p343 = pneg %p56
        %p344 = pneg %p80
        %p345 = pneg %p77
        %p346 = pneg %p101
        %p347 = pneg %p98
        %p348 = pneg %p122
        %p349 = pneg %p119
        %p350 = pneg %p143
        %p351 = pneg %p140
        %p352 = pneg %p169
        %p353 = pneg %p166
        %s354 = sand.u32 %s156, 1
        %s355 = sand.u32 %s156, 1
        %s356 = smul.addr %s355, 96
        %s357 = scalar_lea.vmem [#allocation3], %s356
        %s358 = smul.u32 2, %s17
        %s359 = smul.u32 2, %s17
        %v360 = vld [vmem:[%s1] sm:$0xff]
        %v361 = vld [vmem:[%s1 + $0x8] sm:$0xff]
        %v362 = vld [vmem:[%s1 + $0x10] sm:$0xff]
        %v363 = vld [vmem:[%s1 + $0x18] sm:$0xff]
        %v364 = vld [vmem:[%s332] sm:$0xff]
        %v365 = vld [vmem:[%s332 + $0x8] sm:$0xff]
        %vm366 = vcmask 261120
        %v368 = vsel %vm366, 0.0, 0
        %370 = vmatpush.msra.mxu0 0.0
        %371 = vmatpush.msra.mxu0 0.0
        %372 = vmatpush.msra.mxu0 0.0
        %373 = vmatpush.msra.mxu0 0.0
        %374 = vmatpush.msra.mxu0 0.0
        %375 = vmatpush.msra.mxu0 0.0
        %376 = vmatpush.msra.mxu0 0.0
        %377 = vmatpush.msra.mxu0 0.0
        %378 = vmatpush.msra.mxu0 0.0
        %379 = vmatpush.msra.mxu0 0.0
        %380 = vmatpush.msra.mxu0 0.0
        %381 = vmatpush.msra.mxu0 0.0
        %382 = vmatpush.msra.mxu0 %v363
        %383 = vmatpush.msra.mxu0 %v362
        %384 = vmatpush.msra.mxu0 %v361
        %385 = vmatpush.msra.mxu0 %v360
        %386 = vmatmul.f32.gmra.mxu0 %v368
        %v387 = vpop.f32.mrf.mxu0
        %v388 = vadd.f32 0.0, %v387
        %389 = vmatmul.f32.gmra.mxu0 %v368
        %v390 = vpop.f32.mrf.mxu0
        %v391 = vadd.f32 0.0, %v390
        %392 = vdwg.mxu0
        %v393 = vadd.f32 %v364, %v388
        %v394 = vadd.f32 %v365, %v391
        %v395 = vxor.u32 %v393, 2147483648
        %v396 = vxor.u32 %v394, 2147483648
        %v397 = vmul.f32 %v395, 1.442695
        %v398 = vpow.pop %v397
        %v399 = vmul.f32 %v396, 1.442695
        %v400 = vpow.pop %v399
        %v401 = vadd.f32 %v398, 1.0
        %v402 = vadd.f32 %v400, 1.0
        %v403 = vrcp.pop %v401
        %v404 = vmul.f32 %v401, %v403
        %v405 = vsub.f32 1.0, %v404
        %v406 = vmul.f32 %v403, %v405
        %v407 = vadd.f32 %v403, %v406
        %vm408 = vweird.f32 %v401
        %vm409 = vweird.f32 %v403
        %vm410 = vmor %vm408, %vm409
        %v411 = vsel %vm410, %v403, %v407
        %v412 = vand.u32 2147483647, %v401
        %vm413 = vcmp.eq.f32.partialorder %v412, 8.507059e+37
        %v414 = vand.u32 %v401, 2147483648
        %v415 = vor.u32 1.1754944e-38, %v414
        %v416 = vsel %vm413, %v415, %v411
        %v417 = vmul.f32 1.0, %v416
        %v418 = vrcp.pop %v402
        %v419 = vmul.f32 %v402, %v418
        %v420 = vsub.f32 1.0, %v419
        %v421 = vmul.f32 %v418, %v420
        %v422 = vadd.f32 %v418, %v421
        %vm423 = vweird.f32 %v402
        %vm424 = vweird.f32 %v418
        %vm425 = vmor %vm423, %vm424
        %v426 = vsel %vm425, %v418, %v422
        %v427 = vand.u32 2147483647, %v402
        %vm428 = vcmp.eq.f32.partialorder %v427, 8.507059e+37
        %v429 = vand.u32 %v402, 2147483648
        %v430 = vor.u32 1.1754944e-38, %v429
        %v431 = vsel %vm428, %v430, %v426
        %v432 = vmul.f32 1.0, %v431
        %v433 = vtanh.pop %v393
        %v434 = vtanh.pop %v394
        %v435 = vmul.f32 %v417, 0.0
        %v436 = vmul.f32 %v432, 0.0
        %439 = vrot.lane.b32.xlu0 %v433, 64
        %v440 = vpop.permute.xlu0 %439
        %441 = vrot.lane.b32.xlu0 %v434, 64
        %v442 = vpop.permute.xlu0 %441
        %v445 = vmul.f32 %v417, %v440
        %v446 = vmul.f32 %v432, %v442
        %449 = vrot.lane.b32.xlu0 %v445, 32
        %v450 = vpop.permute.xlu0 %449
        %451 = vrot.lane.b32.xlu0 %v446, 32
        %v452 = vpop.permute.xlu0 %451
        %v455 = vadd.f32 %v435, %v450
        %v456 = vadd.f32 %v436, %v452
        %v457 = vtanh.pop %v455
        %v458 = vtanh.pop %v456
        %461 = vrot.lane.b32.xlu0 %v457, 64
        %v462 = vpop.permute.xlu0 %461
        %463 = vrot.lane.b32.xlu0 %v458, 64
        %v464 = vpop.permute.xlu0 %463
        %v467 = vmul.f32 %v417, %v462
        %v468 = vmul.f32 %v432, %v464
        %s469 = scalar_lea.vmem %s332, 16 [#allocation2]
        %v470 = vld [vmem:[%s469] sm:$0xff]
        %v471 = vld [vmem:[%s469 + $0x8] sm:$0xff]
        %474 = vrot.lane.b32.xlu0 %v467, 32
        %v475 = vpop.permute.xlu0 %474
        %476 = vrot.lane.b32.xlu0 %v468, 32
        %v477 = vpop.permute.xlu0 %476
        %v478 = vsel %vm366, %v475, 0
        %v480 = vsel %vm366, %v477, 0
        %482 = vmatpush.msra.mxu0 0.0
        %483 = vmatpush.msra.mxu0 0.0
        %484 = vmatpush.msra.mxu0 0.0
        %485 = vmatpush.msra.mxu0 0.0
        %486 = vmatpush.msra.mxu0 0.0
        %487 = vmatpush.msra.mxu0 0.0
        %488 = vmatpush.msra.mxu0 0.0
        %489 = vmatpush.msra.mxu0 0.0
        %490 = vmatpush.msra.mxu0 0.0
        %491 = vmatpush.msra.mxu0 0.0
        %492 = vmatpush.msra.mxu0 0.0
        %493 = vmatpush.msra.mxu0 0.0
        %494 = vmatpush.msra.mxu0 %v363
        %495 = vmatpush.msra.mxu0 %v362
        %496 = vmatpush.msra.mxu0 %v361
        %497 = vmatpush.msra.mxu0 %v360
        %498 = vmatmul.f32.gmra.mxu0 %v478
        %v499 = vpop.f32.mrf.mxu0
        %v500 = vadd.f32 0.0, %v499
        %501 = vmatmul.f32.gmra.mxu0 %v480
        %v502 = vpop.f32.mrf.mxu0
        %v503 = vadd.f32 0.0, %v502
        %504 = vdwg.mxu0
        %v505 = vadd.f32 %v470, %v500
        %v506 = vadd.f32 %v471, %v503
        %v507 = vxor.u32 %v505, 2147483648
        %v508 = vxor.u32 %v506, 2147483648
        %v509 = vmul.f32 %v507, 1.442695
        %v510 = vpow.pop %v509
        %v511 = vmul.f32 %v508, 1.442695
        %v512 = vpow.pop %v511
        %v513 = vadd.f32 %v510, 1.0
        %v514 = vadd.f32 %v512, 1.0
        %v515 = vrcp.pop %v513
        %v516 = vmul.f32 %v513, %v515
        %v517 = vsub.f32 1.0, %v516
        %v518 = vmul.f32 %v515, %v517
        %v519 = vadd.f32 %v515, %v518
        %vm520 = vweird.f32 %v513
        %vm521 = vweird.f32 %v515
        %vm522 = vmor %vm520, %vm521
        %v523 = vsel %vm522, %v515, %v519
        %v524 = vand.u32 2147483647, %v513
        %vm525 = vcmp.eq.f32.partialorder %v524, 8.507059e+37
        %v526 = vand.u32 %v513, 2147483648
        %v527 = vor.u32 1.1754944e-38, %v526
        %v528 = vsel %vm525, %v527, %v523
        %v529 = vmul.f32 1.0, %v528
        %v530 = vrcp.pop %v514
        %v531 = vmul.f32 %v514, %v530
        %v532 = vsub.f32 1.0, %v531
        %v533 = vmul.f32 %v530, %v532
        %v534 = vadd.f32 %v530, %v533
        %vm535 = vweird.f32 %v514
        %vm536 = vweird.f32 %v530
        %vm537 = vmor %vm535, %vm536
        %v538 = vsel %vm537, %v530, %v534
        %v539 = vand.u32 2147483647, %v514
        %vm540 = vcmp.eq.f32.partialorder %v539, 8.507059e+37
        %v541 = vand.u32 %v514, 2147483648
        %v542 = vor.u32 1.1754944e-38, %v541
        %v543 = vsel %vm540, %v542, %v538
        %v544 = vmul.f32 1.0, %v543
        %v545 = vtanh.pop %v505
        %v546 = vtanh.pop %v506
        %v547 = vmul.f32 %v529, %v455
        %v548 = vmul.f32 %v544, %v456
        %551 = vrot.lane.b32.xlu0 %v545, 64
        %v552 = vpop.permute.xlu0 %551
        %553 = vrot.lane.b32.xlu0 %v546, 64
        %v554 = vpop.permute.xlu0 %553
        %v557 = vmul.f32 %v529, %v552
        %v558 = vmul.f32 %v544, %v554
        %561 = vrot.lane.b32.xlu0 %v557, 32
        %v562 = vpop.permute.xlu0 %561
        %563 = vrot.lane.b32.xlu0 %v558, 32
        %v564 = vpop.permute.xlu0 %563
        %v567 = vadd.f32 %v547, %v562
        %v568 = vadd.f32 %v548, %v564
        %v569 = vtanh.pop %v567
        %v570 = vtanh.pop %v568
        %573 = vrot.lane.b32.xlu0 %v569, 64
        %v574 = vpop.permute.xlu0 %573
        %575 = vrot.lane.b32.xlu0 %v570, 64
        %v576 = vpop.permute.xlu0 %575
        %v579 = vmul.f32 %v529, %v574
        %v580 = vmul.f32 %v544, %v576
        %s581 = scalar_lea.vmem %s332, 32 [#allocation2]
        %v582 = vld [vmem:[%s581] sm:$0xff]
        %v583 = vld [vmem:[%s581 + $0x8] sm:$0xff]
        %586 = vrot.lane.b32.xlu0 %v579, 32
        %v587 = vpop.permute.xlu0 %586
        %588 = vrot.lane.b32.xlu0 %v580, 32
        %v589 = vpop.permute.xlu0 %588
        %v590 = vsel %vm366, %v587, 0
        %v592 = vsel %vm366, %v589, 0
        %594 = vmatpush.msra.mxu0 0.0
        %595 = vmatpush.msra.mxu0 0.0
        %596 = vmatpush.msra.mxu0 0.0
        %597 = vmatpush.msra.mxu0 0.0
        %598 = vmatpush.msra.mxu0 0.0
        %599 = vmatpush.msra.mxu0 0.0
        %600 = vmatpush.msra.mxu0 0.0
        %601 = vmatpush.msra.mxu0 0.0
        %602 = vmatpush.msra.mxu0 0.0
        %603 = vmatpush.msra.mxu0 0.0
        %604 = vmatpush.msra.mxu0 0.0
        %605 = vmatpush.msra.mxu0 0.0
        %606 = vmatpush.msra.mxu0 %v363
        %607 = vmatpush.msra.mxu0 %v362
        %608 = vmatpush.msra.mxu0 %v361
        %609 = vmatpush.msra.mxu0 %v360
        %610 = vmatmul.f32.gmra.mxu0 %v590
        %v611 = vpop.f32.mrf.mxu0
        %v612 = vadd.f32 0.0, %v611
        %613 = vmatmul.f32.gmra.mxu0 %v592
        %v614 = vpop.f32.mrf.mxu0
        %v615 = vadd.f32 0.0, %v614
        %616 = vdwg.mxu0
        %v617 = vadd.f32 %v582, %v612
        %v618 = vadd.f32 %v583, %v615
        %v619 = vxor.u32 %v617, 2147483648
        %v620 = vxor.u32 %v618, 2147483648
        %v621 = vmul.f32 %v619, 1.442695
        %v622 = vpow.pop %v621
        %v623 = vmul.f32 %v620, 1.442695
        %v624 = vpow.pop %v623
        %v625 = vadd.f32 %v622, 1.0
        %v626 = vadd.f32 %v624, 1.0
        %v627 = vrcp.pop %v625
        %v628 = vmul.f32 %v625, %v627
        %v629 = vsub.f32 1.0, %v628
        %v630 = vmul.f32 %v627, %v629
        %v631 = vadd.f32 %v627, %v630
        %vm632 = vweird.f32 %v625
        %vm633 = vweird.f32 %v627
        %vm634 = vmor %vm632, %vm633
        %v635 = vsel %vm634, %v627, %v631
        %v636 = vand.u32 2147483647, %v625
        %vm637 = vcmp.eq.f32.partialorder %v636, 8.507059e+37
        %v638 = vand.u32 %v625, 2147483648
        %v639 = vor.u32 1.1754944e-38, %v638
        %v640 = vsel %vm637, %v639, %v635
        %v641 = vmul.f32 1.0, %v640
        %v642 = vrcp.pop %v626
        %v643 = vmul.f32 %v626, %v642
        %v644 = vsub.f32 1.0, %v643
        %v645 = vmul.f32 %v642, %v644
        %v646 = vadd.f32 %v642, %v645
        %vm647 = vweird.f32 %v626
        %vm648 = vweird.f32 %v642
        %vm649 = vmor %vm647, %vm648
        %v650 = vsel %vm649, %v642, %v646
        %v651 = vand.u32 2147483647, %v626
        %vm652 = vcmp.eq.f32.partialorder %v651, 8.507059e+37
        %v653 = vand.u32 %v626, 2147483648
        %v654 = vor.u32 1.1754944e-38, %v653
        %v655 = vsel %vm652, %v654, %v650
        %v656 = vmul.f32 1.0, %v655
        %v657 = vtanh.pop %v617
        %v658 = vtanh.pop %v618
        %v659 = vmul.f32 %v641, %v567
        %v660 = vmul.f32 %v656, %v568
        %663 = vrot.lane.b32.xlu0 %v657, 64
        %v664 = vpop.permute.xlu0 %663
        %665 = vrot.lane.b32.xlu0 %v658, 64
        %v666 = vpop.permute.xlu0 %665
        %v669 = vmul.f32 %v641, %v664
        %v670 = vmul.f32 %v656, %v666
        %673 = vrot.lane.b32.xlu0 %v669, 32
        %v674 = vpop.permute.xlu0 %673
        %675 = vrot.lane.b32.xlu0 %v670, 32
        %v676 = vpop.permute.xlu0 %675
        %v679 = vadd.f32 %v659, %v674
        %v680 = vadd.f32 %v660, %v676
        %v681 = vtanh.pop %v679
        %v682 = vtanh.pop %v680
        %685 = vrot.lane.b32.xlu0 %v681, 64
        %v686 = vpop.permute.xlu0 %685
        %687 = vrot.lane.b32.xlu0 %v682, 64
        %v688 = vpop.permute.xlu0 %687
        %v691 = vmul.f32 %v641, %v686
        %v692 = vmul.f32 %v656, %v688
        %s693 = scalar_lea.vmem %s332, 48 [#allocation2]
        %v694 = vld [vmem:[%s693] sm:$0xff]
        %v695 = vld [vmem:[%s693 + $0x8] sm:$0xff]
        %698 = vrot.lane.b32.xlu0 %v691, 32
        %v699 = vpop.permute.xlu0 %698
        %700 = vrot.lane.b32.xlu0 %v692, 32
        %v701 = vpop.permute.xlu0 %700
        %v702 = vsel %vm366, %v699, 0
        %v704 = vsel %vm366, %v701, 0
        %706 = vmatpush.msra.mxu0 0.0
        %707 = vmatpush.msra.mxu0 0.0
        %708 = vmatpush.msra.mxu0 0.0
        %709 = vmatpush.msra.mxu0 0.0
        %710 = vmatpush.msra.mxu0 0.0
        %711 = vmatpush.msra.mxu0 0.0
        %712 = vmatpush.msra.mxu0 0.0
        %713 = vmatpush.msra.mxu0 0.0
        %714 = vmatpush.msra.mxu0 0.0
        %715 = vmatpush.msra.mxu0 0.0
        %716 = vmatpush.msra.mxu0 0.0
        %717 = vmatpush.msra.mxu0 0.0
        %718 = vmatpush.msra.mxu0 %v363
        %719 = vmatpush.msra.mxu0 %v362
        %720 = vmatpush.msra.mxu0 %v361
        %721 = vmatpush.msra.mxu0 %v360
        %722 = vmatmul.f32.gmra.mxu0 %v702
        %v723 = vpop.f32.mrf.mxu0
        %v724 = vadd.f32 0.0, %v723
        %725 = vmatmul.f32.gmra.mxu0 %v704
        %v726 = vpop.f32.mrf.mxu0
        %v727 = vadd.f32 0.0, %v726
        %728 = vdwg.mxu0
        %v729 = vadd.f32 %v694, %v724
        %v730 = vadd.f32 %v695, %v727
        %v731 = vxor.u32 %v729, 2147483648
        %v732 = vxor.u32 %v730, 2147483648
        %v733 = vmul.f32 %v731, 1.442695
        %v734 = vpow.pop %v733
        %v735 = vmul.f32 %v732, 1.442695
        %v736 = vpow.pop %v735
        %v737 = vadd.f32 %v734, 1.0
        %v738 = vadd.f32 %v736, 1.0
        %v739 = vrcp.pop %v737
        %v740 = vmul.f32 %v737, %v739
        %v741 = vsub.f32 1.0, %v740
        %v742 = vmul.f32 %v739, %v741
        %v743 = vadd.f32 %v739, %v742
        %vm744 = vweird.f32 %v737
        %vm745 = vweird.f32 %v739
        %vm746 = vmor %vm744, %vm745
        %v747 = vsel %vm746, %v739, %v743
        %v748 = vand.u32 2147483647, %v737
        %vm749 = vcmp.eq.f32.partialorder %v748, 8.507059e+37
        %v750 = vand.u32 %v737, 2147483648
        %v751 = vor.u32 1.1754944e-38, %v750
        %v752 = vsel %vm749, %v751, %v747
        %v753 = vmul.f32 1.0, %v752
        %v754 = vrcp.pop %v738
        %v755 = vmul.f32 %v738, %v754
        %v756 = vsub.f32 1.0, %v755
        %v757 = vmul.f32 %v754, %v756
        %v758 = vadd.f32 %v754, %v757
        %vm759 = vweird.f32 %v738
        %vm760 = vweird.f32 %v754
        %vm761 = vmor %vm759, %vm760
        %v762 = vsel %vm761, %v754, %v758
        %v763 = vand.u32 2147483647, %v738
        %vm764 = vcmp.eq.f32.partialorder %v763, 8.507059e+37
        %v765 = vand.u32 %v738, 2147483648
        %v766 = vor.u32 1.1754944e-38, %v765
        %v767 = vsel %vm764, %v766, %v762
        %v768 = vmul.f32 1.0, %v767
        %v769 = vtanh.pop %v729
        %v770 = vtanh.pop %v730
        %v771 = vmul.f32 %v753, %v679
        %v772 = vmul.f32 %v768, %v680
        %775 = vrot.lane.b32.xlu0 %v769, 64
        %v776 = vpop.permute.xlu0 %775
        %777 = vrot.lane.b32.xlu0 %v770, 64
        %v778 = vpop.permute.xlu0 %777
        %v781 = vmul.f32 %v753, %v776
        %v782 = vmul.f32 %v768, %v778
        %785 = vrot.lane.b32.xlu0 %v781, 32
        %v786 = vpop.permute.xlu0 %785
        %787 = vrot.lane.b32.xlu0 %v782, 32
        %v788 = vpop.permute.xlu0 %787
        %v791 = vadd.f32 %v771, %v786
        %v792 = vadd.f32 %v772, %v788
        %v793 = vtanh.pop %v791
        %v794 = vtanh.pop %v792
        %797 = vrot.lane.b32.xlu0 %v793, 64
        %v798 = vpop.permute.xlu0 %797
        %799 = vrot.lane.b32.xlu0 %v794, 64
        %v800 = vpop.permute.xlu0 %799
        %v803 = vmul.f32 %v753, %v798
        %v804 = vmul.f32 %v768, %v800
        %s805 = scalar_lea.vmem %s332, 64 [#allocation2]
        %v806 = vld [vmem:[%s805] sm:$0xff]
        %v807 = vld [vmem:[%s805 + $0x8] sm:$0xff]
        %810 = vrot.lane.b32.xlu0 %v803, 32
        %v811 = vpop.permute.xlu0 %810
        %812 = vrot.lane.b32.xlu0 %v804, 32
        %v813 = vpop.permute.xlu0 %812
        %v814 = vsel %vm366, %v811, 0
        %v816 = vsel %vm366, %v813, 0
        %818 = vmatpush.msra.mxu0 0.0
        %819 = vmatpush.msra.mxu0 0.0
        %820 = vmatpush.msra.mxu0 0.0
        %821 = vmatpush.msra.mxu0 0.0
        %822 = vmatpush.msra.mxu0 0.0
        %823 = vmatpush.msra.mxu0 0.0
        %824 = vmatpush.msra.mxu0 0.0
        %825 = vmatpush.msra.mxu0 0.0
        %826 = vmatpush.msra.mxu0 0.0
        %827 = vmatpush.msra.mxu0 0.0
        %828 = vmatpush.msra.mxu0 0.0
        %829 = vmatpush.msra.mxu0 0.0
        %830 = vmatpush.msra.mxu0 %v363
        %831 = vmatpush.msra.mxu0 %v362
        %832 = vmatpush.msra.mxu0 %v361
        %833 = vmatpush.msra.mxu0 %v360
        %834 = vmatmul.f32.gmra.mxu0 %v814
        %v835 = vpop.f32.mrf.mxu0
        %v836 = vadd.f32 0.0, %v835
        %837 = vmatmul.f32.gmra.mxu0 %v816
        %v838 = vpop.f32.mrf.mxu0
        %v839 = vadd.f32 0.0, %v838
        %840 = vdwg.mxu0
        %v841 = vadd.f32 %v806, %v836
        %v842 = vadd.f32 %v807, %v839
        %v843 = vxor.u32 %v841, 2147483648
        %v844 = vxor.u32 %v842, 2147483648
        %v845 = vmul.f32 %v843, 1.442695
        %v846 = vpow.pop %v845
        %v847 = vmul.f32 %v844, 1.442695
        %v848 = vpow.pop %v847
        %v849 = vadd.f32 %v846, 1.0
        %v850 = vadd.f32 %v848, 1.0
        %v851 = vrcp.pop %v849
        %v852 = vmul.f32 %v849, %v851
        %v853 = vsub.f32 1.0, %v852
        %v854 = vmul.f32 %v851, %v853
        %v855 = vadd.f32 %v851, %v854
        %vm856 = vweird.f32 %v849
        %vm857 = vweird.f32 %v851
        %vm858 = vmor %vm856, %vm857
        %v859 = vsel %vm858, %v851, %v855
        %v860 = vand.u32 2147483647, %v849
        %vm861 = vcmp.eq.f32.partialorder %v860, 8.507059e+37
        %v862 = vand.u32 %v849, 2147483648
        %v863 = vor.u32 1.1754944e-38, %v862
        %v864 = vsel %vm861, %v863, %v859
        %v865 = vmul.f32 1.0, %v864
        %v866 = vrcp.pop %v850
        %v867 = vmul.f32 %v850, %v866
        %v868 = vsub.f32 1.0, %v867
        %v869 = vmul.f32 %v866, %v868
        %v870 = vadd.f32 %v866, %v869
        %vm871 = vweird.f32 %v850
        %vm872 = vweird.f32 %v866
        %vm873 = vmor %vm871, %vm872
        %v874 = vsel %vm873, %v866, %v870
        %v875 = vand.u32 2147483647, %v850
        %vm876 = vcmp.eq.f32.partialorder %v875, 8.507059e+37
        %v877 = vand.u32 %v850, 2147483648
        %v878 = vor.u32 1.1754944e-38, %v877
        %v879 = vsel %vm876, %v878, %v874
        %v880 = vmul.f32 1.0, %v879
        %v881 = vtanh.pop %v841
        %v882 = vtanh.pop %v842
        %v883 = vmul.f32 %v865, %v791
        %v884 = vmul.f32 %v880, %v792
        %887 = vrot.lane.b32.xlu0 %v881, 64
        %v888 = vpop.permute.xlu0 %887
        %889 = vrot.lane.b32.xlu0 %v882, 64
        %v890 = vpop.permute.xlu0 %889
        %v893 = vmul.f32 %v865, %v888
        %v894 = vmul.f32 %v880, %v890
        %897 = vrot.lane.b32.xlu0 %v893, 32
        %v898 = vpop.permute.xlu0 %897
        %899 = vrot.lane.b32.xlu0 %v894, 32
        %v900 = vpop.permute.xlu0 %899
        %v903 = vadd.f32 %v883, %v898
        %v904 = vadd.f32 %v884, %v900
        %v905 = vtanh.pop %v903
        %v906 = vtanh.pop %v904
        %909 = vrot.lane.b32.xlu0 %v905, 64
        %v910 = vpop.permute.xlu0 %909
        %911 = vrot.lane.b32.xlu0 %v906, 64
        %v912 = vpop.permute.xlu0 %911
        %v915 = vmul.f32 %v865, %v910
        %v916 = vmul.f32 %v880, %v912
        %s917 = scalar_lea.vmem %s332, 80 [#allocation2]
        %v918 = vld [vmem:[%s917] sm:$0xff]
        %v919 = vld [vmem:[%s917 + $0x8] sm:$0xff]
        %922 = vrot.lane.b32.xlu0 %v915, 32
        %v923 = vpop.permute.xlu0 %922
        %924 = vrot.lane.b32.xlu0 %v916, 32
        %v925 = vpop.permute.xlu0 %924
        %v926 = vsel %vm366, %v923, 0
        %v928 = vsel %vm366, %v925, 0
        %930 = vmatpush.msra.mxu0 0.0
        %931 = vmatpush.msra.mxu0 0.0
        %932 = vmatpush.msra.mxu0 0.0
        %933 = vmatpush.msra.mxu0 0.0
        %934 = vmatpush.msra.mxu0 0.0
        %935 = vmatpush.msra.mxu0 0.0
        %936 = vmatpush.msra.mxu0 0.0
        %937 = vmatpush.msra.mxu0 0.0
        %938 = vmatpush.msra.mxu0 0.0
        %939 = vmatpush.msra.mxu0 0.0
        %940 = vmatpush.msra.mxu0 0.0
        %941 = vmatpush.msra.mxu0 0.0
        %942 = vmatpush.msra.mxu0 %v363
        %943 = vmatpush.msra.mxu0 %v362
        %944 = vmatpush.msra.mxu0 %v361
        %945 = vmatpush.msra.mxu0 %v360
        %946 = vmatmul.f32.gmra.mxu0 %v926
        %v947 = vpop.f32.mrf.mxu0
        %v948 = vadd.f32 0.0, %v947
        %949 = vmatmul.f32.gmra.mxu0 %v928
        %v950 = vpop.f32.mrf.mxu0
        %v951 = vadd.f32 0.0, %v950
        %952 = vdwg.mxu0
        %v953 = vadd.f32 %v918, %v948
        %v954 = vadd.f32 %v919, %v951
        %v955 = vxor.u32 %v953, 2147483648
        %v956 = vxor.u32 %v954, 2147483648
        %v957 = vmul.f32 %v955, 1.442695
        %v958 = vpow.pop %v957
        %v959 = vmul.f32 %v956, 1.442695
        %v960 = vpow.pop %v959
        %v961 = vadd.f32 %v958, 1.0
        %v962 = vadd.f32 %v960, 1.0
        %v963 = vrcp.pop %v961
        %v964 = vmul.f32 %v961, %v963
        %v965 = vsub.f32 1.0, %v964
        %v966 = vmul.f32 %v963, %v965
        %v967 = vadd.f32 %v963, %v966
        %vm968 = vweird.f32 %v961
        %vm969 = vweird.f32 %v963
        %vm970 = vmor %vm968, %vm969
        %v971 = vsel %vm970, %v963, %v967
        %v972 = vand.u32 2147483647, %v961
        %vm973 = vcmp.eq.f32.partialorder %v972, 8.507059e+37
        %v974 = vand.u32 %v961, 2147483648
        %v975 = vor.u32 1.1754944e-38, %v974
        %v976 = vsel %vm973, %v975, %v971
        %v977 = vmul.f32 1.0, %v976
        %v978 = vrcp.pop %v962
        %v979 = vmul.f32 %v962, %v978
        %v980 = vsub.f32 1.0, %v979
        %v981 = vmul.f32 %v978, %v980
        %v982 = vadd.f32 %v978, %v981
        %vm983 = vweird.f32 %v962
        %vm984 = vweird.f32 %v978
        %vm985 = vmor %vm983, %vm984
        %v986 = vsel %vm985, %v978, %v982
        %v987 = vand.u32 2147483647, %v962
        %vm988 = vcmp.eq.f32.partialorder %v987, 8.507059e+37
        %v989 = vand.u32 %v962, 2147483648
        %v990 = vor.u32 1.1754944e-38, %v989
        %v991 = vsel %vm988, %v990, %v986
        %v992 = vmul.f32 1.0, %v991
        %v993 = vtanh.pop %v953
        %v994 = vtanh.pop %v954
        %v995 = vmul.f32 %v977, %v903
        %v996 = vmul.f32 %v992, %v904
        %999 = vrot.lane.b32.xlu0 %v993, 64
        %v1000 = vpop.permute.xlu0 %999
        %1001 = vrot.lane.b32.xlu0 %v994, 64
        %v1002 = vpop.permute.xlu0 %1001
        %v1005 = vmul.f32 %v977, %v1000
        %v1006 = vmul.f32 %v992, %v1002
        %1009 = vrot.lane.b32.xlu0 %v1005, 32
        %v1010 = vpop.permute.xlu0 %1009
        %1011 = vrot.lane.b32.xlu0 %v1006, 32
        %v1012 = vpop.permute.xlu0 %1011
        %v1015 = vadd.f32 %v995, %v1010
        %v1016 = vadd.f32 %v996, %v1012
        %v1017 = vtanh.pop %v1015
        %v1018 = vtanh.pop %v1016
        %1021 = vrot.lane.b32.xlu0 %v1017, 64
        %v1022 = vpop.permute.xlu0 %1021
        %1023 = vrot.lane.b32.xlu0 %v1018, 64
        %v1024 = vpop.permute.xlu0 %1023
        %v1027 = vmul.f32 %v977, %v1022
        %v1028 = vmul.f32 %v992, %v1024
        %s1029 = scalar_lea.vmem %s332, 96 [#allocation2]
        %v1030 = vld [vmem:[%s1029] sm:$0xff]
        %v1031 = vld [vmem:[%s1029 + $0x8] sm:$0xff]
        %1034 = vrot.lane.b32.xlu0 %v1027, 32
        %v1035 = vpop.permute.xlu0 %1034
        %1036 = vrot.lane.b32.xlu0 %v1028, 32
        %v1037 = vpop.permute.xlu0 %1036
        %v1038 = vsel %vm366, %v1035, 0
        %v1040 = vsel %vm366, %v1037, 0
        %1042 = vmatpush.msra.mxu0 0.0
        %1043 = vmatpush.msra.mxu0 0.0
        %1044 = vmatpush.msra.mxu0 0.0
        %1045 = vmatpush.msra.mxu0 0.0
        %1046 = vmatpush.msra.mxu0 0.0
        %1047 = vmatpush.msra.mxu0 0.0
        %1048 = vmatpush.msra.mxu0 0.0
        %1049 = vmatpush.msra.mxu0 0.0
        %1050 = vmatpush.msra.mxu0 0.0
        %1051 = vmatpush.msra.mxu0 0.0
        %1052 = vmatpush.msra.mxu0 0.0
        %1053 = vmatpush.msra.mxu0 0.0
        %1054 = vmatpush.msra.mxu0 %v363
        %1055 = vmatpush.msra.mxu0 %v362
        %1056 = vmatpush.msra.mxu0 %v361
        %1057 = vmatpush.msra.mxu0 %v360
        %1058 = vmatmul.f32.gmra.mxu0 %v1038
        %v1059 = vpop.f32.mrf.mxu0
        %v1060 = vadd.f32 0.0, %v1059
        %1061 = vmatmul.f32.gmra.mxu0 %v1040
        %v1062 = vpop.f32.mrf.mxu0
        %v1063 = vadd.f32 0.0, %v1062
        %1064 = vdwg.mxu0
        %v1065 = vadd.f32 %v1030, %v1060
        %v1066 = vadd.f32 %v1031, %v1063
        %v1067 = vxor.u32 %v1065, 2147483648
        %v1068 = vxor.u32 %v1066, 2147483648
        %v1069 = vmul.f32 %v1067, 1.442695
        %v1070 = vpow.pop %v1069
        %v1071 = vmul.f32 %v1068, 1.442695
        %v1072 = vpow.pop %v1071
        %v1073 = vadd.f32 %v1070, 1.0
        %v1074 = vadd.f32 %v1072, 1.0
        %v1075 = vrcp.pop %v1073
        %v1076 = vmul.f32 %v1073, %v1075
        %v1077 = vsub.f32 1.0, %v1076
        %v1078 = vmul.f32 %v1075, %v1077
        %v1079 = vadd.f32 %v1075, %v1078
        %vm1080 = vweird.f32 %v1073
        %vm1081 = vweird.f32 %v1075
        %vm1082 = vmor %vm1080, %vm1081
        %v1083 = vsel %vm1082, %v1075, %v1079
        %v1084 = vand.u32 2147483647, %v1073
        %vm1085 = vcmp.eq.f32.partialorder %v1084, 8.507059e+37
        %v1086 = vand.u32 %v1073, 2147483648
        %v1087 = vor.u32 1.1754944e-38, %v1086
        %v1088 = vsel %vm1085, %v1087, %v1083
        %v1089 = vmul.f32 1.0, %v1088
        %v1090 = vrcp.pop %v1074
        %v1091 = vmul.f32 %v1074, %v1090
        %v1092 = vsub.f32 1.0, %v1091
        %v1093 = vmul.f32 %v1090, %v1092
        %v1094 = vadd.f32 %v1090, %v1093
        %vm1095 = vweird.f32 %v1074
        %vm1096 = vweird.f32 %v1090
        %vm1097 = vmor %vm1095, %vm1096
        %v1098 = vsel %vm1097, %v1090, %v1094
        %v1099 = vand.u32 2147483647, %v1074
        %vm1100 = vcmp.eq.f32.partialorder %v1099, 8.507059e+37
        %v1101 = vand.u32 %v1074, 2147483648
        %v1102 = vor.u32 1.1754944e-38, %v1101
        %v1103 = vsel %vm1100, %v1102, %v1098
        %v1104 = vmul.f32 1.0, %v1103
        %v1105 = vtanh.pop %v1065
        %v1106 = vtanh.pop %v1066
        %v1107 = vmul.f32 %v1089, %v1015
        %v1108 = vmul.f32 %v1104, %v1016
        %1111 = vrot.lane.b32.xlu0 %v1105, 64
        %v1112 = vpop.permute.xlu0 %1111
        %1113 = vrot.lane.b32.xlu0 %v1106, 64
        %v1114 = vpop.permute.xlu0 %1113
        %v1117 = vmul.f32 %v1089, %v1112
        %v1118 = vmul.f32 %v1104, %v1114
        %1121 = vrot.lane.b32.xlu0 %v1117, 32
        %v1122 = vpop.permute.xlu0 %1121
        %1123 = vrot.lane.b32.xlu0 %v1118, 32
        %v1124 = vpop.permute.xlu0 %1123
        %v1127 = vadd.f32 %v1107, %v1122
        %v1128 = vadd.f32 %v1108, %v1124
        %v1129 = vtanh.pop %v1127
        %v1130 = vtanh.pop %v1128
        %1133 = vrot.lane.b32.xlu0 %v1129, 64
        %v1134 = vpop.permute.xlu0 %1133
        %1135 = vrot.lane.b32.xlu0 %v1130, 64
        %v1136 = vpop.permute.xlu0 %1135
        %v1139 = vmul.f32 %v1089, %v1134
        %v1140 = vmul.f32 %v1104, %v1136
        %s1141 = scalar_lea.vmem %s332, 112 [#allocation2]
        %v1142 = vld [vmem:[%s1141] sm:$0xff]
        %v1143 = vld [vmem:[%s1141 + $0x8] sm:$0xff]
        %1146 = vrot.lane.b32.xlu0 %v1139, 32
        %v1147 = vpop.permute.xlu0 %1146
        %1148 = vrot.lane.b32.xlu0 %v1140, 32
        %v1149 = vpop.permute.xlu0 %1148
        %v1150 = vsel %vm366, %v1147, 0
        %v1152 = vsel %vm366, %v1149, 0
        %1154 = vmatpush.msra.mxu0 0.0
        %1155 = vmatpush.msra.mxu0 0.0
        %1156 = vmatpush.msra.mxu0 0.0
        %1157 = vmatpush.msra.mxu0 0.0
        %1158 = vmatpush.msra.mxu0 0.0
        %1159 = vmatpush.msra.mxu0 0.0
        %1160 = vmatpush.msra.mxu0 0.0
        %1161 = vmatpush.msra.mxu0 0.0
        %1162 = vmatpush.msra.mxu0 0.0
        %1163 = vmatpush.msra.mxu0 0.0
        %1164 = vmatpush.msra.mxu0 0.0
        %1165 = vmatpush.msra.mxu0 0.0
        %1166 = vmatpush.msra.mxu0 %v363
        %1167 = vmatpush.msra.mxu0 %v362
        %1168 = vmatpush.msra.mxu0 %v361
        %1169 = vmatpush.msra.mxu0 %v360
        %1170 = vmatmul.f32.gmra.mxu0 %v1150
        %v1171 = vpop.f32.mrf.mxu0
        %v1172 = vadd.f32 0.0, %v1171
        %1173 = vmatmul.f32.gmra.mxu0 %v1152
        %v1174 = vpop.f32.mrf.mxu0
        %v1175 = vadd.f32 0.0, %v1174
        %1176 = vdwg.mxu0
        %v1177 = vadd.f32 %v1142, %v1172
        %v1178 = vadd.f32 %v1143, %v1175
        %v1179 = vxor.u32 %v1177, 2147483648
        %v1180 = vxor.u32 %v1178, 2147483648
        %v1181 = vmul.f32 %v1179, 1.442695
        %v1182 = vpow.pop %v1181
        %v1183 = vmul.f32 %v1180, 1.442695
        %v1184 = vpow.pop %v1183
        %v1185 = vadd.f32 %v1182, 1.0
        %v1186 = vadd.f32 %v1184, 1.0
        %v1187 = vrcp.pop %v1185
        %v1188 = vmul.f32 %v1185, %v1187
        %v1189 = vsub.f32 1.0, %v1188
        %v1190 = vmul.f32 %v1187, %v1189
        %v1191 = vadd.f32 %v1187, %v1190
        %vm1192 = vweird.f32 %v1185
        %vm1193 = vweird.f32 %v1187
        %vm1194 = vmor %vm1192, %vm1193
        %v1195 = vsel %vm1194, %v1187, %v1191
        %v1196 = vand.u32 2147483647, %v1185
        %vm1197 = vcmp.eq.f32.partialorder %v1196, 8.507059e+37
        %v1198 = vand.u32 %v1185, 2147483648
        %v1199 = vor.u32 1.1754944e-38, %v1198
        %v1200 = vsel %vm1197, %v1199, %v1195
        %v1201 = vmul.f32 1.0, %v1200
        %v1202 = vrcp.pop %v1186
        %v1203 = vmul.f32 %v1186, %v1202
        %v1204 = vsub.f32 1.0, %v1203
        %v1205 = vmul.f32 %v1202, %v1204
        %v1206 = vadd.f32 %v1202, %v1205
        %vm1207 = vweird.f32 %v1186
        %vm1208 = vweird.f32 %v1202
        %vm1209 = vmor %vm1207, %vm1208
        %v1210 = vsel %vm1209, %v1202, %v1206
        %v1211 = vand.u32 2147483647, %v1186
        %vm1212 = vcmp.eq.f32.partialorder %v1211, 8.507059e+37
        %v1213 = vand.u32 %v1186, 2147483648
        %v1214 = vor.u32 1.1754944e-38, %v1213
        %v1215 = vsel %vm1212, %v1214, %v1210
        %v1216 = vmul.f32 1.0, %v1215
        %v1217 = vtanh.pop %v1177
        %v1218 = vtanh.pop %v1178
        %v1219 = vmul.f32 %v1201, %v1127
        %v1220 = vmul.f32 %v1216, %v1128
        %1223 = vrot.lane.b32.xlu0 %v1217, 64
        %v1224 = vpop.permute.xlu0 %1223
        %1225 = vrot.lane.b32.xlu0 %v1218, 64
        %v1226 = vpop.permute.xlu0 %1225
        %v1229 = vmul.f32 %v1201, %v1224
        %v1230 = vmul.f32 %v1216, %v1226
        %1233 = vrot.lane.b32.xlu0 %v1229, 32
        %v1234 = vpop.permute.xlu0 %1233
        %1235 = vrot.lane.b32.xlu0 %v1230, 32
        %v1236 = vpop.permute.xlu0 %1235
        %v1239 = vadd.f32 %v1219, %v1234
        %v1240 = vadd.f32 %v1220, %v1236
        %v1241 = vtanh.pop %v1239
        %v1242 = vtanh.pop %v1240
        %1245 = vrot.lane.b32.xlu0 %v1241, 64
        %v1246 = vpop.permute.xlu0 %1245
        %1247 = vrot.lane.b32.xlu0 %v1242, 64
        %v1248 = vpop.permute.xlu0 %1247
        %v1251 = vmul.f32 %v1201, %v1246
        %v1252 = vmul.f32 %v1216, %v1248
        %s1253 = scalar_lea.vmem %s332, 128 [#allocation2]
        %v1254 = vld [vmem:[%s1253] sm:$0xff]
        %v1255 = vld [vmem:[%s1253 + $0x8] sm:$0xff]
        %1258 = vrot.lane.b32.xlu0 %v1251, 32
        %v1259 = vpop.permute.xlu0 %1258
        %1260 = vrot.lane.b32.xlu0 %v1252, 32
        %v1261 = vpop.permute.xlu0 %1260
        %v1262 = vsel %vm366, %v1259, 0
        %v1264 = vsel %vm366, %v1261, 0
        %1266 = vmatpush.msra.mxu0 0.0
        %1267 = vmatpush.msra.mxu0 0.0
        %1268 = vmatpush.msra.mxu0 0.0
        %1269 = vmatpush.msra.mxu0 0.0
        %1270 = vmatpush.msra.mxu0 0.0
        %1271 = vmatpush.msra.mxu0 0.0
        %1272 = vmatpush.msra.mxu0 0.0
        %1273 = vmatpush.msra.mxu0 0.0
        %1274 = vmatpush.msra.mxu0 0.0
        %1275 = vmatpush.msra.mxu0 0.0
        %1276 = vmatpush.msra.mxu0 0.0
        %1277 = vmatpush.msra.mxu0 0.0
        %1278 = vmatpush.msra.mxu0 %v363
        %1279 = vmatpush.msra.mxu0 %v362
        %1280 = vmatpush.msra.mxu0 %v361
        %1281 = vmatpush.msra.mxu0 %v360
        %1282 = vmatmul.f32.gmra.mxu0 %v1262
        %v1283 = vpop.f32.mrf.mxu0
        %v1284 = vadd.f32 0.0, %v1283
        %1285 = vmatmul.f32.gmra.mxu0 %v1264
        %v1286 = vpop.f32.mrf.mxu0
        %v1287 = vadd.f32 0.0, %v1286
        %1288 = vdwg.mxu0
        %v1289 = vadd.f32 %v1254, %v1284
        %v1290 = vadd.f32 %v1255, %v1287
        %v1291 = vxor.u32 %v1289, 2147483648
        %v1292 = vxor.u32 %v1290, 2147483648
        %v1293 = vmul.f32 %v1291, 1.442695
        %v1294 = vpow.pop %v1293
        %v1295 = vmul.f32 %v1292, 1.442695
        %v1296 = vpow.pop %v1295
        %v1297 = vadd.f32 %v1294, 1.0
        %v1298 = vadd.f32 %v1296, 1.0
        %v1299 = vrcp.pop %v1297
        %v1300 = vmul.f32 %v1297, %v1299
        %v1301 = vsub.f32 1.0, %v1300
        %v1302 = vmul.f32 %v1299, %v1301
        %v1303 = vadd.f32 %v1299, %v1302
        %vm1304 = vweird.f32 %v1297
        %vm1305 = vweird.f32 %v1299
        %vm1306 = vmor %vm1304, %vm1305
        %v1307 = vsel %vm1306, %v1299, %v1303
        %v1308 = vand.u32 2147483647, %v1297
        %vm1309 = vcmp.eq.f32.partialorder %v1308, 8.507059e+37
        %v1310 = vand.u32 %v1297, 2147483648
        %v1311 = vor.u32 1.1754944e-38, %v1310
        %v1312 = vsel %vm1309, %v1311, %v1307
        %v1313 = vmul.f32 1.0, %v1312
        %v1314 = vrcp.pop %v1298
        %v1315 = vmul.f32 %v1298, %v1314
        %v1316 = vsub.f32 1.0, %v1315
        %v1317 = vmul.f32 %v1314, %v1316
        %v1318 = vadd.f32 %v1314, %v1317
        %vm1319 = vweird.f32 %v1298
        %vm1320 = vweird.f32 %v1314
        %vm1321 = vmor %vm1319, %vm1320
        %v1322 = vsel %vm1321, %v1314, %v1318
        %v1323 = vand.u32 2147483647, %v1298
        %vm1324 = vcmp.eq.f32.partialorder %v1323, 8.507059e+37
        %v1325 = vand.u32 %v1298, 2147483648
        %v1326 = vor.u32 1.1754944e-38, %v1325
        %v1327 = vsel %vm1324, %v1326, %v1322
        %v1328 = vmul.f32 1.0, %v1327
        %v1329 = vtanh.pop %v1289
        %v1330 = vtanh.pop %v1290
        %v1331 = vmul.f32 %v1313, %v1239
        %v1332 = vmul.f32 %v1328, %v1240
        %1335 = vrot.lane.b32.xlu0 %v1329, 64
        %v1336 = vpop.permute.xlu0 %1335
        %1337 = vrot.lane.b32.xlu0 %v1330, 64
        %v1338 = vpop.permute.xlu0 %1337
        %v1341 = vmul.f32 %v1313, %v1336
        %v1342 = vmul.f32 %v1328, %v1338
        %1345 = vrot.lane.b32.xlu0 %v1341, 32
        %v1346 = vpop.permute.xlu0 %1345
        %1347 = vrot.lane.b32.xlu0 %v1342, 32
        %v1348 = vpop.permute.xlu0 %1347
        %v1351 = vadd.f32 %v1331, %v1346
        %v1352 = vadd.f32 %v1332, %v1348
        %v1353 = vtanh.pop %v1351
        %v1354 = vtanh.pop %v1352
        %1357 = vrot.lane.b32.xlu0 %v1353, 64
        %v1358 = vpop.permute.xlu0 %1357
        %1359 = vrot.lane.b32.xlu0 %v1354, 64
        %v1360 = vpop.permute.xlu0 %1359
        %v1363 = vmul.f32 %v1313, %v1358
        %v1364 = vmul.f32 %v1328, %v1360
        %s1365 = scalar_lea.vmem %s332, 144 [#allocation2]
        %v1366 = vld [vmem:[%s1365] sm:$0xff]
        %v1367 = vld [vmem:[%s1365 + $0x8] sm:$0xff]
        %1370 = vrot.lane.b32.xlu0 %v1363, 32
        %v1371 = vpop.permute.xlu0 %1370
        %1372 = vrot.lane.b32.xlu0 %v1364, 32
        %v1373 = vpop.permute.xlu0 %1372
        %v1374 = vsel %vm366, %v1371, 0
        %v1376 = vsel %vm366, %v1373, 0
        %1378 = vmatpush.msra.mxu0 0.0
        %1379 = vmatpush.msra.mxu0 0.0
        %1380 = vmatpush.msra.mxu0 0.0
        %1381 = vmatpush.msra.mxu0 0.0
        %1382 = vmatpush.msra.mxu0 0.0
        %1383 = vmatpush.msra.mxu0 0.0
        %1384 = vmatpush.msra.mxu0 0.0
        %1385 = vmatpush.msra.mxu0 0.0
        %1386 = vmatpush.msra.mxu0 0.0
        %1387 = vmatpush.msra.mxu0 0.0
        %1388 = vmatpush.msra.mxu0 0.0
        %1389 = vmatpush.msra.mxu0 0.0
        %1390 = vmatpush.msra.mxu0 %v363
        %1391 = vmatpush.msra.mxu0 %v362
        %1392 = vmatpush.msra.mxu0 %v361
        %1393 = vmatpush.msra.mxu0 %v360
        %1394 = vmatmul.f32.gmra.mxu0 %v1374
        %v1395 = vpop.f32.mrf.mxu0
        %v1396 = vadd.f32 0.0, %v1395
        %1397 = vmatmul.f32.gmra.mxu0 %v1376
        %v1398 = vpop.f32.mrf.mxu0
        %v1399 = vadd.f32 0.0, %v1398
        %1400 = vdwg.mxu0
        %v1401 = vadd.f32 %v1366, %v1396
        %v1402 = vadd.f32 %v1367, %v1399
        %v1403 = vxor.u32 %v1401, 2147483648
        %v1404 = vxor.u32 %v1402, 2147483648
        %v1405 = vmul.f32 %v1403, 1.442695
        %v1406 = vpow.pop %v1405
        %v1407 = vmul.f32 %v1404, 1.442695
        %v1408 = vpow.pop %v1407
        %v1409 = vadd.f32 %v1406, 1.0
        %v1410 = vadd.f32 %v1408, 1.0
        %v1411 = vrcp.pop %v1409
        %v1412 = vmul.f32 %v1409, %v1411
        %v1413 = vsub.f32 1.0, %v1412
        %v1414 = vmul.f32 %v1411, %v1413
        %v1415 = vadd.f32 %v1411, %v1414
        %vm1416 = vweird.f32 %v1409
        %vm1417 = vweird.f32 %v1411
        %vm1418 = vmor %vm1416, %vm1417
        %v1419 = vsel %vm1418, %v1411, %v1415
        %v1420 = vand.u32 2147483647, %v1409
        %vm1421 = vcmp.eq.f32.partialorder %v1420, 8.507059e+37
        %v1422 = vand.u32 %v1409, 2147483648
        %v1423 = vor.u32 1.1754944e-38, %v1422
        %v1424 = vsel %vm1421, %v1423, %v1419
        %v1425 = vmul.f32 1.0, %v1424
        %v1426 = vrcp.pop %v1410
        %v1427 = vmul.f32 %v1410, %v1426
        %v1428 = vsub.f32 1.0, %v1427
        %v1429 = vmul.f32 %v1426, %v1428
        %v1430 = vadd.f32 %v1426, %v1429
        %vm1431 = vweird.f32 %v1410
        %vm1432 = vweird.f32 %v1426
        %vm1433 = vmor %vm1431, %vm1432
        %v1434 = vsel %vm1433, %v1426, %v1430
        %v1435 = vand.u32 2147483647, %v1410
        %vm1436 = vcmp.eq.f32.partialorder %v1435, 8.507059e+37
        %v1437 = vand.u32 %v1410, 2147483648
        %v1438 = vor.u32 1.1754944e-38, %v1437
        %v1439 = vsel %vm1436, %v1438, %v1434
        %v1440 = vmul.f32 1.0, %v1439
        %v1441 = vtanh.pop %v1401
        %v1442 = vtanh.pop %v1402
        %v1443 = vmul.f32 %v1425, %v1351
        %v1444 = vmul.f32 %v1440, %v1352
        %1447 = vrot.lane.b32.xlu0 %v1441, 64
        %v1448 = vpop.permute.xlu0 %1447
        %1449 = vrot.lane.b32.xlu0 %v1442, 64
        %v1450 = vpop.permute.xlu0 %1449
        %v1453 = vmul.f32 %v1425, %v1448
        %v1454 = vmul.f32 %v1440, %v1450
        %1457 = vrot.lane.b32.xlu0 %v1453, 32
        %v1458 = vpop.permute.xlu0 %1457
        %1459 = vrot.lane.b32.xlu0 %v1454, 32
        %v1460 = vpop.permute.xlu0 %1459
        %v1463 = vadd.f32 %v1443, %v1458
        %v1464 = vadd.f32 %v1444, %v1460
        %v1465 = vtanh.pop %v1463
        %v1466 = vtanh.pop %v1464
        %1469 = vrot.lane.b32.xlu0 %v1465, 64
        %v1470 = vpop.permute.xlu0 %1469
        %1471 = vrot.lane.b32.xlu0 %v1466, 64
        %v1472 = vpop.permute.xlu0 %1471
        %v1475 = vmul.f32 %v1425, %v1470
        %v1476 = vmul.f32 %v1440, %v1472
        %v1477 = vld [vmem:[%s2] sm:$0xff]
        %v1478 = vld [vmem:[%s2 + $0x8] sm:$0xff]
        %v1479 = vld [vmem:[%s3] sm:$0xff]
        %v1480 = vld [vmem:[%s3 + $0x8] sm:$0xff]
        %v1481 = vld [vmem:[%s3 + $0x10] sm:$0xff]
        %v1482 = vld [vmem:[%s3 + $0x18] sm:$0xff]
        %v1483 = vld [vmem:[%s4] sm:$0xff]
        %v1484 = vld [vmem:[%s4 + $0x8] sm:$0xff]
        %v1485 = vld [vmem:[%s4 + $0x10] sm:$0xff]
        %v1486 = vld [vmem:[%s4 + $0x18] sm:$0xff]
        %v1487 = vld [vmem:[%s5] sm:$0x1]
        %v1489 = vperm.slane %v1487, 0
        %v1491 = vlaneseq
        %v1492 = vand.u32 %v1491, 127
        %vm1493 = vcmp.eq.s32.totalorder %v1492, 0
        %v1494 = vsel %vm1493, 1, 0
        %v1495 = vcvt.s32.f32 %v1494
        %1498 = vrot.lane.b32.xlu0 %v1475, 32
        %v1499 = vpop.permute.xlu0 %1498
        %1500 = vrot.lane.b32.xlu0 %v1476, 32
        %v1501 = vpop.permute.xlu0 %1500
        %v1502 = vsel %vm366, %v1499, 0
        %v1504 = vsel %vm366, %v1501, 0
        %1506 = vmatpush.msra.mxu0 0.0
        %1507 = vmatpush.msra.mxu0 0.0
        %1508 = vmatpush.msra.mxu0 0.0
        %1509 = vmatpush.msra.mxu0 0.0
        %1510 = vmatpush.msra.mxu0 0.0
        %1511 = vmatpush.msra.mxu0 0.0
        %1512 = vmatpush.msra.mxu0 0.0
        %1513 = vmatpush.msra.mxu0 0.0
        %1514 = vmatpush.msra.mxu0 0.0
        %1515 = vmatpush.msra.mxu0 0.0
        %1516 = vmatpush.msra.mxu0 0.0
        %1517 = vmatpush.msra.mxu0 0.0
        %1518 = vmatpush.msra.mxu0 %v1482
        %1519 = vmatpush.msra.mxu0 %v1481
        %1520 = vmatpush.msra.mxu0 %v1480
        %1521 = vmatpush.msra.mxu0 %v1479
        %1522 = vmatmul.f32.gmra.mxu0 %v1502
        %v1523 = vpop.f32.mrf.mxu0
        %v1524 = vadd.f32 0.0, %v1523
        %1525 = vmatmul.f32.gmra.mxu0 %v1504
        %v1526 = vpop.f32.mrf.mxu0
        %v1527 = vadd.f32 0.0, %v1526
        %1528 = vdwg.mxu0
        %vm1530 = vcmask 130048
        %v1531 = vsel %vm1530, %v1495, 0
        %1533 = vmatpush.msra.mxu0 0.0
        %1534 = vmatpush.msra.mxu0 0.0
        %1535 = vmatpush.msra.mxu0 0.0
        %1536 = vmatpush.msra.mxu0 0.0
        %1537 = vmatpush.msra.mxu0 0.0
        %1538 = vmatpush.msra.mxu0 0.0
        %1539 = vmatpush.msra.mxu0 0.0
        %1540 = vmatpush.msra.mxu0 0.0
        %1541 = vmatpush.msra.mxu0 0.0
        %1542 = vmatpush.msra.mxu0 0.0
        %1543 = vmatpush.msra.mxu0 0.0
        %1544 = vmatpush.msra.mxu0 0.0
        %1545 = vmatpush.msra.mxu0 0.0
        %1546 = vmatpush.msra.mxu0 0.0
        %1547 = vmatpush.msra.mxu0 %v1478
        %1548 = vmatpush.msra.mxu0 %v1477
        %1549 = vmatmul.f32.gmra.mxu0 %v1531
        %v1550 = vpop.f32.mrf.mxu0
        %v1551 = vadd.f32 %v1524, %v1550
        %1552 = vmatmul.f32.gmra.mxu0 %v1531
        %v1553 = vpop.f32.mrf.mxu0
        %v1554 = vadd.f32 %v1527, %v1553
        %1555 = vdwg.mxu0
        %v1556 = vxor.u32 %v1551, 2147483648
        %v1557 = vxor.u32 %v1554, 2147483648
        %v1558 = vmul.f32 %v1556, 1.442695
        %v1559 = vpow.pop %v1558
        %v1560 = vmul.f32 %v1557, 1.442695
        %v1561 = vpow.pop %v1560
        %v1562 = vadd.f32 %v1559, 1.0
        %v1563 = vadd.f32 %v1561, 1.0
        %v1564 = vrcp.pop %v1562
        %v1565 = vmul.f32 %v1562, %v1564
        %v1566 = vsub.f32 1.0, %v1565
        %v1567 = vmul.f32 %v1564, %v1566
        %v1568 = vadd.f32 %v1564, %v1567
        %vm1569 = vweird.f32 %v1562
        %vm1570 = vweird.f32 %v1564
        %vm1571 = vmor %vm1569, %vm1570
        %v1572 = vsel %vm1571, %v1564, %v1568
        %v1573 = vand.u32 2147483647, %v1562
        %vm1574 = vcmp.eq.f32.partialorder %v1573, 8.507059e+37
        %v1575 = vand.u32 %v1562, 2147483648
        %v1576 = vor.u32 1.1754944e-38, %v1575
        %v1577 = vsel %vm1574, %v1576, %v1572
        %v1578 = vmul.f32 1.0, %v1577
        %v1579 = vrcp.pop %v1563
        %v1580 = vmul.f32 %v1563, %v1579
        %v1581 = vsub.f32 1.0, %v1580
        %v1582 = vmul.f32 %v1579, %v1581
        %v1583 = vadd.f32 %v1579, %v1582
        %vm1584 = vweird.f32 %v1563
        %vm1585 = vweird.f32 %v1579
        %vm1586 = vmor %vm1584, %vm1585
        %v1587 = vsel %vm1586, %v1579, %v1583
        %v1588 = vand.u32 2147483647, %v1563
        %vm1589 = vcmp.eq.f32.partialorder %v1588, 8.507059e+37
        %v1590 = vand.u32 %v1563, 2147483648
        %v1591 = vor.u32 1.1754944e-38, %v1590
        %v1592 = vsel %vm1589, %v1591, %v1587
        %v1593 = vmul.f32 1.0, %v1592
        %v1594 = vtanh.pop %v1551
        %v1595 = vtanh.pop %v1554
        %v1596 = vmul.f32 %v1578, %v1463
        %v1597 = vmul.f32 %v1593, %v1464
        %1600 = vrot.lane.b32.xlu0 %v1594, 64
        %v1601 = vpop.permute.xlu0 %1600
        %1602 = vrot.lane.b32.xlu0 %v1595, 64
        %v1603 = vpop.permute.xlu0 %1602
        %v1606 = vmul.f32 %v1578, %v1601
        %v1607 = vmul.f32 %v1593, %v1603
        %1610 = vrot.lane.b32.xlu0 %v1606, 32
        %v1611 = vpop.permute.xlu0 %1610
        %1612 = vrot.lane.b32.xlu0 %v1607, 32
        %v1613 = vpop.permute.xlu0 %1612
        %v1616 = vadd.f32 %v1596, %v1611
        %v1617 = vadd.f32 %v1597, %v1613
        %v1618 = vtanh.pop %v1616
        %v1619 = vtanh.pop %v1617
        %1622 = vrot.lane.b32.xlu0 %v1618, 64
        %v1623 = vpop.permute.xlu0 %1622
        %1624 = vrot.lane.b32.xlu0 %v1619, 64
        %v1625 = vpop.permute.xlu0 %1624
        %v1628 = vmul.f32 %v1578, %v1623
        %v1629 = vmul.f32 %v1593, %v1625
        %1632 = vrot.lane.b32.xlu0 %v1628, 32
        %v1633 = vpop.permute.xlu0 %1632
        %1634 = vrot.lane.b32.xlu0 %v1629, 32
        %v1635 = vpop.permute.xlu0 %1634
        %v1636 = vsel %vm366, %v1633, 0
        %v1638 = vsel %vm366, %v1635, 0
        %1640 = vmatpush.msra.mxu0 0.0
        %1641 = vmatpush.msra.mxu0 0.0
        %1642 = vmatpush.msra.mxu0 0.0
        %1643 = vmatpush.msra.mxu0 0.0
        %1644 = vmatpush.msra.mxu0 0.0
        %1645 = vmatpush.msra.mxu0 0.0
        %1646 = vmatpush.msra.mxu0 0.0
        %1647 = vmatpush.msra.mxu0 0.0
        %1648 = vmatpush.msra.mxu0 0.0
        %1649 = vmatpush.msra.mxu0 0.0
        %1650 = vmatpush.msra.mxu0 0.0
        %1651 = vmatpush.msra.mxu0 0.0
        %1652 = vmatpush.msra.mxu0 %v1486
        %1653 = vmatpush.msra.mxu0 %v1485
        %1654 = vmatpush.msra.mxu0 %v1484
        %1655 = vmatpush.msra.mxu0 %v1483
        %1656 = vmatmul.f32.gmra.mxu0 %v1636
        %v1657 = vpop.f32.mrf.mxu0
        %v1658 = vadd.f32 %v1489, %v1657
        %1659 = vmatmul.f32.gmra.mxu0 %v1638
        %v1660 = vpop.f32.mrf.mxu0
        %v1661 = vadd.f32 %v1489, %v1660
        %1662 = vdwg.mxu0
        %1663 = vst.msk [vmem:[%s357] sm:$0xff] %vm1530, %v1658
        %1664 = vst.msk [vmem:[%s357 + $0x8] sm:$0xff] %vm1530, %v1661
        %v1665 = vsel %vm1530, %v1658, -inf
        %1666 = vmax.xlane.f32.xlu0 %v1665
        %v1667 = vpop.xlane.xlu0 %1666
        %v1668 = vsel %vm1530, %v1661, -inf
        %1669 = vmax.xlane.f32.xlu0 %v1668
        %v1670 = vpop.xlane.xlu0 %1669
        %vm1671 = vcmp.eq.f32.partialorder %v1658, %v1667
        %vm1672 = vcmp.eq.f32.partialorder %v1661, %v1670
        %v1673 = vsel %vm1671, %v1492, 16
        %v1674 = vsel %vm1672, %v1492, 16
        %v1675 = vsel %vm1530, %v1673, 2147483647
        %v1676 = vand.u32 %v1675, 65535
        %v1677 = vshra.s32 %v1675, 16
        %v1678 = vcvt.s32.f32 %v1676
        %v1679 = vcvt.s32.f32 %v1677
        %1680 = vmin.xlane.f32.xlu0 %v1679
        %v1681 = vpop.xlane.xlu0 %1680
        %vm1682 = vcmp.eq.f32.partialorder %v1679, %v1681
        %v1683 = vsel %vm1682, %v1678, inf
        %1684 = vmin.xlane.f32.xlu0 %v1683
        %v1685 = vpop.xlane.xlu0 %1684
        %v1686 = vcvt.f32.s32 %v1685
        %v1687 = vcvt.f32.s32 %v1681
        %v1688 = vshll.u32 %v1687, 16
        %v1689 = vadd.s32 %v1688, %v1686
        %v1690 = vsel %vm1530, %v1674, 2147483647
        %v1691 = vand.u32 %v1690, 65535
        %v1692 = vshra.s32 %v1690, 16
        %v1693 = vcvt.s32.f32 %v1691
        %v1694 = vcvt.s32.f32 %v1692
        %1695 = vmin.xlane.f32.xlu0 %v1694
        %v1696 = vpop.xlane.xlu0 %1695
        %vm1697 = vcmp.eq.f32.partialorder %v1694, %v1696
        %v1698 = vsel %vm1697, %v1693, inf
        %1699 = vmin.xlane.f32.xlu0 %v1698
        %v1700 = vpop.xlane.xlu0 %1699
        %v1701 = vcvt.f32.s32 %v1700
        %v1702 = vcvt.f32.s32 %v1696
        %v1703 = vshll.u32 %v1702, 16
        %v1704 = vadd.s32 %v1703, %v1701
        %vm1705 = vcmp.eq.s32.totalorder %v1492, %v1689
        %vm1706 = vcmp.eq.s32.totalorder %v1492, %v1704
        %v1707 = vsel %vm1705, 1, 0
        %v1708 = vsel %vm1706, 1, 0
        %v1709 = vcvt.s32.f32 %v1707
        %v1710 = vcvt.s32.f32 %v1708
        %1711 = vmatpush.msra.mxu0 0.0
        %1712 = vmatpush.msra.mxu0 0.0
        %1713 = vmatpush.msra.mxu0 0.0
        %1714 = vmatpush.msra.mxu0 0.0
        %1715 = vmatpush.msra.mxu0 0.0
        %1716 = vmatpush.msra.mxu0 0.0
        %1717 = vmatpush.msra.mxu0 0.0
        %1718 = vmatpush.msra.mxu0 0.0
        %1719 = vmatpush.msra.mxu0 0.0
        %1720 = vmatpush.msra.mxu0 0.0
        %1721 = vmatpush.msra.mxu0 0.0
        %1722 = vmatpush.msra.mxu0 0.0
        %1723 = vmatpush.msra.mxu0 %v1482
        %1724 = vmatpush.msra.mxu0 %v1481
        %1725 = vmatpush.msra.mxu0 %v1480
        %1726 = vmatpush.msra.mxu0 %v1479
        %1727 = vmatmul.f32.gmra.mxu0 %v1636
        %v1728 = vpop.f32.mrf.mxu0
        %v1729 = vadd.f32 0.0, %v1728
        %1730 = vmatmul.f32.gmra.mxu0 %v1638
        %v1731 = vpop.f32.mrf.mxu0
        %v1732 = vadd.f32 0.0, %v1731
        %1733 = vdwg.mxu0
        %v1735 = vsel %vm1530, %v1709, 0
        %v1738 = vsel %vm1530, %v1710, 0
        %1740 = vmatpush.msra.mxu0 0.0
        %1741 = vmatpush.msra.mxu0 0.0
        %1742 = vmatpush.msra.mxu0 0.0
        %1743 = vmatpush.msra.mxu0 0.0
        %1744 = vmatpush.msra.mxu0 0.0
        %1745 = vmatpush.msra.mxu0 0.0
        %1746 = vmatpush.msra.mxu0 0.0
        %1747 = vmatpush.msra.mxu0 0.0
        %1748 = vmatpush.msra.mxu0 0.0
        %1749 = vmatpush.msra.mxu0 0.0
        %1750 = vmatpush.msra.mxu0 0.0
        %1751 = vmatpush.msra.mxu0 0.0
        %1752 = vmatpush.msra.mxu0 0.0
        %1753 = vmatpush.msra.mxu0 0.0
        %1754 = vmatpush.msra.mxu0 %v1478
        %1755 = vmatpush.msra.mxu0 %v1477
        %1756 = vmatmul.f32.gmra.mxu0 %v1735
        %v1757 = vpop.f32.mrf.mxu0
        %v1758 = vadd.f32 %v1729, %v1757
        %1759 = vmatmul.f32.gmra.mxu0 %v1738
        %v1760 = vpop.f32.mrf.mxu0
        %v1761 = vadd.f32 %v1732, %v1760
        %1762 = vdwg.mxu0
        %v1763 = vxor.u32 %v1758, 2147483648
        %v1764 = vxor.u32 %v1761, 2147483648
        %v1765 = vmul.f32 %v1763, 1.442695
        %v1766 = vpow.pop %v1765
        %v1767 = vmul.f32 %v1764, 1.442695
        %v1768 = vpow.pop %v1767
        %v1769 = vadd.f32 %v1766, 1.0
        %v1770 = vadd.f32 %v1768, 1.0
        %v1771 = vrcp.pop %v1769
        %v1772 = vmul.f32 %v1769, %v1771
        %v1773 = vsub.f32 1.0, %v1772
        %v1774 = vmul.f32 %v1771, %v1773
        %v1775 = vadd.f32 %v1771, %v1774
        %vm1776 = vweird.f32 %v1769
        %vm1777 = vweird.f32 %v1771
        %vm1778 = vmor %vm1776, %vm1777
        %v1779 = vsel %vm1778, %v1771, %v1775
        %v1780 = vand.u32 2147483647, %v1769
        %vm1781 = vcmp.eq.f32.partialorder %v1780, 8.507059e+37
        %v1782 = vand.u32 %v1769, 2147483648
        %v1783 = vor.u32 1.1754944e-38, %v1782
        %v1784 = vsel %vm1781, %v1783, %v1779
        %v1785 = vmul.f32 1.0, %v1784
        %v1786 = vrcp.pop %v1770
        %v1787 = vmul.f32 %v1770, %v1786
        %v1788 = vsub.f32 1.0, %v1787
        %v1789 = vmul.f32 %v1786, %v1788
        %v1790 = vadd.f32 %v1786, %v1789
        %vm1791 = vweird.f32 %v1770
        %vm1792 = vweird.f32 %v1786
        %vm1793 = vmor %vm1791, %vm1792
        %v1794 = vsel %vm1793, %v1786, %v1790
        %v1795 = vand.u32 2147483647, %v1770
        %vm1796 = vcmp.eq.f32.partialorder %v1795, 8.507059e+37
        %v1797 = vand.u32 %v1770, 2147483648
        %v1798 = vor.u32 1.1754944e-38, %v1797
        %v1799 = vsel %vm1796, %v1798, %v1794
        %v1800 = vmul.f32 1.0, %v1799
        %v1801 = vtanh.pop %v1758
        %v1802 = vtanh.pop %v1761
        %v1803 = vmul.f32 %v1785, %v1616
        %v1804 = vmul.f32 %v1800, %v1617
        %1807 = vrot.lane.b32.xlu0 %v1801, 64
        %v1808 = vpop.permute.xlu0 %1807
        %1809 = vrot.lane.b32.xlu0 %v1802, 64
        %v1810 = vpop.permute.xlu0 %1809
        %v1813 = vmul.f32 %v1785, %v1808
        %v1814 = vmul.f32 %v1800, %v1810
        %1817 = vrot.lane.b32.xlu0 %v1813, 32
        %v1818 = vpop.permute.xlu0 %1817
        %1819 = vrot.lane.b32.xlu0 %v1814, 32
        %v1820 = vpop.permute.xlu0 %1819
        %v1823 = vadd.f32 %v1803, %v1818
        %v1824 = vadd.f32 %v1804, %v1820
        %v1825 = vtanh.pop %v1823
        %v1826 = vtanh.pop %v1824
        %1829 = vrot.lane.b32.xlu0 %v1825, 64
        %v1830 = vpop.permute.xlu0 %1829
        %1831 = vrot.lane.b32.xlu0 %v1826, 64
        %v1832 = vpop.permute.xlu0 %1831
        %v1835 = vmul.f32 %v1785, %v1830
        %v1836 = vmul.f32 %v1800, %v1832
        %1839 = vrot.lane.b32.xlu0 %v1835, 32
        %v1840 = vpop.permute.xlu0 %1839
        %1841 = vrot.lane.b32.xlu0 %v1836, 32
        %v1842 = vpop.permute.xlu0 %1841
        %v1843 = vsel %vm366, %v1840, 0
        %v1845 = vsel %vm366, %v1842, 0
        %1847 = vmatpush.msra.mxu0 0.0
        %1848 = vmatpush.msra.mxu0 0.0
        %1849 = vmatpush.msra.mxu0 0.0
        %1850 = vmatpush.msra.mxu0 0.0
        %1851 = vmatpush.msra.mxu0 0.0
        %1852 = vmatpush.msra.mxu0 0.0
        %1853 = vmatpush.msra.mxu0 0.0
        %1854 = vmatpush.msra.mxu0 0.0
        %1855 = vmatpush.msra.mxu0 0.0
        %1856 = vmatpush.msra.mxu0 0.0
        %1857 = vmatpush.msra.mxu0 0.0
        %1858 = vmatpush.msra.mxu0 0.0
        %1859 = vmatpush.msra.mxu0 %v1486
        %1860 = vmatpush.msra.mxu0 %v1485
        %1861 = vmatpush.msra.mxu0 %v1484
        %1862 = vmatpush.msra.mxu0 %v1483
        %1863 = vmatmul.f32.gmra.mxu0 %v1843
        %v1864 = vpop.f32.mrf.mxu0
        %v1865 = vadd.f32 %v1489, %v1864
        %1866 = vmatmul.f32.gmra.mxu0 %v1845
        %v1867 = vpop.f32.mrf.mxu0
        %v1868 = vadd.f32 %v1489, %v1867
        %1869 = vdwg.mxu0
        %s1870 = scalar_lea.vmem %s357, 16 [#allocation3]
        %1871 = vst.msk [vmem:[%s1870] sm:$0xff] %vm1530, %v1865
        %1872 = vst.msk [vmem:[%s1870 + $0x8] sm:$0xff] %vm1530, %v1868
        %v1873 = vsel %vm1530, %v1865, -inf
        %1874 = vmax.xlane.f32.xlu0 %v1873
        %v1875 = vpop.xlane.xlu0 %1874
        %v1876 = vsel %vm1530, %v1868, -inf
        %1877 = vmax.xlane.f32.xlu0 %v1876
        %v1878 = vpop.xlane.xlu0 %1877
        %vm1879 = vcmp.eq.f32.partialorder %v1865, %v1875
        %vm1880 = vcmp.eq.f32.partialorder %v1868, %v1878
        %v1881 = vsel %vm1879, %v1492, 16
        %v1882 = vsel %vm1880, %v1492, 16
        %v1883 = vsel %vm1530, %v1881, 2147483647
        %v1884 = vand.u32 %v1883, 65535
        %v1885 = vshra.s32 %v1883, 16
        %v1886 = vcvt.s32.f32 %v1884
        %v1887 = vcvt.s32.f32 %v1885
        %1888 = vmin.xlane.f32.xlu0 %v1887
        %v1889 = vpop.xlane.xlu0 %1888
        %vm1890 = vcmp.eq.f32.partialorder %v1887, %v1889
        %v1891 = vsel %vm1890, %v1886, inf
        %1892 = vmin.xlane.f32.xlu0 %v1891
        %v1893 = vpop.xlane.xlu0 %1892
        %v1894 = vcvt.f32.s32 %v1893
        %v1895 = vcvt.f32.s32 %v1889
        %v1896 = vshll.u32 %v1895, 16
        %v1897 = vadd.s32 %v1896, %v1894
        %v1898 = vsel %vm1530, %v1882, 2147483647
        %v1899 = vand.u32 %v1898, 65535
        %v1900 = vshra.s32 %v1898, 16
        %v1901 = vcvt.s32.f32 %v1899
        %v1902 = vcvt.s32.f32 %v1900
        %1903 = vmin.xlane.f32.xlu0 %v1902
        %v1904 = vpop.xlane.xlu0 %1903
        %vm1905 = vcmp.eq.f32.partialorder %v1902, %v1904
        %v1906 = vsel %vm1905, %v1901, inf
        %1907 = vmin.xlane.f32.xlu0 %v1906
        %v1908 = vpop.xlane.xlu0 %1907
        %v1909 = vcvt.f32.s32 %v1908
        %v1910 = vcvt.f32.s32 %v1904
        %v1911 = vshll.u32 %v1910, 16
        %v1912 = vadd.s32 %v1911, %v1909
        %vm1913 = vcmp.eq.s32.totalorder %v1492, %v1897
        %vm1914 = vcmp.eq.s32.totalorder %v1492, %v1912
        %v1915 = vsel %vm1913, 1, 0
        %v1916 = vsel %vm1914, 1, 0
        %v1917 = vcvt.s32.f32 %v1915
        %v1918 = vcvt.s32.f32 %v1916
        %1919 = vmatpush.msra.mxu0 0.0
        %1920 = vmatpush.msra.mxu0 0.0
        %1921 = vmatpush.msra.mxu0 0.0
        %1922 = vmatpush.msra.mxu0 0.0
        %1923 = vmatpush.msra.mxu0 0.0
        %1924 = vmatpush.msra.mxu0 0.0
        %1925 = vmatpush.msra.mxu0 0.0
        %1926 = vmatpush.msra.mxu0 0.0
        %1927 = vmatpush.msra.mxu0 0.0
        %1928 = vmatpush.msra.mxu0 0.0
        %1929 = vmatpush.msra.mxu0 0.0
        %1930 = vmatpush.msra.mxu0 0.0
        %1931 = vmatpush.msra.mxu0 %v1482
        %1932 = vmatpush.msra.mxu0 %v1481
        %1933 = vmatpush.msra.mxu0 %v1480
        %1934 = vmatpush.msra.mxu0 %v1479
        %1935 = vmatmul.f32.gmra.mxu0 %v1843
        %v1936 = vpop.f32.mrf.mxu0
        %v1937 = vadd.f32 0.0, %v1936
        %1938 = vmatmul.f32.gmra.mxu0 %v1845
        %v1939 = vpop.f32.mrf.mxu0
        %v1940 = vadd.f32 0.0, %v1939
        %1941 = vdwg.mxu0
        %v1943 = vsel %vm1530, %v1917, 0
        %v1946 = vsel %vm1530, %v1918, 0
        %1948 = vmatpush.msra.mxu0 0.0
        %1949 = vmatpush.msra.mxu0 0.0
        %1950 = vmatpush.msra.mxu0 0.0
        %1951 = vmatpush.msra.mxu0 0.0
        %1952 = vmatpush.msra.mxu0 0.0
        %1953 = vmatpush.msra.mxu0 0.0
        %1954 = vmatpush.msra.mxu0 0.0
        %1955 = vmatpush.msra.mxu0 0.0
        %1956 = vmatpush.msra.mxu0 0.0
        %1957 = vmatpush.msra.mxu0 0.0
        %1958 = vmatpush.msra.mxu0 0.0
        %1959 = vmatpush.msra.mxu0 0.0
        %1960 = vmatpush.msra.mxu0 0.0
        %1961 = vmatpush.msra.mxu0 0.0
        %1962 = vmatpush.msra.mxu0 %v1478
        %1963 = vmatpush.msra.mxu0 %v1477
        %1964 = vmatmul.f32.gmra.mxu0 %v1943
        %v1965 = vpop.f32.mrf.mxu0
        %v1966 = vadd.f32 %v1937, %v1965
        %1967 = vmatmul.f32.gmra.mxu0 %v1946
        %v1968 = vpop.f32.mrf.mxu0
        %v1969 = vadd.f32 %v1940, %v1968
        %1970 = vdwg.mxu0
        %v1971 = vxor.u32 %v1966, 2147483648
        %v1972 = vxor.u32 %v1969, 2147483648
        %v1973 = vmul.f32 %v1971, 1.442695
        %v1974 = vpow.pop %v1973
        %v1975 = vmul.f32 %v1972, 1.442695
        %v1976 = vpow.pop %v1975
        %v1977 = vadd.f32 %v1974, 1.0
        %v1978 = vadd.f32 %v1976, 1.0
        %v1979 = vrcp.pop %v1977
        %v1980 = vmul.f32 %v1977, %v1979
        %v1981 = vsub.f32 1.0, %v1980
        %v1982 = vmul.f32 %v1979, %v1981
        %v1983 = vadd.f32 %v1979, %v1982
        %vm1984 = vweird.f32 %v1977
        %vm1985 = vweird.f32 %v1979
        %vm1986 = vmor %vm1984, %vm1985
        %v1987 = vsel %vm1986, %v1979, %v1983
        %v1988 = vand.u32 2147483647, %v1977
        %vm1989 = vcmp.eq.f32.partialorder %v1988, 8.507059e+37
        %v1990 = vand.u32 %v1977, 2147483648
        %v1991 = vor.u32 1.1754944e-38, %v1990
        %v1992 = vsel %vm1989, %v1991, %v1987
        %v1993 = vmul.f32 1.0, %v1992
        %v1994 = vrcp.pop %v1978
        %v1995 = vmul.f32 %v1978, %v1994
        %v1996 = vsub.f32 1.0, %v1995
        %v1997 = vmul.f32 %v1994, %v1996
        %v1998 = vadd.f32 %v1994, %v1997
        %vm1999 = vweird.f32 %v1978
        %vm2000 = vweird.f32 %v1994
        %vm2001 = vmor %vm1999, %vm2000
        %v2002 = vsel %vm2001, %v1994, %v1998
        %v2003 = vand.u32 2147483647, %v1978
        %vm2004 = vcmp.eq.f32.partialorder %v2003, 8.507059e+37
        %v2005 = vand.u32 %v1978, 2147483648
        %v2006 = vor.u32 1.1754944e-38, %v2005
        %v2007 = vsel %vm2004, %v2006, %v2002
        %v2008 = vmul.f32 1.0, %v2007
        %v2009 = vtanh.pop %v1966
        %v2010 = vtanh.pop %v1969
        %v2011 = vmul.f32 %v1993, %v1823
        %v2012 = vmul.f32 %v2008, %v1824
        %2015 = vrot.lane.b32.xlu0 %v2009, 64
        %v2016 = vpop.permute.xlu0 %2015
        %2017 = vrot.lane.b32.xlu0 %v2010, 64
        %v2018 = vpop.permute.xlu0 %2017
        %v2021 = vmul.f32 %v1993, %v2016
        %v2022 = vmul.f32 %v2008, %v2018
        %2025 = vrot.lane.b32.xlu0 %v2021, 32
        %v2026 = vpop.permute.xlu0 %2025
        %2027 = vrot.lane.b32.xlu0 %v2022, 32
        %v2028 = vpop.permute.xlu0 %2027
        %v2031 = vadd.f32 %v2011, %v2026
        %v2032 = vadd.f32 %v2012, %v2028
        %v2033 = vtanh.pop %v2031
        %v2034 = vtanh.pop %v2032
        %2037 = vrot.lane.b32.xlu0 %v2033, 64
        %v2038 = vpop.permute.xlu0 %2037
        %2039 = vrot.lane.b32.xlu0 %v2034, 64
        %v2040 = vpop.permute.xlu0 %2039
        %v2043 = vmul.f32 %v1993, %v2038
        %v2044 = vmul.f32 %v2008, %v2040
        %2047 = vrot.lane.b32.xlu0 %v2043, 32
        %v2048 = vpop.permute.xlu0 %2047
        %2049 = vrot.lane.b32.xlu0 %v2044, 32
        %v2050 = vpop.permute.xlu0 %2049
        %v2051 = vsel %vm366, %v2048, 0
        %v2053 = vsel %vm366, %v2050, 0
        %2055 = vmatpush.msra.mxu0 0.0
        %2056 = vmatpush.msra.mxu0 0.0
        %2057 = vmatpush.msra.mxu0 0.0
        %2058 = vmatpush.msra.mxu0 0.0
        %2059 = vmatpush.msra.mxu0 0.0
        %2060 = vmatpush.msra.mxu0 0.0
        %2061 = vmatpush.msra.mxu0 0.0
        %2062 = vmatpush.msra.mxu0 0.0
        %2063 = vmatpush.msra.mxu0 0.0
        %2064 = vmatpush.msra.mxu0 0.0
        %2065 = vmatpush.msra.mxu0 0.0
        %2066 = vmatpush.msra.mxu0 0.0
        %2067 = vmatpush.msra.mxu0 %v1486
        %2068 = vmatpush.msra.mxu0 %v1485
        %2069 = vmatpush.msra.mxu0 %v1484
        %2070 = vmatpush.msra.mxu0 %v1483
        %2071 = vmatmul.f32.gmra.mxu0 %v2051
        %v2072 = vpop.f32.mrf.mxu0
        %v2073 = vadd.f32 %v1489, %v2072
        %2074 = vmatmul.f32.gmra.mxu0 %v2053
        %v2075 = vpop.f32.mrf.mxu0
        %v2076 = vadd.f32 %v1489, %v2075
        %2077 = vdwg.mxu0
        %s2078 = scalar_lea.vmem %s357, 32 [#allocation3]
        %2079 = vst.msk [vmem:[%s2078] sm:$0xff] %vm1530, %v2073
        %2080 = vst.msk [vmem:[%s2078 + $0x8] sm:$0xff] %vm1530, %v2076
        %v2081 = vsel %vm1530, %v2073, -inf
        %2082 = vmax.xlane.f32.xlu0 %v2081
        %v2083 = vpop.xlane.xlu0 %2082
        %v2084 = vsel %vm1530, %v2076, -inf
        %2085 = vmax.xlane.f32.xlu0 %v2084
        %v2086 = vpop.xlane.xlu0 %2085
        %vm2087 = vcmp.eq.f32.partialorder %v2073, %v2083
        %vm2088 = vcmp.eq.f32.partialorder %v2076, %v2086
        %v2089 = vsel %vm2087, %v1492, 16
        %v2090 = vsel %vm2088, %v1492, 16
        %v2091 = vsel %vm1530, %v2089, 2147483647
        %v2092 = vand.u32 %v2091, 65535
        %v2093 = vshra.s32 %v2091, 16
        %v2094 = vcvt.s32.f32 %v2092
        %v2095 = vcvt.s32.f32 %v2093
        %2096 = vmin.xlane.f32.xlu0 %v2095
        %v2097 = vpop.xlane.xlu0 %2096
        %vm2098 = vcmp.eq.f32.partialorder %v2095, %v2097
        %v2099 = vsel %vm2098, %v2094, inf
        %2100 = vmin.xlane.f32.xlu0 %v2099
        %v2101 = vpop.xlane.xlu0 %2100
        %v2102 = vcvt.f32.s32 %v2101
        %v2103 = vcvt.f32.s32 %v2097
        %v2104 = vshll.u32 %v2103, 16
        %v2105 = vadd.s32 %v2104, %v2102
        %v2106 = vsel %vm1530, %v2090, 2147483647
        %v2107 = vand.u32 %v2106, 65535
        %v2108 = vshra.s32 %v2106, 16
        %v2109 = vcvt.s32.f32 %v2107
        %v2110 = vcvt.s32.f32 %v2108
        %2111 = vmin.xlane.f32.xlu0 %v2110
        %v2112 = vpop.xlane.xlu0 %2111
        %vm2113 = vcmp.eq.f32.partialorder %v2110, %v2112
        %v2114 = vsel %vm2113, %v2109, inf
        %2115 = vmin.xlane.f32.xlu0 %v2114
        %v2116 = vpop.xlane.xlu0 %2115
        %v2117 = vcvt.f32.s32 %v2116
        %v2118 = vcvt.f32.s32 %v2112
        %v2119 = vshll.u32 %v2118, 16
        %v2120 = vadd.s32 %v2119, %v2117
        %vm2121 = vcmp.eq.s32.totalorder %v1492, %v2105
        %vm2122 = vcmp.eq.s32.totalorder %v1492, %v2120
        %v2123 = vsel %vm2121, 1, 0
        %v2124 = vsel %vm2122, 1, 0
        %v2125 = vcvt.s32.f32 %v2123
        %v2126 = vcvt.s32.f32 %v2124
        %2127 = vmatpush.msra.mxu0 0.0
        %2128 = vmatpush.msra.mxu0 0.0
        %2129 = vmatpush.msra.mxu0 0.0
        %2130 = vmatpush.msra.mxu0 0.0
        %2131 = vmatpush.msra.mxu0 0.0
        %2132 = vmatpush.msra.mxu0 0.0
        %2133 = vmatpush.msra.mxu0 0.0
        %2134 = vmatpush.msra.mxu0 0.0
        %2135 = vmatpush.msra.mxu0 0.0
        %2136 = vmatpush.msra.mxu0 0.0
        %2137 = vmatpush.msra.mxu0 0.0
        %2138 = vmatpush.msra.mxu0 0.0
        %2139 = vmatpush.msra.mxu0 %v1482
        %2140 = vmatpush.msra.mxu0 %v1481
        %2141 = vmatpush.msra.mxu0 %v1480
        %2142 = vmatpush.msra.mxu0 %v1479
        %2143 = vmatmul.f32.gmra.mxu0 %v2051
        %v2144 = vpop.f32.mrf.mxu0
        %v2145 = vadd.f32 0.0, %v2144
        %2146 = vmatmul.f32.gmra.mxu0 %v2053
        %v2147 = vpop.f32.mrf.mxu0
        %v2148 = vadd.f32 0.0, %v2147
        %2149 = vdwg.mxu0
        %v2151 = vsel %vm1530, %v2125, 0
        %v2154 = vsel %vm1530, %v2126, 0
        %2156 = vmatpush.msra.mxu0 0.0
        %2157 = vmatpush.msra.mxu0 0.0
        %2158 = vmatpush.msra.mxu0 0.0
        %2159 = vmatpush.msra.mxu0 0.0
        %2160 = vmatpush.msra.mxu0 0.0
        %2161 = vmatpush.msra.mxu0 0.0
        %2162 = vmatpush.msra.mxu0 0.0
        %2163 = vmatpush.msra.mxu0 0.0
        %2164 = vmatpush.msra.mxu0 0.0
        %2165 = vmatpush.msra.mxu0 0.0
        %2166 = vmatpush.msra.mxu0 0.0
        %2167 = vmatpush.msra.mxu0 0.0
        %2168 = vmatpush.msra.mxu0 0.0
        %2169 = vmatpush.msra.mxu0 0.0
        %2170 = vmatpush.msra.mxu0 %v1478
        %2171 = vmatpush.msra.mxu0 %v1477
        %2172 = vmatmul.f32.gmra.mxu0 %v2151
        %v2173 = vpop.f32.mrf.mxu0
        %v2174 = vadd.f32 %v2145, %v2173
        %2175 = vmatmul.f32.gmra.mxu0 %v2154
        %v2176 = vpop.f32.mrf.mxu0
        %v2177 = vadd.f32 %v2148, %v2176
        %2178 = vdwg.mxu0
        %v2179 = vxor.u32 %v2174, 2147483648
        %v2180 = vxor.u32 %v2177, 2147483648
        %v2181 = vmul.f32 %v2179, 1.442695
        %v2182 = vpow.pop %v2181
        %v2183 = vmul.f32 %v2180, 1.442695
        %v2184 = vpow.pop %v2183
        %v2185 = vadd.f32 %v2182, 1.0
        %v2186 = vadd.f32 %v2184, 1.0
        %v2187 = vrcp.pop %v2185
        %v2188 = vmul.f32 %v2185, %v2187
        %v2189 = vsub.f32 1.0, %v2188
        %v2190 = vmul.f32 %v2187, %v2189
        %v2191 = vadd.f32 %v2187, %v2190
        %vm2192 = vweird.f32 %v2185
        %vm2193 = vweird.f32 %v2187
        %vm2194 = vmor %vm2192, %vm2193
        %v2195 = vsel %vm2194, %v2187, %v2191
        %v2196 = vand.u32 2147483647, %v2185
        %vm2197 = vcmp.eq.f32.partialorder %v2196, 8.507059e+37
        %v2198 = vand.u32 %v2185, 2147483648
        %v2199 = vor.u32 1.1754944e-38, %v2198
        %v2200 = vsel %vm2197, %v2199, %v2195
        %v2201 = vmul.f32 1.0, %v2200
        %v2202 = vrcp.pop %v2186
        %v2203 = vmul.f32 %v2186, %v2202
        %v2204 = vsub.f32 1.0, %v2203
        %v2205 = vmul.f32 %v2202, %v2204
        %v2206 = vadd.f32 %v2202, %v2205
        %vm2207 = vweird.f32 %v2186
        %vm2208 = vweird.f32 %v2202
        %vm2209 = vmor %vm2207, %vm2208
        %v2210 = vsel %vm2209, %v2202, %v2206
        %v2211 = vand.u32 2147483647, %v2186
        %vm2212 = vcmp.eq.f32.partialorder %v2211, 8.507059e+37
        %v2213 = vand.u32 %v2186, 2147483648
        %v2214 = vor.u32 1.1754944e-38, %v2213
        %v2215 = vsel %vm2212, %v2214, %v2210
        %v2216 = vmul.f32 1.0, %v2215
        %v2217 = vtanh.pop %v2174
        %v2218 = vtanh.pop %v2177
        %v2219 = vmul.f32 %v2201, %v2031
        %v2220 = vmul.f32 %v2216, %v2032
        %2223 = vrot.lane.b32.xlu0 %v2217, 64
        %v2224 = vpop.permute.xlu0 %2223
        %2225 = vrot.lane.b32.xlu0 %v2218, 64
        %v2226 = vpop.permute.xlu0 %2225
        %v2229 = vmul.f32 %v2201, %v2224
        %v2230 = vmul.f32 %v2216, %v2226
        %2233 = vrot.lane.b32.xlu0 %v2229, 32
        %v2234 = vpop.permute.xlu0 %2233
        %2235 = vrot.lane.b32.xlu0 %v2230, 32
        %v2236 = vpop.permute.xlu0 %2235
        %v2239 = vadd.f32 %v2219, %v2234
        %v2240 = vadd.f32 %v2220, %v2236
        %v2241 = vtanh.pop %v2239
        %v2242 = vtanh.pop %v2240
        %2245 = vrot.lane.b32.xlu0 %v2241, 64
        %v2246 = vpop.permute.xlu0 %2245
        %2247 = vrot.lane.b32.xlu0 %v2242, 64
        %v2248 = vpop.permute.xlu0 %2247
        %v2251 = vmul.f32 %v2201, %v2246
        %v2252 = vmul.f32 %v2216, %v2248
        %2255 = vrot.lane.b32.xlu0 %v2251, 32
        %v2256 = vpop.permute.xlu0 %2255
        %2257 = vrot.lane.b32.xlu0 %v2252, 32
        %v2258 = vpop.permute.xlu0 %2257
        %v2259 = vsel %vm366, %v2256, 0
        %v2261 = vsel %vm366, %v2258, 0
        %2263 = vmatpush.msra.mxu0 0.0
        %2264 = vmatpush.msra.mxu0 0.0
        %2265 = vmatpush.msra.mxu0 0.0
        %2266 = vmatpush.msra.mxu0 0.0
        %2267 = vmatpush.msra.mxu0 0.0
        %2268 = vmatpush.msra.mxu0 0.0
        %2269 = vmatpush.msra.mxu0 0.0
        %2270 = vmatpush.msra.mxu0 0.0
        %2271 = vmatpush.msra.mxu0 0.0
        %2272 = vmatpush.msra.mxu0 0.0
        %2273 = vmatpush.msra.mxu0 0.0
        %2274 = vmatpush.msra.mxu0 0.0
        %2275 = vmatpush.msra.mxu0 %v1486
        %2276 = vmatpush.msra.mxu0 %v1485
        %2277 = vmatpush.msra.mxu0 %v1484
        %2278 = vmatpush.msra.mxu0 %v1483
        %2279 = vmatmul.f32.gmra.mxu0 %v2259
        %v2280 = vpop.f32.mrf.mxu0
        %v2281 = vadd.f32 %v1489, %v2280
        %2282 = vmatmul.f32.gmra.mxu0 %v2261
        %v2283 = vpop.f32.mrf.mxu0
        %v2284 = vadd.f32 %v1489, %v2283
        %2285 = vdwg.mxu0
        %s2286 = scalar_lea.vmem %s357, 48 [#allocation3]
        %2287 = vst.msk [vmem:[%s2286] sm:$0xff] %vm1530, %v2281
        %2288 = vst.msk [vmem:[%s2286 + $0x8] sm:$0xff] %vm1530, %v2284
        %v2289 = vsel %vm1530, %v2281, -inf
        %2290 = vmax.xlane.f32.xlu0 %v2289
        %v2291 = vpop.xlane.xlu0 %2290
        %v2292 = vsel %vm1530, %v2284, -inf
        %2293 = vmax.xlane.f32.xlu0 %v2292
        %v2294 = vpop.xlane.xlu0 %2293
        %vm2295 = vcmp.eq.f32.partialorder %v2281, %v2291
        %vm2296 = vcmp.eq.f32.partialorder %v2284, %v2294
        %v2297 = vsel %vm2295, %v1492, 16
        %v2298 = vsel %vm2296, %v1492, 16
        %v2299 = vsel %vm1530, %v2297, 2147483647
        %v2300 = vand.u32 %v2299, 65535
        %v2301 = vshra.s32 %v2299, 16
        %v2302 = vcvt.s32.f32 %v2300
        %v2303 = vcvt.s32.f32 %v2301
        %2304 = vmin.xlane.f32.xlu0 %v2303
        %v2305 = vpop.xlane.xlu0 %2304
        %vm2306 = vcmp.eq.f32.partialorder %v2303, %v2305
        %v2307 = vsel %vm2306, %v2302, inf
        %2308 = vmin.xlane.f32.xlu0 %v2307
        %v2309 = vpop.xlane.xlu0 %2308
        %v2310 = vcvt.f32.s32 %v2309
        %v2311 = vcvt.f32.s32 %v2305
        %v2312 = vshll.u32 %v2311, 16
        %v2313 = vadd.s32 %v2312, %v2310
        %v2314 = vsel %vm1530, %v2298, 2147483647
        %v2315 = vand.u32 %v2314, 65535
        %v2316 = vshra.s32 %v2314, 16
        %v2317 = vcvt.s32.f32 %v2315
        %v2318 = vcvt.s32.f32 %v2316
        %2319 = vmin.xlane.f32.xlu0 %v2318
        %v2320 = vpop.xlane.xlu0 %2319
        %vm2321 = vcmp.eq.f32.partialorder %v2318, %v2320
        %v2322 = vsel %vm2321, %v2317, inf
        %2323 = vmin.xlane.f32.xlu0 %v2322
        %v2324 = vpop.xlane.xlu0 %2323
        %v2325 = vcvt.f32.s32 %v2324
        %v2326 = vcvt.f32.s32 %v2320
        %v2327 = vshll.u32 %v2326, 16
        %v2328 = vadd.s32 %v2327, %v2325
        %vm2329 = vcmp.eq.s32.totalorder %v1492, %v2313
        %vm2330 = vcmp.eq.s32.totalorder %v1492, %v2328
        %v2331 = vsel %vm2329, 1, 0
        %v2332 = vsel %vm2330, 1, 0
        %v2333 = vcvt.s32.f32 %v2331
        %v2334 = vcvt.s32.f32 %v2332
        %2335 = vmatpush.msra.mxu0 0.0
        %2336 = vmatpush.msra.mxu0 0.0
        %2337 = vmatpush.msra.mxu0 0.0
        %2338 = vmatpush.msra.mxu0 0.0
        %2339 = vmatpush.msra.mxu0 0.0
        %2340 = vmatpush.msra.mxu0 0.0
        %2341 = vmatpush.msra.mxu0 0.0
        %2342 = vmatpush.msra.mxu0 0.0
        %2343 = vmatpush.msra.mxu0 0.0
        %2344 = vmatpush.msra.mxu0 0.0
        %2345 = vmatpush.msra.mxu0 0.0
        %2346 = vmatpush.msra.mxu0 0.0
        %2347 = vmatpush.msra.mxu0 %v1482
        %2348 = vmatpush.msra.mxu0 %v1481
        %2349 = vmatpush.msra.mxu0 %v1480
        %2350 = vmatpush.msra.mxu0 %v1479
        %2351 = vmatmul.f32.gmra.mxu0 %v2259
        %v2352 = vpop.f32.mrf.mxu0
        %v2353 = vadd.f32 0.0, %v2352
        %2354 = vmatmul.f32.gmra.mxu0 %v2261
        %v2355 = vpop.f32.mrf.mxu0
        %v2356 = vadd.f32 0.0, %v2355
        %2357 = vdwg.mxu0
        %v2359 = vsel %vm1530, %v2333, 0
        %v2362 = vsel %vm1530, %v2334, 0
        %2364 = vmatpush.msra.mxu0 0.0
        %2365 = vmatpush.msra.mxu0 0.0
        %2366 = vmatpush.msra.mxu0 0.0
        %2367 = vmatpush.msra.mxu0 0.0
        %2368 = vmatpush.msra.mxu0 0.0
        %2369 = vmatpush.msra.mxu0 0.0
        %2370 = vmatpush.msra.mxu0 0.0
        %2371 = vmatpush.msra.mxu0 0.0
        %2372 = vmatpush.msra.mxu0 0.0
        %2373 = vmatpush.msra.mxu0 0.0
        %2374 = vmatpush.msra.mxu0 0.0
        %2375 = vmatpush.msra.mxu0 0.0
        %2376 = vmatpush.msra.mxu0 0.0
        %2377 = vmatpush.msra.mxu0 0.0
        %2378 = vmatpush.msra.mxu0 %v1478
        %2379 = vmatpush.msra.mxu0 %v1477
        %2380 = vmatmul.f32.gmra.mxu0 %v2359
        %v2381 = vpop.f32.mrf.mxu0
        %v2382 = vadd.f32 %v2353, %v2381
        %2383 = vmatmul.f32.gmra.mxu0 %v2362
        %v2384 = vpop.f32.mrf.mxu0
        %v2385 = vadd.f32 %v2356, %v2384
        %2386 = vdwg.mxu0
        %v2387 = vxor.u32 %v2382, 2147483648
        %v2388 = vxor.u32 %v2385, 2147483648
        %v2389 = vmul.f32 %v2387, 1.442695
        %v2390 = vpow.pop %v2389
        %v2391 = vmul.f32 %v2388, 1.442695
        %v2392 = vpow.pop %v2391
        %v2393 = vadd.f32 %v2390, 1.0
        %v2394 = vadd.f32 %v2392, 1.0
        %v2395 = vrcp.pop %v2393
        %v2396 = vmul.f32 %v2393, %v2395
        %v2397 = vsub.f32 1.0, %v2396
        %v2398 = vmul.f32 %v2395, %v2397
        %v2399 = vadd.f32 %v2395, %v2398
        %vm2400 = vweird.f32 %v2393
        %vm2401 = vweird.f32 %v2395
        %vm2402 = vmor %vm2400, %vm2401
        %v2403 = vsel %vm2402, %v2395, %v2399
        %v2404 = vand.u32 2147483647, %v2393
        %vm2405 = vcmp.eq.f32.partialorder %v2404, 8.507059e+37
        %v2406 = vand.u32 %v2393, 2147483648
        %v2407 = vor.u32 1.1754944e-38, %v2406
        %v2408 = vsel %vm2405, %v2407, %v2403
        %v2409 = vmul.f32 1.0, %v2408
        %v2410 = vrcp.pop %v2394
        %v2411 = vmul.f32 %v2394, %v2410
        %v2412 = vsub.f32 1.0, %v2411
        %v2413 = vmul.f32 %v2410, %v2412
        %v2414 = vadd.f32 %v2410, %v2413
        %vm2415 = vweird.f32 %v2394
        %vm2416 = vweird.f32 %v2410
        %vm2417 = vmor %vm2415, %vm2416
        %v2418 = vsel %vm2417, %v2410, %v2414
        %v2419 = vand.u32 2147483647, %v2394
        %vm2420 = vcmp.eq.f32.partialorder %v2419, 8.507059e+37
        %v2421 = vand.u32 %v2394, 2147483648
        %v2422 = vor.u32 1.1754944e-38, %v2421
        %v2423 = vsel %vm2420, %v2422, %v2418
        %v2424 = vmul.f32 1.0, %v2423
        %v2425 = vtanh.pop %v2382
        %v2426 = vtanh.pop %v2385
        %v2427 = vmul.f32 %v2409, %v2239
        %v2428 = vmul.f32 %v2424, %v2240
        %2431 = vrot.lane.b32.xlu0 %v2425, 64
        %v2432 = vpop.permute.xlu0 %2431
        %2433 = vrot.lane.b32.xlu0 %v2426, 64
        %v2434 = vpop.permute.xlu0 %2433
        %v2437 = vmul.f32 %v2409, %v2432
        %v2438 = vmul.f32 %v2424, %v2434
        %2441 = vrot.lane.b32.xlu0 %v2437, 32
        %v2442 = vpop.permute.xlu0 %2441
        %2443 = vrot.lane.b32.xlu0 %v2438, 32
        %v2444 = vpop.permute.xlu0 %2443
        %v2447 = vadd.f32 %v2427, %v2442
        %v2448 = vadd.f32 %v2428, %v2444
        %v2449 = vtanh.pop %v2447
        %v2450 = vtanh.pop %v2448
        %2453 = vrot.lane.b32.xlu0 %v2449, 64
        %v2454 = vpop.permute.xlu0 %2453
        %2455 = vrot.lane.b32.xlu0 %v2450, 64
        %v2456 = vpop.permute.xlu0 %2455
        %v2459 = vmul.f32 %v2409, %v2454
        %v2460 = vmul.f32 %v2424, %v2456
        %2463 = vrot.lane.b32.xlu0 %v2459, 32
        %v2464 = vpop.permute.xlu0 %2463
        %2465 = vrot.lane.b32.xlu0 %v2460, 32
        %v2466 = vpop.permute.xlu0 %2465
        %v2467 = vsel %vm366, %v2464, 0
        %v2469 = vsel %vm366, %v2466, 0
        %2471 = vmatpush.msra.mxu0 0.0
        %2472 = vmatpush.msra.mxu0 0.0
        %2473 = vmatpush.msra.mxu0 0.0
        %2474 = vmatpush.msra.mxu0 0.0
        %2475 = vmatpush.msra.mxu0 0.0
        %2476 = vmatpush.msra.mxu0 0.0
        %2477 = vmatpush.msra.mxu0 0.0
        %2478 = vmatpush.msra.mxu0 0.0
        %2479 = vmatpush.msra.mxu0 0.0
        %2480 = vmatpush.msra.mxu0 0.0
        %2481 = vmatpush.msra.mxu0 0.0
        %2482 = vmatpush.msra.mxu0 0.0
        %2483 = vmatpush.msra.mxu0 %v1486
        %2484 = vmatpush.msra.mxu0 %v1485
        %2485 = vmatpush.msra.mxu0 %v1484
        %2486 = vmatpush.msra.mxu0 %v1483
        %2487 = vmatmul.f32.gmra.mxu0 %v2467
        %v2488 = vpop.f32.mrf.mxu0
        %v2489 = vadd.f32 %v1489, %v2488
        %2490 = vmatmul.f32.gmra.mxu0 %v2469
        %v2491 = vpop.f32.mrf.mxu0
        %v2492 = vadd.f32 %v1489, %v2491
        %2493 = vdwg.mxu0
        %s2494 = scalar_lea.vmem %s357, 64 [#allocation3]
        %2495 = vst.msk [vmem:[%s2494] sm:$0xff] %vm1530, %v2489
        %2496 = vst.msk [vmem:[%s2494 + $0x8] sm:$0xff] %vm1530, %v2492
        %v2497 = vsel %vm1530, %v2489, -inf
        %2498 = vmax.xlane.f32.xlu0 %v2497
        %v2499 = vpop.xlane.xlu0 %2498
        %v2500 = vsel %vm1530, %v2492, -inf
        %2501 = vmax.xlane.f32.xlu0 %v2500
        %v2502 = vpop.xlane.xlu0 %2501
        %vm2503 = vcmp.eq.f32.partialorder %v2489, %v2499
        %vm2504 = vcmp.eq.f32.partialorder %v2492, %v2502
        %v2505 = vsel %vm2503, %v1492, 16
        %v2506 = vsel %vm2504, %v1492, 16
        %v2507 = vsel %vm1530, %v2505, 2147483647
        %v2508 = vand.u32 %v2507, 65535
        %v2509 = vshra.s32 %v2507, 16
        %v2510 = vcvt.s32.f32 %v2508
        %v2511 = vcvt.s32.f32 %v2509
        %2512 = vmin.xlane.f32.xlu0 %v2511
        %v2513 = vpop.xlane.xlu0 %2512
        %vm2514 = vcmp.eq.f32.partialorder %v2511, %v2513
        %v2515 = vsel %vm2514, %v2510, inf
        %2516 = vmin.xlane.f32.xlu0 %v2515
        %v2517 = vpop.xlane.xlu0 %2516
        %v2518 = vcvt.f32.s32 %v2517
        %v2519 = vcvt.f32.s32 %v2513
        %v2520 = vshll.u32 %v2519, 16
        %v2521 = vadd.s32 %v2520, %v2518
        %v2522 = vsel %vm1530, %v2506, 2147483647
        %v2523 = vand.u32 %v2522, 65535
        %v2524 = vshra.s32 %v2522, 16
        %v2525 = vcvt.s32.f32 %v2523
        %v2526 = vcvt.s32.f32 %v2524
        %2527 = vmin.xlane.f32.xlu0 %v2526
        %v2528 = vpop.xlane.xlu0 %2527
        %vm2529 = vcmp.eq.f32.partialorder %v2526, %v2528
        %v2530 = vsel %vm2529, %v2525, inf
        %2531 = vmin.xlane.f32.xlu0 %v2530
        %v2532 = vpop.xlane.xlu0 %2531
        %v2533 = vcvt.f32.s32 %v2532
        %v2534 = vcvt.f32.s32 %v2528
        %v2535 = vshll.u32 %v2534, 16
        %v2536 = vadd.s32 %v2535, %v2533
        %vm2537 = vcmp.eq.s32.totalorder %v1492, %v2521
        %vm2538 = vcmp.eq.s32.totalorder %v1492, %v2536
        %v2539 = vsel %vm2537, 1, 0
        %v2540 = vsel %vm2538, 1, 0
        %v2541 = vcvt.s32.f32 %v2539
        %v2542 = vcvt.s32.f32 %v2540
        %2543 = vmatpush.msra.mxu0 0.0
        %2544 = vmatpush.msra.mxu0 0.0
        %2545 = vmatpush.msra.mxu0 0.0
        %2546 = vmatpush.msra.mxu0 0.0
        %2547 = vmatpush.msra.mxu0 0.0
        %2548 = vmatpush.msra.mxu0 0.0
        %2549 = vmatpush.msra.mxu0 0.0
        %2550 = vmatpush.msra.mxu0 0.0
        %2551 = vmatpush.msra.mxu0 0.0
        %2552 = vmatpush.msra.mxu0 0.0
        %2553 = vmatpush.msra.mxu0 0.0
        %2554 = vmatpush.msra.mxu0 0.0
        %2555 = vmatpush.msra.mxu0 %v1482
        %2556 = vmatpush.msra.mxu0 %v1481
        %2557 = vmatpush.msra.mxu0 %v1480
        %2558 = vmatpush.msra.mxu0 %v1479
        %2559 = vmatmul.f32.gmra.mxu0 %v2467
        %v2560 = vpop.f32.mrf.mxu0
        %v2561 = vadd.f32 0.0, %v2560
        %2562 = vmatmul.f32.gmra.mxu0 %v2469
        %v2563 = vpop.f32.mrf.mxu0
        %v2564 = vadd.f32 0.0, %v2563
        %2565 = vdwg.mxu0
        %v2567 = vsel %vm1530, %v2541, 0
        %v2570 = vsel %vm1530, %v2542, 0
        %2572 = vmatpush.msra.mxu0 0.0
        %2573 = vmatpush.msra.mxu0 0.0
        %2574 = vmatpush.msra.mxu0 0.0
        %2575 = vmatpush.msra.mxu0 0.0
        %2576 = vmatpush.msra.mxu0 0.0
        %2577 = vmatpush.msra.mxu0 0.0
        %2578 = vmatpush.msra.mxu0 0.0
        %2579 = vmatpush.msra.mxu0 0.0
        %2580 = vmatpush.msra.mxu0 0.0
        %2581 = vmatpush.msra.mxu0 0.0
        %2582 = vmatpush.msra.mxu0 0.0
        %2583 = vmatpush.msra.mxu0 0.0
        %2584 = vmatpush.msra.mxu0 0.0
        %2585 = vmatpush.msra.mxu0 0.0
        %2586 = vmatpush.msra.mxu0 %v1478
        %2587 = vmatpush.msra.mxu0 %v1477
        %2588 = vmatmul.f32.gmra.mxu0 %v2567
        %v2589 = vpop.f32.mrf.mxu0
        %v2590 = vadd.f32 %v2561, %v2589
        %2591 = vmatmul.f32.gmra.mxu0 %v2570
        %v2592 = vpop.f32.mrf.mxu0
        %v2593 = vadd.f32 %v2564, %v2592
        %2594 = vdwg.mxu0
        %v2595 = vxor.u32 %v2590, 2147483648
        %v2596 = vxor.u32 %v2593, 2147483648
        %v2597 = vmul.f32 %v2595, 1.442695
        %v2598 = vpow.pop %v2597
        %v2599 = vmul.f32 %v2596, 1.442695
        %v2600 = vpow.pop %v2599
        %v2601 = vadd.f32 %v2598, 1.0
        %v2602 = vadd.f32 %v2600, 1.0
        %v2603 = vrcp.pop %v2601
        %v2604 = vmul.f32 %v2601, %v2603
        %v2605 = vsub.f32 1.0, %v2604
        %v2606 = vmul.f32 %v2603, %v2605
        %v2607 = vadd.f32 %v2603, %v2606
        %vm2608 = vweird.f32 %v2601
        %vm2609 = vweird.f32 %v2603
        %vm2610 = vmor %vm2608, %vm2609
        %v2611 = vsel %vm2610, %v2603, %v2607
        %v2612 = vand.u32 2147483647, %v2601
        %vm2613 = vcmp.eq.f32.partialorder %v2612, 8.507059e+37
        %v2614 = vand.u32 %v2601, 2147483648
        %v2615 = vor.u32 1.1754944e-38, %v2614
        %v2616 = vsel %vm2613, %v2615, %v2611
        %v2617 = vmul.f32 1.0, %v2616
        %v2618 = vrcp.pop %v2602
        %v2619 = vmul.f32 %v2602, %v2618
        %v2620 = vsub.f32 1.0, %v2619
        %v2621 = vmul.f32 %v2618, %v2620
        %v2622 = vadd.f32 %v2618, %v2621
        %vm2623 = vweird.f32 %v2602
        %vm2624 = vweird.f32 %v2618
        %vm2625 = vmor %vm2623, %vm2624
        %v2626 = vsel %vm2625, %v2618, %v2622
        %v2627 = vand.u32 2147483647, %v2602
        %vm2628 = vcmp.eq.f32.partialorder %v2627, 8.507059e+37
        %v2629 = vand.u32 %v2602, 2147483648
        %v2630 = vor.u32 1.1754944e-38, %v2629
        %v2631 = vsel %vm2628, %v2630, %v2626
        %v2632 = vmul.f32 1.0, %v2631
        %v2633 = vtanh.pop %v2590
        %v2634 = vtanh.pop %v2593
        %v2635 = vmul.f32 %v2617, %v2447
        %v2636 = vmul.f32 %v2632, %v2448
        %2639 = vrot.lane.b32.xlu0 %v2633, 64
        %v2640 = vpop.permute.xlu0 %2639
        %2641 = vrot.lane.b32.xlu0 %v2634, 64
        %v2642 = vpop.permute.xlu0 %2641
        %v2645 = vmul.f32 %v2617, %v2640
        %v2646 = vmul.f32 %v2632, %v2642
        %2649 = vrot.lane.b32.xlu0 %v2645, 32
        %v2650 = vpop.permute.xlu0 %2649
        %2651 = vrot.lane.b32.xlu0 %v2646, 32
        %v2652 = vpop.permute.xlu0 %2651
        %v2655 = vadd.f32 %v2635, %v2650
        %v2656 = vadd.f32 %v2636, %v2652
        %v2657 = vtanh.pop %v2655
        %v2658 = vtanh.pop %v2656
        %2661 = vrot.lane.b32.xlu0 %v2657, 64
        %v2662 = vpop.permute.xlu0 %2661
        %2663 = vrot.lane.b32.xlu0 %v2658, 64
        %v2664 = vpop.permute.xlu0 %2663
        %v2667 = vmul.f32 %v2617, %v2662
        %v2668 = vmul.f32 %v2632, %v2664
        %2671 = vrot.lane.b32.xlu0 %v2667, 32
        %v2672 = vpop.permute.xlu0 %2671
        %2673 = vrot.lane.b32.xlu0 %v2668, 32
        %v2674 = vpop.permute.xlu0 %2673
        %v2675 = vsel %vm366, %v2672, 0
        %v2677 = vsel %vm366, %v2674, 0
        %2679 = vmatpush.msra.mxu0 0.0
        %2680 = vmatpush.msra.mxu0 0.0
        %2681 = vmatpush.msra.mxu0 0.0
        %2682 = vmatpush.msra.mxu0 0.0
        %2683 = vmatpush.msra.mxu0 0.0
        %2684 = vmatpush.msra.mxu0 0.0
        %2685 = vmatpush.msra.mxu0 0.0
        %2686 = vmatpush.msra.mxu0 0.0
        %2687 = vmatpush.msra.mxu0 0.0
        %2688 = vmatpush.msra.mxu0 0.0
        %2689 = vmatpush.msra.mxu0 0.0
        %2690 = vmatpush.msra.mxu0 0.0
        %2691 = vmatpush.msra.mxu0 %v1486
        %2692 = vmatpush.msra.mxu0 %v1485
        %2693 = vmatpush.msra.mxu0 %v1484
        %2694 = vmatpush.msra.mxu0 %v1483
        %2695 = vmatmul.f32.gmra.mxu0 %v2675
        %v2696 = vpop.f32.mrf.mxu0
        %v2697 = vadd.f32 %v1489, %v2696
        %2698 = vmatmul.f32.gmra.mxu0 %v2677
        %v2699 = vpop.f32.mrf.mxu0
        %v2700 = vadd.f32 %v1489, %v2699
        %2701 = vdwg.mxu0
        %s2702 = scalar_lea.vmem %s357, 80 [#allocation3]
        %2703 = vst.msk [vmem:[%s2702] sm:$0xff] %vm1530, %v2697
        %2704 = vst.msk [vmem:[%s2702 + $0x8] sm:$0xff] %vm1530, %v2700
        %s2705 = sand.u32 %s156, 1
        %s2706 = sand.u32 %s156, 1
        %s2707 = smul.addr %s2706, 96
        %s2708 = scalar_lea.vmem [#allocation3], %s2707
        // Predicated region
        $region83: #{a_call__.1} parent=77 // pred_check
          %p2709 = pneg %p166
        $region84: #{a_call__.1} parent=77 // pred_check_branch
          %2711 = sbr.rel (%p2709) target = $region86
        $region85: #{a_call__.1} parent=77 // pred_region
          %s2712 = smul.u32 2, %s17
          %s2713 = smul.addr %s2712, 8
          %s2714 = scalar_lea.vmem %s6, %s2713
          // Predicated region
          $region87: #{a_call__.1} parent=85 // pred_check
            _
          $region88: #{a_call__.1} parent=85 // pred_check_branch
            %2716 = sbr.rel (0) target = $region90
          $region89: #{a_call__.1} parent=85 // pred_region
            // Predicated region
            $region91: #{a_call__.1} parent=89 // pred_check
              _
            $region92: #{a_call__.1} parent=89 // pred_check_branch
              %2718 = sbr.rel (0) target = $region94
            $region93: #{a_call__.1} parent=89 // pred_region
              // Predicated region
              $region106: #{a_call__.1} parent=93 // pred_check
                _
              $region107: #{a_call__.1} parent=93 // pred_check_branch
                %2756 = sbr.rel (0) target = $region109
              $region108: #{a_call__.1} parent=93 // pred_region
                loop: start=0, step=1, limit=1
                $region110: #{a_call__.1} parent=108 // loop_pre_header
                  _
                $region111: #{a_call__.1} parent=108 // loop_header
                  %s2758 = sphi 0, %s2762
                  %p2759 = scmp.ge.s32.totalorder %s2758, 1
                  %s2763 = sphi %s2708, %s2708
                  %s2764 = sphi %s2714, %s2714
                $region112: #{a_call__.1} parent=108 // loop_header_branch
                  %2761 = sbr.rel (%p2759) target = $region116
                $region113: #{a_call__.1} parent=108 // loop_body
                  %v2765 = vld [vmem:[%s2763] sm:$0xff]
                  %2766 = vst [vmem:[%s2764] sm:$0xff] %v2765
                  %v2767 = vld [vmem:[%s2763 + $0x8] sm:$0xff]
                  %2768 = vst [vmem:[%s2764 + $0x8] sm:$0xff] %v2767
                  %v2769 = vld [vmem:[%s2763 + $0x10] sm:$0xff]
                  %2770 = vst [vmem:[%s2764 + $0x20] sm:$0xff] %v2769
                  %v2771 = vld [vmem:[%s2763 + $0x18] sm:$0xff]
                  %2772 = vst [vmem:[%s2764 + $0x28] sm:$0xff] %v2771
                  %v2773 = vld [vmem:[%s2763 + $0x20] sm:$0xff]
                  %2774 = vst [vmem:[%s2764 + $0x40] sm:$0xff] %v2773
                  %v2775 = vld [vmem:[%s2763 + $0x28] sm:$0xff]
                  %2776 = vst [vmem:[%s2764 + $0x48] sm:$0xff] %v2775
                  %v2777 = vld [vmem:[%s2763 + $0x30] sm:$0xff]
                  %2778 = vst [vmem:[%s2764 + $0x60] sm:$0xff] %v2777
                  %v2779 = vld [vmem:[%s2763 + $0x38] sm:$0xff]
                  %2780 = vst [vmem:[%s2764 + $0x68] sm:$0xff] %v2779
                  %v2781 = vld [vmem:[%s2763 + $0x40] sm:$0xff]
                  %2782 = vst [vmem:[%s2764 + $0x80] sm:$0xff] %v2781
                  %v2783 = vld [vmem:[%s2763 + $0x48] sm:$0xff]
                  %2784 = vst [vmem:[%s2764 + $0x88] sm:$0xff] %v2783
                  %v2785 = vld [vmem:[%s2763 + $0x50] sm:$0xff]
                  %2786 = vst [vmem:[%s2764 + $0xa0] sm:$0xff] %v2785
                  %v2787 = vld [vmem:[%s2763 + $0x58] sm:$0xff]
                  %2788 = vst [vmem:[%s2764 + $0xa8] sm:$0xff] %v2787
                $region114: #{a_call__.1} parent=108 // loop_footer
                  %s2762 = sadd.s32 1, %s2758
                $region115: #{a_call__.1} parent=108 // loop_footer_branch
                  %2757 = sbr.rel target = $region111
                $region116: #{a_call__.1} parent=108 // loop_exit
                  _
              $region109: #{a_call__.1} parent=93 // pred_fallthru
                _
              // Predicated region
              $region117: #{a_call__.1} parent=93 // pred_check
                _
              $region118: #{a_call__.1} parent=93 // pred_check_branch
                %2790 = sbr.rel target = $region120
              $region119: #{a_call__.1} parent=93 // pred_region
                _
              $region120: #{a_call__.1} parent=93 // pred_fallthru
                _
            $region94: #{a_call__.1} parent=89 // pred_fallthru
              _
            // Predicated region
            $region95: #{a_call__.1} parent=89 // pred_check
              _
            $region96: #{a_call__.1} parent=89 // pred_check_branch
              %2720 = sbr.rel target = $region98
            $region97: #{a_call__.1} parent=89 // pred_region
              %s2722 = ssub.s32 256, 1
              loop: start=0, step=1, limit=1
              $region99: #{a_call__.1} parent=97 // loop_pre_header
                _
              $region100: #{a_call__.1} parent=97 // loop_header
                %s2724 = sphi 0, %s2728
                %p2725 = scmp.ge.s32.totalorder %s2724, 1
                %s2729 = sphi %s2708, %s2708
                %s2730 = sphi %s2714, %s2714
              $region101: #{a_call__.1} parent=97 // loop_header_branch
                %2727 = sbr.rel (%p2725) target = $region105
              $region102: #{a_call__.1} parent=97 // loop_body
                %v2731 = vld [vmem:[%s2729] sm:%s2722]
                %2732 = vst [vmem:[%s2730] sm:%s2722] %v2731
                %v2733 = vld [vmem:[%s2729 + $0x8] sm:%s2722]
                %2734 = vst [vmem:[%s2730 + $0x8] sm:%s2722] %v2733
                %v2735 = vld [vmem:[%s2729 + $0x10] sm:%s2722]
                %2736 = vst [vmem:[%s2730 + $0x20] sm:%s2722] %v2735
                %v2737 = vld [vmem:[%s2729 + $0x18] sm:%s2722]
                %2738 = vst [vmem:[%s2730 + $0x28] sm:%s2722] %v2737
                %v2739 = vld [vmem:[%s2729 + $0x20] sm:%s2722]
                %2740 = vst [vmem:[%s2730 + $0x40] sm:%s2722] %v2739
                %v2741 = vld [vmem:[%s2729 + $0x28] sm:%s2722]
                %2742 = vst [vmem:[%s2730 + $0x48] sm:%s2722] %v2741
                %v2743 = vld [vmem:[%s2729 + $0x30] sm:%s2722]
                %2744 = vst [vmem:[%s2730 + $0x60] sm:%s2722] %v2743
                %v2745 = vld [vmem:[%s2729 + $0x38] sm:%s2722]
                %2746 = vst [vmem:[%s2730 + $0x68] sm:%s2722] %v2745
                %v2747 = vld [vmem:[%s2729 + $0x40] sm:%s2722]
                %2748 = vst [vmem:[%s2730 + $0x80] sm:%s2722] %v2747
                %v2749 = vld [vmem:[%s2729 + $0x48] sm:%s2722]
                %2750 = vst [vmem:[%s2730 + $0x88] sm:%s2722] %v2749
                %v2751 = vld [vmem:[%s2729 + $0x50] sm:%s2722]
                %2752 = vst [vmem:[%s2730 + $0xa0] sm:%s2722] %v2751
                %v2753 = vld [vmem:[%s2729 + $0x58] sm:%s2722]
                %2754 = vst [vmem:[%s2730 + $0xa8] sm:%s2722] %v2753
              $region103: #{a_call__.1} parent=97 // loop_footer
                %s2728 = sadd.s32 1, %s2724
              $region104: #{a_call__.1} parent=97 // loop_footer_branch
                %2723 = sbr.rel target = $region100
              $region105: #{a_call__.1} parent=97 // loop_exit
                _
            $region98: #{a_call__.1} parent=89 // pred_fallthru
              _
          $region90: #{a_call__.1} parent=85 // pred_fallthru
            _
          %2791 = vnop
        $region86: #{a_call__.1} parent=77 // pred_fallthru
          _
      $region78: #{a_call__.1} parent=5 // pred_fallthru
        _
      %p2792 = scmp.le.s32.totalorder 2, %s12
      // Predicated region
      $region121: #{a_call__.1} parent=5 // pred_check
        %p2793 = pneg %p2792
      $region122: #{a_call__.1} parent=5 // pred_check_branch
        %2795 = sbr.rel (%p2793) target = $region124
      $region123: #{a_call__.1} parent=5 // pred_region
        %s2796 = ssub.s32 %s12, 2
        // Predicated region
        $region125: #{a_call__.1} parent=123 // pred_check
          %p2797 = pneg %p172
        $region126: #{a_call__.1} parent=123 // pred_check_branch
          %2799 = sbr.rel (%p2797) target = $region128
        $region127: #{a_call__.1} parent=123 // pred_region
          %s2800 = sand.u32 %s157, 1
          %s2801 = sand.u32 %s157, 1
          %s2802 = smul.addr %s2801, 96
          %s2803 = scalar_lea.vmem [#allocation3], %s2802
        $region128: #{a_call__.1} parent=123 // pred_fallthru
          _
      $region124: #{a_call__.1} parent=5 // pred_fallthru
        _
    $region6: #{a_call__.1} parent=1 // loop_footer
      %s16 = sadd.s32 1, %s12
    $region7: #{a_call__.1} parent=1 // loop_footer_branch
      %11 = sbr.rel target = $region3
    $region8: #{a_call__.1} parent=1 // loop_exit
      _

</llo_original>
